<compile_context>
chip_gen: v7x
topology: tpu7x:2x2x1
jax: 0.10.0
libtpu: 0.0.40
codegen_flags: <defaults>
</compile_context>

<pallas_src>
import functools

import jax
import jax.numpy as jnp
from jax import lax
from jax.experimental import pallas as pl
from jax.experimental.pallas import tpu as pltpu


# -----------------------------------------------------------------------------
# Kernel A: fused multi-head causal self-attention + output projection
#           + residual add + LayerNorm1   (one batch element per grid step)
#   x:(1,T,C) f32  wqkv:(C,3*Hhs) bf16 (Q pre-scaled)  wp:(Hhs,C) bf16
#   bp/g1/b1:(1,C) f32  -> x1:(1,T,C) f32 ; ctx scratch:(T,Hhs) f32 (VMEM)
# -----------------------------------------------------------------------------
def attn_proj_ln_kernel(x_ref, wqkv_ref, wp_ref, bp_ref, g_ref, b_ref,
                        o_ref, ctx_ref, *, n_head, head_size):
    H, hs = n_head, head_size
    Hhs = H * hs
    x = x_ref[0]                                        # (T, C) f32
    T = x.shape[0]

    # One wide lane-dense QKV matmul (bf16 MXU inputs, f32 accumulate,
    # immediate downcast so only the bf16 copy stays live).
    qkv = jnp.dot(x.astype(jnp.bfloat16), wqkv_ref[...],
                  preferred_element_type=jnp.float32).astype(jnp.bfloat16)

    # Causal mask; large finite negative (every row keeps its diagonal).
    row = lax.broadcasted_iota(jnp.int32, (T, T), 0)
    col = lax.broadcasted_iota(jnp.int32, (T, T), 1)
    causal = col <= row

    # Per-head attention; head outputs land in the in-VMEM context buffer.
    for h in range(H):
        q = qkv[:, h * hs:(h + 1) * hs]                 # scale already folded in
        k = qkv[:, Hhs + h * hs:Hhs + (h + 1) * hs]
        v = qkv[:, 2 * Hhs + h * hs:2 * Hhs + (h + 1) * hs]
        # canonical q.k^T contraction of the hs axes (no explicit k transpose)
        s = lax.dot_general(q, k, (((1,), (1,)), ((), ())),
                            preferred_element_type=jnp.float32)
        s = jnp.where(causal, s, -1e30)
        s = s - jnp.max(s, axis=-1, keepdims=True)
        p = jnp.exp(s)
        # approx reciprocal uses the EUP slot; rows sum to 1 +- ~1e-3 (inference)
        p = p * pl.reciprocal(jnp.sum(p, axis=-1, keepdims=True), approx=True)
        # TODO(synk): training-mode dropout (p=0.25) on attention probs.
        ctx_ref[:, h * hs:(h + 1) * hs] = jnp.dot(
            p.astype(jnp.bfloat16), v, preferred_element_type=jnp.float32)

    # Single full-depth (K=Hhs) output projection + bias + residual + LN1.
    y = jnp.dot(ctx_ref[...].astype(jnp.bfloat16), wp_ref[...],
                preferred_element_type=jnp.float32)     # (T, C)
    z = x + y + bp_ref[...]
    mu = jnp.mean(z, axis=-1, keepdims=True)
    var = jnp.mean((z - mu) ** 2, axis=-1, keepdims=True)
    o_ref[0] = (z - mu) * lax.rsqrt(var + 1e-5) * g_ref[...] + b_ref[...]


# -----------------------------------------------------------------------------
# Kernel B: feed-forward (Linear -> ReLU -> Linear) + residual + LayerNorm2
#   grid = (row tiles, hidden chunks).  The hidden (4C) axis is the trailing
#   "arbitrary" axis; partial y accumulates into a (tm, C) f32 scratch so the
#   full (tm, 4C) f32 hidden is never resident.
#   x:(tm,C) f32  w1:(C,kc) bf16  b1:(1,kc) f32  w2:(kc,C) bf16
#   b2/g2/b2ln:(1,C) f32  -> out:(tm,C) f32
# -----------------------------------------------------------------------------
def ffn_ln_kernel(x_ref, w1_ref, b1_ref, w2_ref, b2_ref, g_ref, b_ref,
                  o_ref, acc_ref):
    k = pl.program_id(1)

    @pl.when(k == 0)
    def _():
        acc_ref[...] = jnp.zeros_like(acc_ref)

    x = x_ref[...]                                      # (tm, C) f32
    h = jnp.dot(x.astype(jnp.bfloat16), w1_ref[...],
                preferred_element_type=jnp.float32) + b1_ref[...]
    h = jnp.maximum(h, 0.0)                             # ReLU (per hidden unit)
    acc_ref[...] += jnp.dot(h.astype(jnp.bfloat16), w2_ref[...],
                            preferred_element_type=jnp.float32)

    @pl.when(k == pl.num_programs(1) - 1)
    def _():
        # TODO(synk): training-mode dropout (p=0.25) after the second linear.
        z = x + acc_ref[...] + b2_ref[...]
        mu = jnp.mean(z, axis=-1, keepdims=True)
        var = jnp.mean((z - mu) ** 2, axis=-1, keepdims=True)
        o_ref[...] = (z - mu) * lax.rsqrt(var + 1e-5) * g_ref[...] + b_ref[...]


# -----------------------------------------------------------------------------
# Tiling helpers
# -----------------------------------------------------------------------------
def _choose_row_tile(rows, cap=512):
    """Largest multiple-of-8 divisor of `rows` <= cap; prefer >=2 grid steps
    (keeps both v7x TensorCores busy) when possible."""
    divs = [d for d in range(8, min(rows, cap) + 1, 8) if rows % d == 0]
    if not divs:
        return rows                         # single full-extent block
    multi = [d for d in divs if rows // d >= 2]
    return max(multi) if multi else max(divs)


def _choose_hidden_tile(hidden, cap=2048):
    """Chunk size for the 4C hidden dim: multiple of 128 (lane rule), >=256 so
    the MXU contraction stays deep, small enough to bound the (tm,kc) f32."""
    if hidden <= cap:
        return hidden
    for cand in range(cap, 255, -128):
        if hidden % cand == 0:
            return cand
    return hidden


# -----------------------------------------------------------------------------
# Wrapper
# -----------------------------------------------------------------------------
def make_block_forward(single_buffer_weights=True):

    def _wspec(shape, index_map, single):
        # Grid-invariant weights: request 1 pipeline buffer (halves their VMEM).
        if single:
            try:
                return pl.BlockSpec(shape, index_map,
                                    pipeline_mode=pl.Buffered(1))
            except TypeError:
                pass
        return pl.BlockSpec(shape, index_map)

    @jax.jit
    def block_forward(x, params):
        B, T, C = x.shape
        wq, wk, wv = params["wq"], params["wk"], params["wv"]
        H, _, hs = wq.shape
        Hhs = H * hs

        def heads_to_2d(w):                             # (H, C, hs) -> (C, H*hs)
            return jnp.transpose(w, (1, 0, 2)).reshape(C, Hhs)

        # Pack QKV into one lane-dense bf16 weight; fold 1/sqrt(hs) into Q.
        wqkv = jnp.concatenate(
            [heads_to_2d(wq) * (float(hs) ** -0.5),
             heads_to_2d(wk), heads_to_2d(wv)],
            axis=-1).astype(jnp.bfloat16)               # (C, 3*Hhs)
        wp = params["wp"].astype(jnp.bfloat16)          # (Hhs, C)
        w1 = params["w1"].astype(jnp.bfloat16)          # (C, 4C)
        w2 = params["w2"].astype(jnp.bfloat16)          # (4C, C)

        # ---- Kernel A: attention + out-proj + residual + LN1 ----------------
        nbuf_w = 1 if single_buffer_weights else 2
        est_a = (4 * T * C * 4                          # x in + out, dbl-buffered
                 + (C * 3 * Hhs + Hhs * C) * 2 * nbuf_w  # bf16 weights
                 + 6 * C * 4                            # bias / gamma / beta
                 + T * 3 * Hhs * 2                      # qkv bf16
                 + T * Hhs * 4                          # ctx scratch
                 + 3 * T * T * 4                        # scores / probs temps
                 + 4 * T * C * 4)                       # y / z / LN temps
        vmem_a = int(min(64 * 2**20, max(32 * 2**20, 2 * est_a)))

        attn_cost = pl.CostEstimate(
            flops=(2 * B * T * C * 3 * Hhs              # QKV projection
                   + 4 * B * H * T * T * hs             # scores + p@v
                   + 2 * B * T * Hhs * C),              # output projection
            transcendentals=B * H * T * T,
            bytes_accessed=(2 * B * T * C * 4
                            + (C * 3 * Hhs + Hhs * C) * 2 + 3 * C * 4))

        kern_a = functools.partial(attn_proj_ln_kernel, n_head=H, head_size=hs)
        x1 = pl.pallas_call(
            kern_a,
            grid=(B,),
            in_specs=[
                pl.BlockSpec((1, T, C), lambda b: (b, 0, 0)),
                _wspec((C, 3 * Hhs), lambda b: (0, 0), single_buffer_weights),
                _wspec((Hhs, C), lambda b: (0, 0), single_buffer_weights),
                pl.BlockSpec((1, C), lambda b: (0, 0)),
                pl.BlockSpec((1, C), lambda b: (0, 0)),
                pl.BlockSpec((1, C), lambda b: (0, 0)),
            ],
            out_specs=pl.BlockSpec((1, T, C), lambda b: (b, 0, 0)),
            out_shape=jax.ShapeDtypeStruct((B, T, C), jnp.float32),
            scratch_shapes=[pltpu.VMEM((T, Hhs), jnp.float32)],
            compiler_params=pltpu.CompilerParams(
                dimension_semantics=("parallel",),
                vmem_limit_bytes=vmem_a),
            cost_estimate=attn_cost,
        )(x, wqkv, wp, params["bp"], params["g1"], params["b1"])

        # ---- Kernel B: FFN + residual + LN2 over (row tile, hidden chunk) ---
        rows = B * T
        tm = _choose_row_tile(rows)
        hidden = w1.shape[1]                            # 4*C
        kc = _choose_hidden_tile(hidden)
        n_kc = hidden // kc
        w_single = single_buffer_weights and n_kc == 1  # invariant only if 1 chunk

        est_b = (4 * tm * C * 4
                 + (C * kc + kc * C) * 2 * (1 if w_single else 2)
                 + (kc + 3 * C) * 4 * 2
                 + 2 * tm * kc * 4                      # hidden chunk
                 + 3 * tm * C * 4)                      # acc scratch + z + out
        vmem_b = int(min(64 * 2**20, max(32 * 2**20, 2 * est_b)))

        ffn_cost = pl.CostEstimate(
            flops=4 * rows * C * hidden,
            transcendentals=0,
            bytes_accessed=(2 * rows * C * 4 + 2 * C * hidden * 2
                            + (hidden + 3 * C) * 4))

        x1_flat = x1.reshape(rows, C)
        x2_flat = pl.pallas_call(
            ffn_ln_kernel,
            grid=(rows // tm, n_kc),
            in_specs=[
                pl.BlockSpec((tm, C), lambda i, k: (i, 0)),
                _wspec((C, kc), lambda i, k: (0, k), w_single),
                pl.BlockSpec((1, kc), lambda i, k: (0, k)),
                _wspec((kc, C), lambda i, k: (k, 0), w_single),
                pl.BlockSpec((1, C), lambda i, k: (0, 0)),
                pl.BlockSpec((1, C), lambda i, k: (0, 0)),
                pl.BlockSpec((1, C), lambda i, k: (0, 0)),
            ],
            out_specs=pl.BlockSpec((tm, C), lambda i, k: (i, 0)),
            out_shape=jax.ShapeDtypeStruct((rows, C), jnp.float32),
            scratch_shapes=[pltpu.VMEM((tm, C), jnp.float32)],
            compiler_params=pltpu.CompilerParams(
                dimension_semantics=("parallel", "arbitrary"),
                vmem_limit_bytes=vmem_b),
            cost_estimate=ffn_cost,
        )(x1_flat, w1, params["bf1"], w2, params["bf2"],
          params["g2"], params["b2"])

        return x2_flat.reshape(B, T, C)

    return block_forward


# -----------------------------------------------------------------------------
# Pure-JAX f32 reference (kernel uses bf16 MXU inputs + approx reciprocal,
# so tolerances are loosened accordingly).
# -----------------------------------------------------------------------------
def block_reference(x, params):
    B, T, C = x.shape
    wq, wk, wv = params["wq"], params["wk"], params["wv"]
    H, _, hs = wq.shape
    outs = []
    for h in range(H):
        q = x @ wq[h]
        k = x @ wk[h]
        v = x @ wv[h]
        s = (q @ jnp.swapaxes(k, -2, -1)) * (hs ** -0.5)
        mask = jnp.tril(jnp.ones((T, T), bool))
        s = jnp.where(mask, s, -jnp.inf)
        p = jax.nn.softmax(s, axis=-1)
        outs.append(p @ v)
    a = jnp.concatenate(outs, axis=-1)
    y = a @ params["wp"] + params["bp"][0]

    def ln(z, g, b):
        mu = jnp.mean(z, -1, keepdims=True)
        var = jnp.mean((z - mu) ** 2, -1, keepdims=True)
        return (z - mu) / jnp.sqrt(var + 1e-5) * g[0] + b[0]

    x1 = ln(x + y, params["g1"], params["b1"])
    hdn = jnp.maximum(x1 @ params["w1"] + params["bf1"][0], 0.0)
    y2 = hdn @ params["w2"] + params["bf2"][0]
    x2 = ln(x1 + y2, params["g2"], params["b2"])
    return x2


# -----------------------------------------------------------------------------
if __name__ == "__main__":
    # Small shapes consistent with the module (n_embd divisible by n_head);
    # small analog of the real config (n_embd=640, n_head=14, block_size=128).
    B, T = 2, 16
    n_embd, n_head = 64, 4
    head_size = n_embd // n_head          # 16
    Hhs = n_head * head_size

    key = jax.random.PRNGKey(0)
    keys = jax.random.split(key, 12)
    scale = 0.02

    params = {
        "wq": jax.random.normal(keys[0], (n_head, n_embd, head_size), jnp.float32) * scale,
        "wk": jax.random.normal(keys[1], (n_head, n_embd, head_size), jnp.float32) * scale,
        "wv": jax.random.normal(keys[2], (n_head, n_embd, head_size), jnp.float32) * scale,
        "wp": jax.random.normal(keys[3], (Hhs, n_embd), jnp.float32) * scale,
        "bp": jax.random.normal(keys[4], (1, n_embd), jnp.float32) * scale,
        "g1": jnp.ones((1, n_embd), jnp.float32),
        "b1": jnp.zeros((1, n_embd), jnp.float32),
        "w1": jax.random.normal(keys[5], (n_embd, 4 * n_embd), jnp.float32) * scale,
        "bf1": jax.random.normal(keys[6], (1, 4 * n_embd), jnp.float32) * scale,
        "w2": jax.random.normal(keys[7], (4 * n_embd, n_embd), jnp.float32) * scale,
        "bf2": jax.random.normal(keys[8], (1, n_embd), jnp.float32) * scale,
        "g2": jnp.ones((1, n_embd), jnp.float32),
        "b2": jnp.zeros((1, n_embd), jnp.float32),
    }

    x = jax.random.normal(keys[9], (B, T, n_embd), jnp.float32)

    try:
        fwd = make_block_forward(single_buffer_weights=True)
        out = jax.block_until_ready(fwd(x, params))
    except Exception:
        # pl.Buffered(1) on invariant weights unsupported on this build:
        # fall back to default double buffering (semantics identical).
        fwd = make_block_forward(single_buffer_weights=False)
        out = jax.block_until_ready(fwd(x, params))

    ref = block_reference(x, params)
    assert out.shape == (B, T, n_embd)
    # bf16 MXU inputs + approx reciprocal => loosened tolerance vs f32 reference
    assert jnp.allclose(out, ref, atol=2e-2, rtol=2e-2), "mismatch vs reference"

    print("KERNEL_OK")
</pallas_src>

<mosaic_0001>
module attributes {stable_mosaic.version = 11 : i64} {
  func.func @attn_proj_ln_kernel(%arg0: i32, %arg1: memref<1x16x64xf32, #tpu.memory_space<vmem>>, %arg2: memref<64x192xbf16, #tpu.memory_space<vmem>>, %arg3: memref<64x64xbf16, #tpu.memory_space<vmem>>, %arg4: memref<1x64xf32, #tpu.memory_space<vmem>>, %arg5: memref<1x64xf32, #tpu.memory_space<vmem>>, %arg6: memref<1x64xf32, #tpu.memory_space<vmem>>, %arg7: memref<1x16x64xf32, #tpu.memory_space<vmem>>, %arg8: memref<16x64xf32, #tpu.memory_space<vmem>>) attributes {dimension_semantics = [#tpu.dimension_semantics<parallel>], iteration_bounds = array<i64: 2>, scalar_prefetch = 0 : i64, scratch_operands = 1 : i64, tpu.core_type = #tpu.core_type<tc>, window_params = [{transform_indices = @transform_0, window_bounds = array<i64: 1, 16, 64>}, {pipeline_mode = #tpu.pipeline_mode<synchronous>, transform_indices = @transform_1, window_bounds = array<i64: 64, 192>}, {pipeline_mode = #tpu.pipeline_mode<synchronous>, transform_indices = @transform_2, window_bounds = array<i64: 64, 64>}, {pipeline_mode = #tpu.pipeline_mode<synchronous>, transform_indices = @transform_3, window_bounds = array<i64: 1, 64>}, {pipeline_mode = #tpu.pipeline_mode<synchronous>, transform_indices = @transform_4, window_bounds = array<i64: 1, 64>}, {pipeline_mode = #tpu.pipeline_mode<synchronous>, transform_indices = @transform_5, window_bounds = array<i64: 1, 64>}, {transform_indices = @transform_6, window_bounds = array<i64: 1, 16, 64>}]} {
    %c0 = arith.constant 0 : index
    %c0_0 = arith.constant 0 : index
    %c0_1 = arith.constant 0 : index
    %0 = vector.load %arg1[%c0, %c0_0, %c0_1] : memref<1x16x64xf32, #tpu.memory_space<vmem>>, vector<1x16x64xf32>
    %1 = vector.shape_cast %0 : vector<1x16x64xf32> to vector<16x64xf32>
    %2 = arith.truncf %1 : vector<16x64xf32> to vector<16x64xbf16>
    %c0_2 = arith.constant 0 : index
    %c0_3 = arith.constant 0 : index
    %3 = vector.load %arg2[%c0_2, %c0_3] : memref<64x192xbf16, #tpu.memory_space<vmem>>, vector<64x192xbf16>
    %cst = arith.constant dense<0.000000e+00> : vector<16x192xf32>
    %4 = tpu.matmul %2, %3, %cst {dimension_numbers = #tpu.dot_dimension_numbers<[1], [0], [0], [1], [0, 0, 1, 1], [], []>} : vector<16x64xbf16>, vector<64x192xbf16>, vector<16x192xf32> -> vector<16x192xf32>
    %5 = arith.truncf %4 : vector<16x192xf32> to vector<16x192xbf16>
    %6 = tpu.iota {dimensions = array<i32: 0>} : vector<16x16xi32>
    %7 = tpu.iota {dimensions = array<i32: 1>} : vector<16x16xi32>
    %8 = arith.cmpi sle, %7, %6 : vector<16x16xi32>
    %9 = vector.extract_strided_slice %5 {offsets = [0, 0], sizes = [16, 16], strides = [1, 1]} : vector<16x192xbf16> to vector<16x16xbf16>
    %10 = vector.extract_strided_slice %5 {offsets = [0, 64], sizes = [16, 16], strides = [1, 1]} : vector<16x192xbf16> to vector<16x16xbf16>
    %11 = vector.extract_strided_slice %5 {offsets = [0, 128], sizes = [16, 16], strides = [1, 1]} : vector<16x192xbf16> to vector<16x16xbf16>
    %cst_4 = arith.constant dense<0.000000e+00> : vector<16x16xf32>
    %12 = tpu.matmul %9, %10, %cst_4 {dimension_numbers = #tpu.dot_dimension_numbers<[1], [1], [0], [0], [0, 0, 1, 0], [], []>} : vector<16x16xbf16>, vector<16x16xbf16>, vector<16x16xf32> -> vector<16x16xf32>
    %cst_5 = arith.constant -1.000000e+30 : f32
    %13 = vector.broadcast %cst_5 : f32 to vector<16x16xf32>
    %14 = arith.select %8, %12, %13 : vector<16x16xi1>, vector<16x16xf32>
    %cst_6 = arith.constant dense<0xFF800000> : vector<16xf32>
    %15 = vector.multi_reduction <maximumf>, %14, %cst_6 [1] : vector<16x16xf32> to vector<16xf32>
    %16 = vector.shape_cast %15 : vector<16xf32> to vector<16x1xf32>
    %17 = vector.broadcast %16 : vector<16x1xf32> to vector<16x16xf32>
    %18 = arith.subf %14, %17 : vector<16x16xf32>
    %19 = math.exp %18 : vector<16x16xf32>
    %cst_7 = arith.constant dense<0.000000e+00> : vector<16xf32>
    %20 = vector.multi_reduction <add>, %19, %cst_7 [1] : vector<16x16xf32> to vector<16xf32>
    %21 = vector.shape_cast %20 : vector<16xf32> to vector<16x1xf32>
    %22 = tpu.reciprocal %21 {approx = true} : vector<16x1xf32> -> vector<16x1xf32>
    %23 = vector.broadcast %22 : vector<16x1xf32> to vector<16x16xf32>
    %24 = arith.mulf %19, %23 : vector<16x16xf32>
    %25 = arith.truncf %24 : vector<16x16xf32> to vector<16x16xbf16>
    %cst_8 = arith.constant dense<0.000000e+00> : vector<16x16xf32>
    %26 = tpu.matmul %25, %11, %cst_8 {dimension_numbers = #tpu.dot_dimension_numbers<[1], [0], [0], [1], [0, 0, 1, 1], [], []>} : vector<16x16xbf16>, vector<16x16xbf16>, vector<16x16xf32> -> vector<16x16xf32>
    %c0_9 = arith.constant 0 : index
    %c0_10 = arith.constant 0 : index
    %27 = vector.load %arg8[%c0_9, %c0_10] : memref<16x64xf32, #tpu.memory_space<vmem>>, vector<16x16xf32>
    tpu.vector_store %arg8[%c0_9, %c0_10], %26 {strides = array<i32>} : memref<16x64xf32, #tpu.memory_space<vmem>>, vector<16x16xf32>,
    %28 = vector.extract_strided_slice %5 {offsets = [0, 16], sizes = [16, 16], strides = [1, 1]} : vector<16x192xbf16> to vector<16x16xbf16>
    %29 = vector.extract_strided_slice %5 {offsets = [0, 80], sizes = [16, 16], strides = [1, 1]} : vector<16x192xbf16> to vector<16x16xbf16>
    %30 = vector.extract_strided_slice %5 {offsets = [0, 144], sizes = [16, 16], strides = [1, 1]} : vector<16x192xbf16> to vector<16x16xbf16>
    %cst_11 = arith.constant dense<0.000000e+00> : vector<16x16xf32>
    %31 = tpu.matmul %28, %29, %cst_11 {dimension_numbers = #tpu.dot_dimension_numbers<[1], [1], [0], [0], [0, 0, 1, 0], [], []>} : vector<16x16xbf16>, vector<16x16xbf16>, vector<16x16xf32> -> vector<16x16xf32>
    %cst_12 = arith.constant -1.000000e+30 : f32
    %32 = vector.broadcast %cst_12 : f32 to vector<16x16xf32>
    %33 = arith.select %8, %31, %32 : vector<16x16xi1>, vector<16x16xf32>
    %cst_13 = arith.constant dense<0xFF800000> : vector<16xf32>
    %34 = vector.multi_reduction <maximumf>, %33, %cst_13 [1] : vector<16x16xf32> to vector<16xf32>
    %35 = vector.shape_cast %34 : vector<16xf32> to vector<16x1xf32>
    %36 = vector.broadcast %35 : vector<16x1xf32> to vector<16x16xf32>
    %37 = arith.subf %33, %36 : vector<16x16xf32>
    %38 = math.exp %37 : vector<16x16xf32>
    %cst_14 = arith.constant dense<0.000000e+00> : vector<16xf32>
    %39 = vector.multi_reduction <add>, %38, %cst_14 [1] : vector<16x16xf32> to vector<16xf32>
    %40 = vector.shape_cast %39 : vector<16xf32> to vector<16x1xf32>
    %41 = tpu.reciprocal %40 {approx = true} : vector<16x1xf32> -> vector<16x1xf32>
    %42 = vector.broadcast %41 : vector<16x1xf32> to vector<16x16xf32>
    %43 = arith.mulf %38, %42 : vector<16x16xf32>
    %44 = arith.truncf %43 : vector<16x16xf32> to vector<16x16xbf16>
    %cst_15 = arith.constant dense<0.000000e+00> : vector<16x16xf32>
    %45 = tpu.matmul %44, %30, %cst_15 {dimension_numbers = #tpu.dot_dimension_numbers<[1], [0], [0], [1], [0, 0, 1, 1], [], []>} : vector<16x16xbf16>, vector<16x16xbf16>, vector<16x16xf32> -> vector<16x16xf32>
    %c0_16 = arith.constant 0 : index
    %c16 = arith.constant 16 : index
    %46 = vector.load %arg8[%c0_16, %c16] : memref<16x64xf32, #tpu.memory_space<vmem>>, vector<16x16xf32>
    tpu.vector_store %arg8[%c0_16, %c16], %45 {strides = array<i32>} : memref<16x64xf32, #tpu.memory_space<vmem>>, vector<16x16xf32>,
    %47 = vector.extract_strided_slice %5 {offsets = [0, 32], sizes = [16, 16], strides = [1, 1]} : vector<16x192xbf16> to vector<16x16xbf16>
    %48 = vector.extract_strided_slice %5 {offsets = [0, 96], sizes = [16, 16], strides = [1, 1]} : vector<16x192xbf16> to vector<16x16xbf16>
    %49 = vector.extract_strided_slice %5 {offsets = [0, 160], sizes = [16, 16], strides = [1, 1]} : vector<16x192xbf16> to vector<16x16xbf16>
    %cst_17 = arith.constant dense<0.000000e+00> : vector<16x16xf32>
    %50 = tpu.matmul %47, %48, %cst_17 {dimension_numbers = #tpu.dot_dimension_numbers<[1], [1], [0], [0], [0, 0, 1, 0], [], []>} : vector<16x16xbf16>, vector<16x16xbf16>, vector<16x16xf32> -> vector<16x16xf32>
    %cst_18 = arith.constant -1.000000e+30 : f32
    %51 = vector.broadcast %cst_18 : f32 to vector<16x16xf32>
    %52 = arith.select %8, %50, %51 : vector<16x16xi1>, vector<16x16xf32>
    %cst_19 = arith.constant dense<0xFF800000> : vector<16xf32>
    %53 = vector.multi_reduction <maximumf>, %52, %cst_19 [1] : vector<16x16xf32> to vector<16xf32>
    %54 = vector.shape_cast %53 : vector<16xf32> to vector<16x1xf32>
    %55 = vector.broadcast %54 : vector<16x1xf32> to vector<16x16xf32>
    %56 = arith.subf %52, %55 : vector<16x16xf32>
    %57 = math.exp %56 : vector<16x16xf32>
    %cst_20 = arith.constant dense<0.000000e+00> : vector<16xf32>
    %58 = vector.multi_reduction <add>, %57, %cst_20 [1] : vector<16x16xf32> to vector<16xf32>
    %59 = vector.shape_cast %58 : vector<16xf32> to vector<16x1xf32>
    %60 = tpu.reciprocal %59 {approx = true} : vector<16x1xf32> -> vector<16x1xf32>
    %61 = vector.broadcast %60 : vector<16x1xf32> to vector<16x16xf32>
    %62 = arith.mulf %57, %61 : vector<16x16xf32>
    %63 = arith.truncf %62 : vector<16x16xf32> to vector<16x16xbf16>
    %cst_21 = arith.constant dense<0.000000e+00> : vector<16x16xf32>
    %64 = tpu.matmul %63, %49, %cst_21 {dimension_numbers = #tpu.dot_dimension_numbers<[1], [0], [0], [1], [0, 0, 1, 1], [], []>} : vector<16x16xbf16>, vector<16x16xbf16>, vector<16x16xf32> -> vector<16x16xf32>
    %c0_22 = arith.constant 0 : index
    %c32 = arith.constant 32 : index
    %65 = vector.load %arg8[%c0_22, %c32] : memref<16x64xf32, #tpu.memory_space<vmem>>, vector<16x16xf32>
    tpu.vector_store %arg8[%c0_22, %c32], %64 {strides = array<i32>} : memref<16x64xf32, #tpu.memory_space<vmem>>, vector<16x16xf32>,
    %66 = vector.extract_strided_slice %5 {offsets = [0, 48], sizes = [16, 16], strides = [1, 1]} : vector<16x192xbf16> to vector<16x16xbf16>
    %67 = vector.extract_strided_slice %5 {offsets = [0, 112], sizes = [16, 16], strides = [1, 1]} : vector<16x192xbf16> to vector<16x16xbf16>
    %68 = vector.extract_strided_slice %5 {offsets = [0, 176], sizes = [16, 16], strides = [1, 1]} : vector<16x192xbf16> to vector<16x16xbf16>
    %cst_23 = arith.constant dense<0.000000e+00> : vector<16x16xf32>
    %69 = tpu.matmul %66, %67, %cst_23 {dimension_numbers = #tpu.dot_dimension_numbers<[1], [1], [0], [0], [0, 0, 1, 0], [], []>} : vector<16x16xbf16>, vector<16x16xbf16>, vector<16x16xf32> -> vector<16x16xf32>
    %cst_24 = arith.constant -1.000000e+30 : f32
    %70 = vector.broadcast %cst_24 : f32 to vector<16x16xf32>
    %71 = arith.select %8, %69, %70 : vector<16x16xi1>, vector<16x16xf32>
    %cst_25 = arith.constant dense<0xFF800000> : vector<16xf32>
    %72 = vector.multi_reduction <maximumf>, %71, %cst_25 [1] : vector<16x16xf32> to vector<16xf32>
    %73 = vector.shape_cast %72 : vector<16xf32> to vector<16x1xf32>
    %74 = vector.broadcast %73 : vector<16x1xf32> to vector<16x16xf32>
    %75 = arith.subf %71, %74 : vector<16x16xf32>
    %76 = math.exp %75 : vector<16x16xf32>
    %cst_26 = arith.constant dense<0.000000e+00> : vector<16xf32>
    %77 = vector.multi_reduction <add>, %76, %cst_26 [1] : vector<16x16xf32> to vector<16xf32>
    %78 = vector.shape_cast %77 : vector<16xf32> to vector<16x1xf32>
    %79 = tpu.reciprocal %78 {approx = true} : vector<16x1xf32> -> vector<16x1xf32>
    %80 = vector.broadcast %79 : vector<16x1xf32> to vector<16x16xf32>
    %81 = arith.mulf %76, %80 : vector<16x16xf32>
    %82 = arith.truncf %81 : vector<16x16xf32> to vector<16x16xbf16>
    %cst_27 = arith.constant dense<0.000000e+00> : vector<16x16xf32>
    %83 = tpu.matmul %82, %68, %cst_27 {dimension_numbers = #tpu.dot_dimension_numbers<[1], [0], [0], [1], [0, 0, 1, 1], [], []>} : vector<16x16xbf16>, vector<16x16xbf16>, vector<16x16xf32> -> vector<16x16xf32>
    %c0_28 = arith.constant 0 : index
    %c48 = arith.constant 48 : index
    %84 = vector.load %arg8[%c0_28, %c48] : memref<16x64xf32, #tpu.memory_space<vmem>>, vector<16x16xf32>
    tpu.vector_store %arg8[%c0_28, %c48], %83 {strides = array<i32>} : memref<16x64xf32, #tpu.memory_space<vmem>>, vector<16x16xf32>,
    %c0_29 = arith.constant 0 : index
    %c0_30 = arith.constant 0 : index
    %85 = vector.load %arg8[%c0_29, %c0_30] : memref<16x64xf32, #tpu.memory_space<vmem>>, vector<16x64xf32>
    %86 = arith.truncf %85 : vector<16x64xf32> to vector<16x64xbf16>
    %c0_31 = arith.constant 0 : index
    %c0_32 = arith.constant 0 : index
    %87 = vector.load %arg3[%c0_31, %c0_32] : memref<64x64xbf16, #tpu.memory_space<vmem>>, vector<64x64xbf16>
    %cst_33 = arith.constant dense<0.000000e+00> : vector<16x64xf32>
    %88 = tpu.matmul %86, %87, %cst_33 {dimension_numbers = #tpu.dot_dimension_numbers<[1], [0], [0], [1], [0, 0, 1, 1], [], []>} : vector<16x64xbf16>, vector<64x64xbf16>, vector<16x64xf32> -> vector<16x64xf32>
    %89 = arith.addf %1, %88 : vector<16x64xf32>
    %c0_34 = arith.constant 0 : index
    %c0_35 = arith.constant 0 : index
    %90 = vector.load %arg4[%c0_34, %c0_35] : memref<1x64xf32, #tpu.memory_space<vmem>>, vector<1x64xf32>
    %91 = vector.broadcast %90 : vector<1x64xf32> to vector<16x64xf32>
    %92 = arith.addf %89, %91 : vector<16x64xf32>
    %cst_36 = arith.constant dense<0.000000e+00> : vector<16xf32>
    %93 = vector.multi_reduction <add>, %92, %cst_36 [1] : vector<16x64xf32> to vector<16xf32>
    %94 = vector.shape_cast %93 : vector<16xf32> to vector<16x1xf32>
    %cst_37 = arith.constant 6.400000e+01 : f32
    %95 = vector.broadcast %cst_37 : f32 to vector<16x1xf32>
    %96 = arith.divf %94, %95 : vector<16x1xf32>
    %97 = vector.broadcast %96 : vector<16x1xf32> to vector<16x64xf32>
    %98 = arith.subf %92, %97 : vector<16x64xf32>
    %99 = arith.mulf %98, %98 : vector<16x64xf32>
    %cst_38 = arith.constant dense<0.000000e+00> : vector<16xf32>
    %100 = vector.multi_reduction <add>, %99, %cst_38 [1] : vector<16x64xf32> to vector<16xf32>
    %101 = vector.shape_cast %100 : vector<16xf32> to vector<16x1xf32>
    %cst_39 = arith.constant 6.400000e+01 : f32
    %102 = vector.broadcast %cst_39 : f32 to vector<16x1xf32>
    %103 = arith.divf %101, %102 : vector<16x1xf32>
    %104 = vector.broadcast %96 : vector<16x1xf32> to vector<16x64xf32>
    %105 = arith.subf %92, %104 : vector<16x64xf32>
    %cst_40 = arith.constant 9.99999974E-6 : f32
    %106 = vector.broadcast %cst_40 : f32 to vector<16x1xf32>
    %107 = arith.addf %103, %106 : vector<16x1xf32>
    %108 = math.rsqrt %107 : vector<16x1xf32>
    %109 = vector.broadcast %108 : vector<16x1xf32> to vector<16x64xf32>
    %110 = arith.mulf %105, %109 : vector<16x64xf32>
    %c0_41 = arith.constant 0 : index
    %c0_42 = arith.constant 0 : index
    %111 = vector.load %arg5[%c0_41, %c0_42] : memref<1x64xf32, #tpu.memory_space<vmem>>, vector<1x64xf32>
    %112 = vector.broadcast %111 : vector<1x64xf32> to vector<16x64xf32>
    %113 = arith.mulf %110, %112 : vector<16x64xf32>
    %c0_43 = arith.constant 0 : index
    %c0_44 = arith.constant 0 : index
    %114 = vector.load %arg6[%c0_43, %c0_44] : memref<1x64xf32, #tpu.memory_space<vmem>>, vector<1x64xf32>
    %115 = vector.broadcast %114 : vector<1x64xf32> to vector<16x64xf32>
    %116 = arith.addf %113, %115 : vector<16x64xf32>
    %c0_45 = arith.constant 0 : index
    %c0_46 = arith.constant 0 : index
    %c0_47 = arith.constant 0 : index
    %117 = vector.load %arg7[%c0_45, %c0_46, %c0_47] : memref<1x16x64xf32, #tpu.memory_space<vmem>>, vector<1x16x64xf32>
    %118 = vector.shape_cast %117 : vector<1x16x64xf32> to vector<16x64xf32>
    %119 = vector.shape_cast %116 : vector<16x64xf32> to vector<1x16x64xf32>
    tpu.vector_store %arg7[%c0_45, %c0_46, %c0_47], %119 {strides = array<i32>} : memref<1x16x64xf32, #tpu.memory_space<vmem>>, vector<1x16x64xf32>,
    return
  }
  func.func @transform_0(%arg0: i32) -> (i32, i32, i32) {
    %c0_i32 = arith.constant 0 : i32
    %c0_i32_0 = arith.constant 0 : i32
    %c0_i32_1 = arith.constant 0 : i32
    return %arg0, %c0_i32, %c0_i32_0 : i32, i32, i32
  }
  func.func @transform_1(%arg0: i32) -> (i32, i32) {
    %c0_i32 = arith.constant 0 : i32
    %c0_i32_0 = arith.constant 0 : i32
    %c0_i32_1 = arith.constant 0 : i32
    return %c0_i32, %c0_i32_0 : i32, i32
  }
  func.func @transform_2(%arg0: i32) -> (i32, i32) {
    %c0_i32 = arith.constant 0 : i32
    %c0_i32_0 = arith.constant 0 : i32
    %c0_i32_1 = arith.constant 0 : i32
    return %c0_i32, %c0_i32_0 : i32, i32
  }
  func.func @transform_3(%arg0: i32) -> (i32, i32) {
    %c0_i32 = arith.constant 0 : i32
    %c0_i32_0 = arith.constant 0 : i32
    %c0_i32_1 = arith.constant 0 : i32
    return %c0_i32, %c0_i32_0 : i32, i32
  }
  func.func @transform_4(%arg0: i32) -> (i32, i32) {
    %c0_i32 = arith.constant 0 : i32
    %c0_i32_0 = arith.constant 0 : i32
    %c0_i32_1 = arith.constant 0 : i32
    return %c0_i32, %c0_i32_0 : i32, i32
  }
  func.func @transform_5(%arg0: i32) -> (i32, i32) {
    %c0_i32 = arith.constant 0 : i32
    %c0_i32_0 = arith.constant 0 : i32
    %c0_i32_1 = arith.constant 0 : i32
    return %c0_i32, %c0_i32_0 : i32, i32
  }
  func.func @transform_6(%arg0: i32) -> (i32, i32, i32) {
    %c0_i32 = arith.constant 0 : i32
    %c0_i32_0 = arith.constant 0 : i32
    %c0_i32_1 = arith.constant 0 : i32
    return %arg0, %c0_i32, %c0_i32_0 : i32, i32, i32
  }
}

module attributes {stable_mosaic.version = 11 : i64} {
  func.func @ffn_ln_kernel(%arg0: i32, %arg1: i32, %arg2: memref<16x64xf32, #tpu.memory_space<vmem>>, %arg3: memref<64x256xbf16, #tpu.memory_space<vmem>>, %arg4: memref<1x256xf32, #tpu.memory_space<vmem>>, %arg5: memref<256x64xbf16, #tpu.memory_space<vmem>>, %arg6: memref<1x64xf32, #tpu.memory_space<vmem>>, %arg7: memref<1x64xf32, #tpu.memory_space<vmem>>, %arg8: memref<1x64xf32, #tpu.memory_space<vmem>>, %arg9: memref<16x64xf32, #tpu.memory_space<vmem>>, %arg10: memref<16x64xf32, #tpu.memory_space<vmem>>) attributes {dimension_semantics = [#tpu.dimension_semantics<parallel>, #tpu.dimension_semantics<arbitrary>], iteration_bounds = array<i64: 2, 1>, scalar_prefetch = 0 : i64, scratch_operands = 1 : i64, tpu.core_type = #tpu.core_type<tc>, window_params = [{transform_indices = @transform_0, window_bounds = array<i64: 16, 64>}, {pipeline_mode = #tpu.pipeline_mode<synchronous>, transform_indices = @transform_1, window_bounds = array<i64: 64, 256>}, {transform_indices = @transform_2, window_bounds = array<i64: 1, 256>}, {pipeline_mode = #tpu.pipeline_mode<synchronous>, transform_indices = @transform_3, window_bounds = array<i64: 256, 64>}, {pipeline_mode = #tpu.pipeline_mode<synchronous>, transform_indices = @transform_4, window_bounds = array<i64: 1, 64>}, {pipeline_mode = #tpu.pipeline_mode<synchronous>, transform_indices = @transform_5, window_bounds = array<i64: 1, 64>}, {pipeline_mode = #tpu.pipeline_mode<synchronous>, transform_indices = @transform_6, window_bounds = array<i64: 1, 64>}, {transform_indices = @transform_7, window_bounds = array<i64: 16, 64>}]} {
    %c0_i32 = arith.constant 0 : i32
    %0 = arith.cmpi eq, %arg1, %c0_i32 : i32
    %1 = arith.extui %0 : i1 to i32
    %c0_i32_0 = arith.constant 0 : i32
    %2 = arith.cmpi ne, %1, %c0_i32_0 : i32
    scf.if %2 {
      %cst_16 = arith.constant 0.000000e+00 : f32
      %21 = vector.broadcast %cst_16 : f32 to vector<16x64xf32>
      %c0_17 = arith.constant 0 : index
      %c0_18 = arith.constant 0 : index
      %22 = vector.load %arg10[%c0_17, %c0_18] : memref<16x64xf32, #tpu.memory_space<vmem>>, vector<16x64xf32>
      tpu.vector_store %arg10[%c0_17, %c0_18], %21 {strides = array<i32>} : memref<16x64xf32, #tpu.memory_space<vmem>>, vector<16x64xf32>,
    } else {
    }
    %c0 = arith.constant 0 : index
    %c0_1 = arith.constant 0 : index
    %3 = vector.load %arg2[%c0, %c0_1] : memref<16x64xf32, #tpu.memory_space<vmem>>, vector<16x64xf32>
    %4 = arith.truncf %3 : vector<16x64xf32> to vector<16x64xbf16>
    %c0_2 = arith.constant 0 : index
    %c0_3 = arith.constant 0 : index
    %5 = vector.load %arg3[%c0_2, %c0_3] : memref<64x256xbf16, #tpu.memory_space<vmem>>, vector<64x256xbf16>
    %cst = arith.constant dense<0.000000e+00> : vector<16x256xf32>
    %6 = tpu.matmul %4, %5, %cst {dimension_numbers = #tpu.dot_dimension_numbers<[1], [0], [0], [1], [0, 0, 1, 1], [], []>} : vector<16x64xbf16>, vector<64x256xbf16>, vector<16x256xf32> -> vector<16x256xf32>
    %c0_4 = arith.constant 0 : index
    %c0_5 = arith.constant 0 : index
    %7 = vector.load %arg4[%c0_4, %c0_5] : memref<1x256xf32, #tpu.memory_space<vmem>>, vector<1x256xf32>
    %8 = vector.broadcast %7 : vector<1x256xf32> to vector<16x256xf32>
    %9 = arith.addf %6, %8 : vector<16x256xf32>
    %cst_6 = arith.constant 0.000000e+00 : f32
    %10 = vector.broadcast %cst_6 : f32 to vector<16x256xf32>
    %11 = arith.maximumf %9, %10 : vector<16x256xf32>
    %c0_7 = arith.constant 0 : index
    %c0_8 = arith.constant 0 : index
    %12 = vector.load %arg10[%c0_7, %c0_8] : memref<16x64xf32, #tpu.memory_space<vmem>>, vector<16x64xf32>
    %13 = arith.truncf %11 : vector<16x256xf32> to vector<16x256xbf16>
    %c0_9 = arith.constant 0 : index
    %c0_10 = arith.constant 0 : index
    %14 = vector.load %arg5[%c0_9, %c0_10] : memref<256x64xbf16, #tpu.memory_space<vmem>>, vector<256x64xbf16>
    %cst_11 = arith.constant dense<0.000000e+00> : vector<16x64xf32>
    %15 = tpu.matmul %13, %14, %cst_11 {dimension_numbers = #tpu.dot_dimension_numbers<[1], [0], [0], [1], [0, 0, 1, 1], [], []>} : vector<16x256xbf16>, vector<256x64xbf16>, vector<16x64xf32> -> vector<16x64xf32>
    %16 = arith.addf %12, %15 : vector<16x64xf32>
    %c0_12 = arith.constant 0 : index
    %c0_13 = arith.constant 0 : index
    %17 = vector.load %arg10[%c0_12, %c0_13] : memref<16x64xf32, #tpu.memory_space<vmem>>, vector<16x64xf32>
    tpu.vector_store %arg10[%c0_12, %c0_13], %16 {strides = array<i32>} : memref<16x64xf32, #tpu.memory_space<vmem>>, vector<16x64xf32>,
    %c0_i32_14 = arith.constant 0 : i32
    %18 = arith.cmpi eq, %arg1, %c0_i32_14 : i32
    %19 = arith.extui %18 : i1 to i32
    %c0_i32_15 = arith.constant 0 : i32
    %20 = arith.cmpi ne, %19, %c0_i32_15 : i32
    scf.if %20 {
      %c0_16 = arith.constant 0 : index
      %c0_17 = arith.constant 0 : index
      %21 = vector.load %arg10[%c0_16, %c0_17] : memref<16x64xf32, #tpu.memory_space<vmem>>, vector<16x64xf32>
      %22 = arith.addf %3, %21 : vector<16x64xf32>
      %c0_18 = arith.constant 0 : index
      %c0_19 = arith.constant 0 : index
      %23 = vector.load %arg6[%c0_18, %c0_19] : memref<1x64xf32, #tpu.memory_space<vmem>>, vector<1x64xf32>
      %24 = vector.broadcast %23 : vector<1x64xf32> to vector<16x64xf32>
      %25 = arith.addf %22, %24 : vector<16x64xf32>
      %cst_20 = arith.constant dense<0.000000e+00> : vector<16xf32>
      %26 = vector.multi_reduction <add>, %25, %cst_20 [1] : vector<16x64xf32> to vector<16xf32>
      %27 = vector.shape_cast %26 : vector<16xf32> to vector<16x1xf32>
      %cst_21 = arith.constant 6.400000e+01 : f32
      %28 = vector.broadcast %cst_21 : f32 to vector<16x1xf32>
      %29 = arith.divf %27, %28 : vector<16x1xf32>
      %30 = vector.broadcast %29 : vector<16x1xf32> to vector<16x64xf32>
      %31 = arith.subf %25, %30 : vector<16x64xf32>
      %32 = arith.mulf %31, %31 : vector<16x64xf32>
      %cst_22 = arith.constant dense<0.000000e+00> : vector<16xf32>
      %33 = vector.multi_reduction <add>, %32, %cst_22 [1] : vector<16x64xf32> to vector<16xf32>
      %34 = vector.shape_cast %33 : vector<16xf32> to vector<16x1xf32>
      %cst_23 = arith.constant 6.400000e+01 : f32
      %35 = vector.broadcast %cst_23 : f32 to vector<16x1xf32>
      %36 = arith.divf %34, %35 : vector<16x1xf32>
      %37 = vector.broadcast %29 : vector<16x1xf32> to vector<16x64xf32>
      %38 = arith.subf %25, %37 : vector<16x64xf32>
      %cst_24 = arith.constant 9.99999974E-6 : f32
      %39 = vector.broadcast %cst_24 : f32 to vector<16x1xf32>
      %40 = arith.addf %36, %39 : vector<16x1xf32>
      %41 = math.rsqrt %40 : vector<16x1xf32>
      %42 = vector.broadcast %41 : vector<16x1xf32> to vector<16x64xf32>
      %43 = arith.mulf %38, %42 : vector<16x64xf32>
      %c0_25 = arith.constant 0 : index
      %c0_26 = arith.constant 0 : index
      %44 = vector.load %arg7[%c0_25, %c0_26] : memref<1x64xf32, #tpu.memory_space<vmem>>, vector<1x64xf32>
      %45 = vector.broadcast %44 : vector<1x64xf32> to vector<16x64xf32>
      %46 = arith.mulf %43, %45 : vector<16x64xf32>
      %c0_27 = arith.constant 0 : index
      %c0_28 = arith.constant 0 : index
      %47 = vector.load %arg8[%c0_27, %c0_28] : memref<1x64xf32, #tpu.memory_space<vmem>>, vector<1x64xf32>
      %48 = vector.broadcast %47 : vector<1x64xf32> to vector<16x64xf32>
      %49 = arith.addf %46, %48 : vector<16x64xf32>
      %c0_29 = arith.constant 0 : index
      %c0_30 = arith.constant 0 : index
      %50 = vector.load %arg9[%c0_29, %c0_30] : memref<16x64xf32, #tpu.memory_space<vmem>>, vector<16x64xf32>
      tpu.vector_store %arg9[%c0_29, %c0_30], %49 {strides = array<i32>} : memref<16x64xf32, #tpu.memory_space<vmem>>, vector<16x64xf32>,
    } else {
    }
    return
  }
  func.func @transform_0(%arg0: i32, %arg1: i32) -> (i32, i32) {
    %c0_i32 = arith.constant 0 : i32
    %c0_i32_0 = arith.constant 0 : i32
    return %arg0, %c0_i32 : i32, i32
  }
  func.func @transform_1(%arg0: i32, %arg1: i32) -> (i32, i32) {
    %c0_i32 = arith.constant 0 : i32
    %c0_i32_0 = arith.constant 0 : i32
    return %c0_i32, %arg1 : i32, i32
  }
  func.func @transform_2(%arg0: i32, %arg1: i32) -> (i32, i32) {
    %c0_i32 = arith.constant 0 : i32
    %c0_i32_0 = arith.constant 0 : i32
    return %c0_i32, %arg1 : i32, i32
  }
  func.func @transform_3(%arg0: i32, %arg1: i32) -> (i32, i32) {
    %c0_i32 = arith.constant 0 : i32
    %c0_i32_0 = arith.constant 0 : i32
    return %arg1, %c0_i32 : i32, i32
  }
  func.func @transform_4(%arg0: i32, %arg1: i32) -> (i32, i32) {
    %c0_i32 = arith.constant 0 : i32
    %c0_i32_0 = arith.constant 0 : i32
    %c0_i32_1 = arith.constant 0 : i32
    return %c0_i32, %c0_i32_0 : i32, i32
  }
  func.func @transform_5(%arg0: i32, %arg1: i32) -> (i32, i32) {
    %c0_i32 = arith.constant 0 : i32
    %c0_i32_0 = arith.constant 0 : i32
    %c0_i32_1 = arith.constant 0 : i32
    return %c0_i32, %c0_i32_0 : i32, i32
  }
  func.func @transform_6(%arg0: i32, %arg1: i32) -> (i32, i32) {
    %c0_i32 = arith.constant 0 : i32
    %c0_i32_0 = arith.constant 0 : i32
    %c0_i32_1 = arith.constant 0 : i32
    return %c0_i32, %c0_i32_0 : i32, i32
  }
  func.func @transform_7(%arg0: i32, %arg1: i32) -> (i32, i32) {
    %c0_i32 = arith.constant 0 : i32
    %c0_i32_0 = arith.constant 0 : i32
    return %arg0, %c0_i32 : i32, i32
  }
}

module attributes {stable_mosaic.version = 11 : i64} {
  func.func @attn_proj_ln_kernel(%arg0: i32, %arg1: memref<1x16x64xf32, #tpu.memory_space<vmem>>, %arg2: memref<64x192xbf16, #tpu.memory_space<vmem>>, %arg3: memref<64x64xbf16, #tpu.memory_space<vmem>>, %arg4: memref<1x64xf32, #tpu.memory_space<vmem>>, %arg5: memref<1x64xf32, #tpu.memory_space<vmem>>, %arg6: memref<1x64xf32, #tpu.memory_space<vmem>>, %arg7: memref<1x16x64xf32, #tpu.memory_space<vmem>>, %arg8: memref<16x64xf32, #tpu.memory_space<vmem>>) attributes {dimension_semantics = [#tpu.dimension_semantics<parallel>], iteration_bounds = array<i64: 2>, scalar_prefetch = 0 : i64, scratch_operands = 1 : i64, tpu.core_type = #tpu.core_type<tc>, window_params = [{transform_indices = @transform_0, window_bounds = array<i64: 1, 16, 64>}, {pipeline_mode = #tpu.pipeline_mode<synchronous>, transform_indices = @transform_1, window_bounds = array<i64: 64, 192>}, {pipeline_mode = #tpu.pipeline_mode<synchronous>, transform_indices = @transform_2, window_bounds = array<i64: 64, 64>}, {pipeline_mode = #tpu.pipeline_mode<synchronous>, transform_indices = @transform_3, window_bounds = array<i64: 1, 64>}, {pipeline_mode = #tpu.pipeline_mode<synchronous>, transform_indices = @transform_4, window_bounds = array<i64: 1, 64>}, {pipeline_mode = #tpu.pipeline_mode<synchronous>, transform_indices = @transform_5, window_bounds = array<i64: 1, 64>}, {transform_indices = @transform_6, window_bounds = array<i64: 1, 16, 64>}]} {
    %c0 = arith.constant 0 : index
    %c0_0 = arith.constant 0 : index
    %c0_1 = arith.constant 0 : index
    %0 = vector.load %arg1[%c0, %c0_0, %c0_1] : memref<1x16x64xf32, #tpu.memory_space<vmem>>, vector<1x16x64xf32>
    %1 = vector.shape_cast %0 : vector<1x16x64xf32> to vector<16x64xf32>
    %2 = arith.truncf %1 : vector<16x64xf32> to vector<16x64xbf16>
    %c0_2 = arith.constant 0 : index
    %c0_3 = arith.constant 0 : index
    %3 = vector.load %arg2[%c0_2, %c0_3] : memref<64x192xbf16, #tpu.memory_space<vmem>>, vector<64x192xbf16>
    %cst = arith.constant dense<0.000000e+00> : vector<16x192xf32>
    %4 = tpu.matmul %2, %3, %cst {dimension_numbers = #tpu.dot_dimension_numbers<[1], [0], [0], [1], [0, 0, 1, 1], [], []>} : vector<16x64xbf16>, vector<64x192xbf16>, vector<16x192xf32> -> vector<16x192xf32>
    %5 = arith.truncf %4 : vector<16x192xf32> to vector<16x192xbf16>
    %6 = tpu.iota {dimensions = array<i32: 0>} : vector<16x16xi32>
    %7 = tpu.iota {dimensions = array<i32: 1>} : vector<16x16xi32>
    %8 = arith.cmpi sle, %7, %6 : vector<16x16xi32>
    %9 = vector.extract_strided_slice %5 {offsets = [0, 0], sizes = [16, 16], strides = [1, 1]} : vector<16x192xbf16> to vector<16x16xbf16>
    %10 = vector.extract_strided_slice %5 {offsets = [0, 64], sizes = [16, 16], strides = [1, 1]} : vector<16x192xbf16> to vector<16x16xbf16>
    %11 = vector.extract_strided_slice %5 {offsets = [0, 128], sizes = [16, 16], strides = [1, 1]} : vector<16x192xbf16> to vector<16x16xbf16>
    %cst_4 = arith.constant dense<0.000000e+00> : vector<16x16xf32>
    %12 = tpu.matmul %9, %10, %cst_4 {dimension_numbers = #tpu.dot_dimension_numbers<[1], [1], [0], [0], [0, 0, 1, 0], [], []>} : vector<16x16xbf16>, vector<16x16xbf16>, vector<16x16xf32> -> vector<16x16xf32>
    %cst_5 = arith.constant -1.000000e+30 : f32
    %13 = vector.broadcast %cst_5 : f32 to vector<16x16xf32>
    %14 = arith.select %8, %12, %13 : vector<16x16xi1>, vector<16x16xf32>
    %cst_6 = arith.constant dense<0xFF800000> : vector<16xf32>
    %15 = vector.multi_reduction <maximumf>, %14, %cst_6 [1] : vector<16x16xf32> to vector<16xf32>
    %16 = vector.shape_cast %15 : vector<16xf32> to vector<16x1xf32>
    %17 = vector.broadcast %16 : vector<16x1xf32> to vector<16x16xf32>
    %18 = arith.subf %14, %17 : vector<16x16xf32>
    %19 = math.exp %18 : vector<16x16xf32>
    %cst_7 = arith.constant dense<0.000000e+00> : vector<16xf32>
    %20 = vector.multi_reduction <add>, %19, %cst_7 [1] : vector<16x16xf32> to vector<16xf32>
    %21 = vector.shape_cast %20 : vector<16xf32> to vector<16x1xf32>
    %22 = tpu.reciprocal %21 {approx = true} : vector<16x1xf32> -> vector<16x1xf32>
    %23 = vector.broadcast %22 : vector<16x1xf32> to vector<16x16xf32>
    %24 = arith.mulf %19, %23 : vector<16x16xf32>
    %25 = arith.truncf %24 : vector<16x16xf32> to vector<16x16xbf16>
    %cst_8 = arith.constant dense<0.000000e+00> : vector<16x16xf32>
    %26 = tpu.matmul %25, %11, %cst_8 {dimension_numbers = #tpu.dot_dimension_numbers<[1], [0], [0], [1], [0, 0, 1, 1], [], []>} : vector<16x16xbf16>, vector<16x16xbf16>, vector<16x16xf32> -> vector<16x16xf32>
    %c0_9 = arith.constant 0 : index
    %c0_10 = arith.constant 0 : index
    %27 = vector.load %arg8[%c0_9, %c0_10] : memref<16x64xf32, #tpu.memory_space<vmem>>, vector<16x16xf32>
    tpu.vector_store %arg8[%c0_9, %c0_10], %26 {strides = array<i32>} : memref<16x64xf32, #tpu.memory_space<vmem>>, vector<16x16xf32>,
    %28 = vector.extract_strided_slice %5 {offsets = [0, 16], sizes = [16, 16], strides = [1, 1]} : vector<16x192xbf16> to vector<16x16xbf16>
    %29 = vector.extract_strided_slice %5 {offsets = [0, 80], sizes = [16, 16], strides = [1, 1]} : vector<16x192xbf16> to vector<16x16xbf16>
    %30 = vector.extract_strided_slice %5 {offsets = [0, 144], sizes = [16, 16], strides = [1, 1]} : vector<16x192xbf16> to vector<16x16xbf16>
    %cst_11 = arith.constant dense<0.000000e+00> : vector<16x16xf32>
    %31 = tpu.matmul %28, %29, %cst_11 {dimension_numbers = #tpu.dot_dimension_numbers<[1], [1], [0], [0], [0, 0, 1, 0], [], []>} : vector<16x16xbf16>, vector<16x16xbf16>, vector<16x16xf32> -> vector<16x16xf32>
    %cst_12 = arith.constant -1.000000e+30 : f32
    %32 = vector.broadcast %cst_12 : f32 to vector<16x16xf32>
    %33 = arith.select %8, %31, %32 : vector<16x16xi1>, vector<16x16xf32>
    %cst_13 = arith.constant dense<0xFF800000> : vector<16xf32>
    %34 = vector.multi_reduction <maximumf>, %33, %cst_13 [1] : vector<16x16xf32> to vector<16xf32>
    %35 = vector.shape_cast %34 : vector<16xf32> to vector<16x1xf32>
    %36 = vector.broadcast %35 : vector<16x1xf32> to vector<16x16xf32>
    %37 = arith.subf %33, %36 : vector<16x16xf32>
    %38 = math.exp %37 : vector<16x16xf32>
    %cst_14 = arith.constant dense<0.000000e+00> : vector<16xf32>
    %39 = vector.multi_reduction <add>, %38, %cst_14 [1] : vector<16x16xf32> to vector<16xf32>
    %40 = vector.shape_cast %39 : vector<16xf32> to vector<16x1xf32>
    %41 = tpu.reciprocal %40 {approx = true} : vector<16x1xf32> -> vector<16x1xf32>
    %42 = vector.broadcast %41 : vector<16x1xf32> to vector<16x16xf32>
    %43 = arith.mulf %38, %42 : vector<16x16xf32>
    %44 = arith.truncf %43 : vector<16x16xf32> to vector<16x16xbf16>
    %cst_15 = arith.constant dense<0.000000e+00> : vector<16x16xf32>
    %45 = tpu.matmul %44, %30, %cst_15 {dimension_numbers = #tpu.dot_dimension_numbers<[1], [0], [0], [1], [0, 0, 1, 1], [], []>} : vector<16x16xbf16>, vector<16x16xbf16>, vector<16x16xf32> -> vector<16x16xf32>
    %c0_16 = arith.constant 0 : index
    %c16 = arith.constant 16 : index
    %46 = vector.load %arg8[%c0_16, %c16] : memref<16x64xf32, #tpu.memory_space<vmem>>, vector<16x16xf32>
    tpu.vector_store %arg8[%c0_16, %c16], %45 {strides = array<i32>} : memref<16x64xf32, #tpu.memory_space<vmem>>, vector<16x16xf32>,
    %47 = vector.extract_strided_slice %5 {offsets = [0, 32], sizes = [16, 16], strides = [1, 1]} : vector<16x192xbf16> to vector<16x16xbf16>
    %48 = vector.extract_strided_slice %5 {offsets = [0, 96], sizes = [16, 16], strides = [1, 1]} : vector<16x192xbf16> to vector<16x16xbf16>
    %49 = vector.extract_strided_slice %5 {offsets = [0, 160], sizes = [16, 16], strides = [1, 1]} : vector<16x192xbf16> to vector<16x16xbf16>
    %cst_17 = arith.constant dense<0.000000e+00> : vector<16x16xf32>
    %50 = tpu.matmul %47, %48, %cst_17 {dimension_numbers = #tpu.dot_dimension_numbers<[1], [1], [0], [0], [0, 0, 1, 0], [], []>} : vector<16x16xbf16>, vector<16x16xbf16>, vector<16x16xf32> -> vector<16x16xf32>
    %cst_18 = arith.constant -1.000000e+30 : f32
    %51 = vector.broadcast %cst_18 : f32 to vector<16x16xf32>
    %52 = arith.select %8, %50, %51 : vector<16x16xi1>, vector<16x16xf32>
    %cst_19 = arith.constant dense<0xFF800000> : vector<16xf32>
    %53 = vector.multi_reduction <maximumf>, %52, %cst_19 [1] : vector<16x16xf32> to vector<16xf32>
    %54 = vector.shape_cast %53 : vector<16xf32> to vector<16x1xf32>
    %55 = vector.broadcast %54 : vector<16x1xf32> to vector<16x16xf32>
    %56 = arith.subf %52, %55 : vector<16x16xf32>
    %57 = math.exp %56 : vector<16x16xf32>
    %cst_20 = arith.constant dense<0.000000e+00> : vector<16xf32>
    %58 = vector.multi_reduction <add>, %57, %cst_20 [1] : vector<16x16xf32> to vector<16xf32>
    %59 = vector.shape_cast %58 : vector<16xf32> to vector<16x1xf32>
    %60 = tpu.reciprocal %59 {approx = true} : vector<16x1xf32> -> vector<16x1xf32>
    %61 = vector.broadcast %60 : vector<16x1xf32> to vector<16x16xf32>
    %62 = arith.mulf %57, %61 : vector<16x16xf32>
    %63 = arith.truncf %62 : vector<16x16xf32> to vector<16x16xbf16>
    %cst_21 = arith.constant dense<0.000000e+00> : vector<16x16xf32>
    %64 = tpu.matmul %63, %49, %cst_21 {dimension_numbers = #tpu.dot_dimension_numbers<[1], [0], [0], [1], [0, 0, 1, 1], [], []>} : vector<16x16xbf16>, vector<16x16xbf16>, vector<16x16xf32> -> vector<16x16xf32>
    %c0_22 = arith.constant 0 : index
    %c32 = arith.constant 32 : index
    %65 = vector.load %arg8[%c0_22, %c32] : memref<16x64xf32, #tpu.memory_space<vmem>>, vector<16x16xf32>
    tpu.vector_store %arg8[%c0_22, %c32], %64 {strides = array<i32>} : memref<16x64xf32, #tpu.memory_space<vmem>>, vector<16x16xf32>,
    %66 = vector.extract_strided_slice %5 {offsets = [0, 48], sizes = [16, 16], strides = [1, 1]} : vector<16x192xbf16> to vector<16x16xbf16>
    %67 = vector.extract_strided_slice %5 {offsets = [0, 112], sizes = [16, 16], strides = [1, 1]} : vector<16x192xbf16> to vector<16x16xbf16>
    %68 = vector.extract_strided_slice %5 {offsets = [0, 176], sizes = [16, 16], strides = [1, 1]} : vector<16x192xbf16> to vector<16x16xbf16>
    %cst_23 = arith.constant dense<0.000000e+00> : vector<16x16xf32>
    %69 = tpu.matmul %66, %67, %cst_23 {dimension_numbers = #tpu.dot_dimension_numbers<[1], [1], [0], [0], [0, 0, 1, 0], [], []>} : vector<16x16xbf16>, vector<16x16xbf16>, vector<16x16xf32> -> vector<16x16xf32>
    %cst_24 = arith.constant -1.000000e+30 : f32
    %70 = vector.broadcast %cst_24 : f32 to vector<16x16xf32>
    %71 = arith.select %8, %69, %70 : vector<16x16xi1>, vector<16x16xf32>
    %cst_25 = arith.constant dense<0xFF800000> : vector<16xf32>
    %72 = vector.multi_reduction <maximumf>, %71, %cst_25 [1] : vector<16x16xf32> to vector<16xf32>
    %73 = vector.shape_cast %72 : vector<16xf32> to vector<16x1xf32>
    %74 = vector.broadcast %73 : vector<16x1xf32> to vector<16x16xf32>
    %75 = arith.subf %71, %74 : vector<16x16xf32>
    %76 = math.exp %75 : vector<16x16xf32>
    %cst_26 = arith.constant dense<0.000000e+00> : vector<16xf32>
    %77 = vector.multi_reduction <add>, %76, %cst_26 [1] : vector<16x16xf32> to vector<16xf32>
    %78 = vector.shape_cast %77 : vector<16xf32> to vector<16x1xf32>
    %79 = tpu.reciprocal %78 {approx = true} : vector<16x1xf32> -> vector<16x1xf32>
    %80 = vector.broadcast %79 : vector<16x1xf32> to vector<16x16xf32>
    %81 = arith.mulf %76, %80 : vector<16x16xf32>
    %82 = arith.truncf %81 : vector<16x16xf32> to vector<16x16xbf16>
    %cst_27 = arith.constant dense<0.000000e+00> : vector<16x16xf32>
    %83 = tpu.matmul %82, %68, %cst_27 {dimension_numbers = #tpu.dot_dimension_numbers<[1], [0], [0], [1], [0, 0, 1, 1], [], []>} : vector<16x16xbf16>, vector<16x16xbf16>, vector<16x16xf32> -> vector<16x16xf32>
    %c0_28 = arith.constant 0 : index
    %c48 = arith.constant 48 : index
    %84 = vector.load %arg8[%c0_28, %c48] : memref<16x64xf32, #tpu.memory_space<vmem>>, vector<16x16xf32>
    tpu.vector_store %arg8[%c0_28, %c48], %83 {strides = array<i32>} : memref<16x64xf32, #tpu.memory_space<vmem>>, vector<16x16xf32>,
    %c0_29 = arith.constant 0 : index
    %c0_30 = arith.constant 0 : index
    %85 = vector.load %arg8[%c0_29, %c0_30] : memref<16x64xf32, #tpu.memory_space<vmem>>, vector<16x64xf32>
    %86 = arith.truncf %85 : vector<16x64xf32> to vector<16x64xbf16>
    %c0_31 = arith.constant 0 : index
    %c0_32 = arith.constant 0 : index
    %87 = vector.load %arg3[%c0_31, %c0_32] : memref<64x64xbf16, #tpu.memory_space<vmem>>, vector<64x64xbf16>
    %cst_33 = arith.constant dense<0.000000e+00> : vector<16x64xf32>
    %88 = tpu.matmul %86, %87, %cst_33 {dimension_numbers = #tpu.dot_dimension_numbers<[1], [0], [0], [1], [0, 0, 1, 1], [], []>} : vector<16x64xbf16>, vector<64x64xbf16>, vector<16x64xf32> -> vector<16x64xf32>
    %89 = arith.addf %1, %88 : vector<16x64xf32>
    %c0_34 = arith.constant 0 : index
    %c0_35 = arith.constant 0 : index
    %90 = vector.load %arg4[%c0_34, %c0_35] : memref<1x64xf32, #tpu.memory_space<vmem>>, vector<1x64xf32>
    %91 = vector.broadcast %90 : vector<1x64xf32> to vector<16x64xf32>
    %92 = arith.addf %89, %91 : vector<16x64xf32>
    %cst_36 = arith.constant dense<0.000000e+00> : vector<16xf32>
    %93 = vector.multi_reduction <add>, %92, %cst_36 [1] : vector<16x64xf32> to vector<16xf32>
    %94 = vector.shape_cast %93 : vector<16xf32> to vector<16x1xf32>
    %cst_37 = arith.constant 6.400000e+01 : f32
    %95 = vector.broadcast %cst_37 : f32 to vector<16x1xf32>
    %96 = arith.divf %94, %95 : vector<16x1xf32>
    %97 = vector.broadcast %96 : vector<16x1xf32> to vector<16x64xf32>
    %98 = arith.subf %92, %97 : vector<16x64xf32>
    %99 = arith.mulf %98, %98 : vector<16x64xf32>
    %cst_38 = arith.constant dense<0.000000e+00> : vector<16xf32>
    %100 = vector.multi_reduction <add>, %99, %cst_38 [1] : vector<16x64xf32> to vector<16xf32>
    %101 = vector.shape_cast %100 : vector<16xf32> to vector<16x1xf32>
    %cst_39 = arith.constant 6.400000e+01 : f32
    %102 = vector.broadcast %cst_39 : f32 to vector<16x1xf32>
    %103 = arith.divf %101, %102 : vector<16x1xf32>
    %104 = vector.broadcast %96 : vector<16x1xf32> to vector<16x64xf32>
    %105 = arith.subf %92, %104 : vector<16x64xf32>
    %cst_40 = arith.constant 9.99999974E-6 : f32
    %106 = vector.broadcast %cst_40 : f32 to vector<16x1xf32>
    %107 = arith.addf %103, %106 : vector<16x1xf32>
    %108 = math.rsqrt %107 : vector<16x1xf32>
    %109 = vector.broadcast %108 : vector<16x1xf32> to vector<16x64xf32>
    %110 = arith.mulf %105, %109 : vector<16x64xf32>
    %c0_41 = arith.constant 0 : index
    %c0_42 = arith.constant 0 : index
    %111 = vector.load %arg5[%c0_41, %c0_42] : memref<1x64xf32, #tpu.memory_space<vmem>>, vector<1x64xf32>
    %112 = vector.broadcast %111 : vector<1x64xf32> to vector<16x64xf32>
    %113 = arith.mulf %110, %112 : vector<16x64xf32>
    %c0_43 = arith.constant 0 : index
    %c0_44 = arith.constant 0 : index
    %114 = vector.load %arg6[%c0_43, %c0_44] : memref<1x64xf32, #tpu.memory_space<vmem>>, vector<1x64xf32>
    %115 = vector.broadcast %114 : vector<1x64xf32> to vector<16x64xf32>
    %116 = arith.addf %113, %115 : vector<16x64xf32>
    %c0_45 = arith.constant 0 : index
    %c0_46 = arith.constant 0 : index
    %c0_47 = arith.constant 0 : index
    %117 = vector.load %arg7[%c0_45, %c0_46, %c0_47] : memref<1x16x64xf32, #tpu.memory_space<vmem>>, vector<1x16x64xf32>
    %118 = vector.shape_cast %117 : vector<1x16x64xf32> to vector<16x64xf32>
    %119 = vector.shape_cast %116 : vector<16x64xf32> to vector<1x16x64xf32>
    tpu.vector_store %arg7[%c0_45, %c0_46, %c0_47], %119 {strides = array<i32>} : memref<1x16x64xf32, #tpu.memory_space<vmem>>, vector<1x16x64xf32>,
    return
  }
  func.func @transform_0(%arg0: i32) -> (i32, i32, i32) {
    %c0_i32 = arith.constant 0 : i32
    %c0_i32_0 = arith.constant 0 : i32
    %c0_i32_1 = arith.constant 0 : i32
    return %arg0, %c0_i32, %c0_i32_0 : i32, i32, i32
  }
  func.func @transform_1(%arg0: i32) -> (i32, i32) {
    %c0_i32 = arith.constant 0 : i32
    %c0_i32_0 = arith.constant 0 : i32
    %c0_i32_1 = arith.constant 0 : i32
    return %c0_i32, %c0_i32_0 : i32, i32
  }
  func.func @transform_2(%arg0: i32) -> (i32, i32) {
    %c0_i32 = arith.constant 0 : i32
    %c0_i32_0 = arith.constant 0 : i32
    %c0_i32_1 = arith.constant 0 : i32
    return %c0_i32, %c0_i32_0 : i32, i32
  }
  func.func @transform_3(%arg0: i32) -> (i32, i32) {
    %c0_i32 = arith.constant 0 : i32
    %c0_i32_0 = arith.constant 0 : i32
    %c0_i32_1 = arith.constant 0 : i32
    return %c0_i32, %c0_i32_0 : i32, i32
  }
  func.func @transform_4(%arg0: i32) -> (i32, i32) {
    %c0_i32 = arith.constant 0 : i32
    %c0_i32_0 = arith.constant 0 : i32
    %c0_i32_1 = arith.constant 0 : i32
    return %c0_i32, %c0_i32_0 : i32, i32
  }
  func.func @transform_5(%arg0: i32) -> (i32, i32) {
    %c0_i32 = arith.constant 0 : i32
    %c0_i32_0 = arith.constant 0 : i32
    %c0_i32_1 = arith.constant 0 : i32
    return %c0_i32, %c0_i32_0 : i32, i32
  }
  func.func @transform_6(%arg0: i32) -> (i32, i32, i32) {
    %c0_i32 = arith.constant 0 : i32
    %c0_i32_0 = arith.constant 0 : i32
    %c0_i32_1 = arith.constant 0 : i32
    return %arg0, %c0_i32, %c0_i32_0 : i32, i32, i32
  }
}

module attributes {stable_mosaic.version = 11 : i64} {
  func.func @ffn_ln_kernel(%arg0: i32, %arg1: i32, %arg2: memref<16x64xf32, #tpu.memory_space<vmem>>, %arg3: memref<64x256xbf16, #tpu.memory_space<vmem>>, %arg4: memref<1x256xf32, #tpu.memory_space<vmem>>, %arg5: memref<256x64xbf16, #tpu.memory_space<vmem>>, %arg6: memref<1x64xf32, #tpu.memory_space<vmem>>, %arg7: memref<1x64xf32, #tpu.memory_space<vmem>>, %arg8: memref<1x64xf32, #tpu.memory_space<vmem>>, %arg9: memref<16x64xf32, #tpu.memory_space<vmem>>, %arg10: memref<16x64xf32, #tpu.memory_space<vmem>>) attributes {dimension_semantics = [#tpu.dimension_semantics<parallel>, #tpu.dimension_semantics<arbitrary>], iteration_bounds = array<i64: 2, 1>, scalar_prefetch = 0 : i64, scratch_operands = 1 : i64, tpu.core_type = #tpu.core_type<tc>, window_params = [{transform_indices = @transform_0, window_bounds = array<i64: 16, 64>}, {transform_indices = @transform_1, window_bounds = array<i64: 64, 256>}, {transform_indices = @transform_2, window_bounds = array<i64: 1, 256>}, {transform_indices = @transform_3, window_bounds = array<i64: 256, 64>}, {pipeline_mode = #tpu.pipeline_mode<synchronous>, transform_indices = @transform_4, window_bounds = array<i64: 1, 64>}, {pipeline_mode = #tpu.pipeline_mode<synchronous>, transform_indices = @transform_5, window_bounds = array<i64: 1, 64>}, {pipeline_mode = #tpu.pipeline_mode<synchronous>, transform_indices = @transform_6, window_bounds = array<i64: 1, 64>}, {transform_indices = @transform_7, window_bounds = array<i64: 16, 64>}]} {
    %c0_i32 = arith.constant 0 : i32
    %0 = arith.cmpi eq, %arg1, %c0_i32 : i32
    %1 = arith.extui %0 : i1 to i32
    %c0_i32_0 = arith.constant 0 : i32
    %2 = arith.cmpi ne, %1, %c0_i32_0 : i32
    scf.if %2 {
      %cst_16 = arith.constant 0.000000e+00 : f32
      %21 = vector.broadcast %cst_16 : f32 to vector<16x64xf32>
      %c0_17 = arith.constant 0 : index
      %c0_18 = arith.constant 0 : index
      %22 = vector.load %arg10[%c0_17, %c0_18] : memref<16x64xf32, #tpu.memory_space<vmem>>, vector<16x64xf32>
      tpu.vector_store %arg10[%c0_17, %c0_18], %21 {strides = array<i32>} : memref<16x64xf32, #tpu.memory_space<vmem>>, vector<16x64xf32>,
    } else {
    }
    %c0 = arith.constant 0 : index
    %c0_1 = arith.constant 0 : index
    %3 = vector.load %arg2[%c0, %c0_1] : memref<16x64xf32, #tpu.memory_space<vmem>>, vector<16x64xf32>
    %4 = arith.truncf %3 : vector<16x64xf32> to vector<16x64xbf16>
    %c0_2 = arith.constant 0 : index
    %c0_3 = arith.constant 0 : index
    %5 = vector.load %arg3[%c0_2, %c0_3] : memref<64x256xbf16, #tpu.memory_space<vmem>>, vector<64x256xbf16>
    %cst = arith.constant dense<0.000000e+00> : vector<16x256xf32>
    %6 = tpu.matmul %4, %5, %cst {dimension_numbers = #tpu.dot_dimension_numbers<[1], [0], [0], [1], [0, 0, 1, 1], [], []>} : vector<16x64xbf16>, vector<64x256xbf16>, vector<16x256xf32> -> vector<16x256xf32>
    %c0_4 = arith.constant 0 : index
    %c0_5 = arith.constant 0 : index
    %7 = vector.load %arg4[%c0_4, %c0_5] : memref<1x256xf32, #tpu.memory_space<vmem>>, vector<1x256xf32>
    %8 = vector.broadcast %7 : vector<1x256xf32> to vector<16x256xf32>
    %9 = arith.addf %6, %8 : vector<16x256xf32>
    %cst_6 = arith.constant 0.000000e+00 : f32
    %10 = vector.broadcast %cst_6 : f32 to vector<16x256xf32>
    %11 = arith.maximumf %9, %10 : vector<16x256xf32>
    %c0_7 = arith.constant 0 : index
    %c0_8 = arith.constant 0 : index
    %12 = vector.load %arg10[%c0_7, %c0_8] : memref<16x64xf32, #tpu.memory_space<vmem>>, vector<16x64xf32>
    %13 = arith.truncf %11 : vector<16x256xf32> to vector<16x256xbf16>
    %c0_9 = arith.constant 0 : index
    %c0_10 = arith.constant 0 : index
    %14 = vector.load %arg5[%c0_9, %c0_10] : memref<256x64xbf16, #tpu.memory_space<vmem>>, vector<256x64xbf16>
    %cst_11 = arith.constant dense<0.000000e+00> : vector<16x64xf32>
    %15 = tpu.matmul %13, %14, %cst_11 {dimension_numbers = #tpu.dot_dimension_numbers<[1], [0], [0], [1], [0, 0, 1, 1], [], []>} : vector<16x256xbf16>, vector<256x64xbf16>, vector<16x64xf32> -> vector<16x64xf32>
    %16 = arith.addf %12, %15 : vector<16x64xf32>
    %c0_12 = arith.constant 0 : index
    %c0_13 = arith.constant 0 : index
    %17 = vector.load %arg10[%c0_12, %c0_13] : memref<16x64xf32, #tpu.memory_space<vmem>>, vector<16x64xf32>
    tpu.vector_store %arg10[%c0_12, %c0_13], %16 {strides = array<i32>} : memref<16x64xf32, #tpu.memory_space<vmem>>, vector<16x64xf32>,
    %c0_i32_14 = arith.constant 0 : i32
    %18 = arith.cmpi eq, %arg1, %c0_i32_14 : i32
    %19 = arith.extui %18 : i1 to i32
    %c0_i32_15 = arith.constant 0 : i32
    %20 = arith.cmpi ne, %19, %c0_i32_15 : i32
    scf.if %20 {
      %c0_16 = arith.constant 0 : index
      %c0_17 = arith.constant 0 : index
      %21 = vector.load %arg10[%c0_16, %c0_17] : memref<16x64xf32, #tpu.memory_space<vmem>>, vector<16x64xf32>
      %22 = arith.addf %3, %21 : vector<16x64xf32>
      %c0_18 = arith.constant 0 : index
      %c0_19 = arith.constant 0 : index
      %23 = vector.load %arg6[%c0_18, %c0_19] : memref<1x64xf32, #tpu.memory_space<vmem>>, vector<1x64xf32>
      %24 = vector.broadcast %23 : vector<1x64xf32> to vector<16x64xf32>
      %25 = arith.addf %22, %24 : vector<16x64xf32>
      %cst_20 = arith.constant dense<0.000000e+00> : vector<16xf32>
      %26 = vector.multi_reduction <add>, %25, %cst_20 [1] : vector<16x64xf32> to vector<16xf32>
      %27 = vector.shape_cast %26 : vector<16xf32> to vector<16x1xf32>
      %cst_21 = arith.constant 6.400000e+01 : f32
      %28 = vector.broadcast %cst_21 : f32 to vector<16x1xf32>
      %29 = arith.divf %27, %28 : vector<16x1xf32>
      %30 = vector.broadcast %29 : vector<16x1xf32> to vector<16x64xf32>
      %31 = arith.subf %25, %30 : vector<16x64xf32>
      %32 = arith.mulf %31, %31 : vector<16x64xf32>
      %cst_22 = arith.constant dense<0.000000e+00> : vector<16xf32>
      %33 = vector.multi_reduction <add>, %32, %cst_22 [1] : vector<16x64xf32> to vector<16xf32>
      %34 = vector.shape_cast %33 : vector<16xf32> to vector<16x1xf32>
      %cst_23 = arith.constant 6.400000e+01 : f32
      %35 = vector.broadcast %cst_23 : f32 to vector<16x1xf32>
      %36 = arith.divf %34, %35 : vector<16x1xf32>
      %37 = vector.broadcast %29 : vector<16x1xf32> to vector<16x64xf32>
      %38 = arith.subf %25, %37 : vector<16x64xf32>
      %cst_24 = arith.constant 9.99999974E-6 : f32
      %39 = vector.broadcast %cst_24 : f32 to vector<16x1xf32>
      %40 = arith.addf %36, %39 : vector<16x1xf32>
      %41 = math.rsqrt %40 : vector<16x1xf32>
      %42 = vector.broadcast %41 : vector<16x1xf32> to vector<16x64xf32>
      %43 = arith.mulf %38, %42 : vector<16x64xf32>
      %c0_25 = arith.constant 0 : index
      %c0_26 = arith.constant 0 : index
      %44 = vector.load %arg7[%c0_25, %c0_26] : memref<1x64xf32, #tpu.memory_space<vmem>>, vector<1x64xf32>
      %45 = vector.broadcast %44 : vector<1x64xf32> to vector<16x64xf32>
      %46 = arith.mulf %43, %45 : vector<16x64xf32>
      %c0_27 = arith.constant 0 : index
      %c0_28 = arith.constant 0 : index
      %47 = vector.load %arg8[%c0_27, %c0_28] : memref<1x64xf32, #tpu.memory_space<vmem>>, vector<1x64xf32>
      %48 = vector.broadcast %47 : vector<1x64xf32> to vector<16x64xf32>
      %49 = arith.addf %46, %48 : vector<16x64xf32>
      %c0_29 = arith.constant 0 : index
      %c0_30 = arith.constant 0 : index
      %50 = vector.load %arg9[%c0_29, %c0_30] : memref<16x64xf32, #tpu.memory_space<vmem>>, vector<16x64xf32>
      tpu.vector_store %arg9[%c0_29, %c0_30], %49 {strides = array<i32>} : memref<16x64xf32, #tpu.memory_space<vmem>>, vector<16x64xf32>,
    } else {
    }
    return
  }
  func.func @transform_0(%arg0: i32, %arg1: i32) -> (i32, i32) {
    %c0_i32 = arith.constant 0 : i32
    %c0_i32_0 = arith.constant 0 : i32
    return %arg0, %c0_i32 : i32, i32
  }
  func.func @transform_1(%arg0: i32, %arg1: i32) -> (i32, i32) {
    %c0_i32 = arith.constant 0 : i32
    %c0_i32_0 = arith.constant 0 : i32
    return %c0_i32, %arg1 : i32, i32
  }
  func.func @transform_2(%arg0: i32, %arg1: i32) -> (i32, i32) {
    %c0_i32 = arith.constant 0 : i32
    %c0_i32_0 = arith.constant 0 : i32
    return %c0_i32, %arg1 : i32, i32
  }
  func.func @transform_3(%arg0: i32, %arg1: i32) -> (i32, i32) {
    %c0_i32 = arith.constant 0 : i32
    %c0_i32_0 = arith.constant 0 : i32
    return %arg1, %c0_i32 : i32, i32
  }
  func.func @transform_4(%arg0: i32, %arg1: i32) -> (i32, i32) {
    %c0_i32 = arith.constant 0 : i32
    %c0_i32_0 = arith.constant 0 : i32
    %c0_i32_1 = arith.constant 0 : i32
    return %c0_i32, %c0_i32_0 : i32, i32
  }
  func.func @transform_5(%arg0: i32, %arg1: i32) -> (i32, i32) {
    %c0_i32 = arith.constant 0 : i32
    %c0_i32_0 = arith.constant 0 : i32
    %c0_i32_1 = arith.constant 0 : i32
    return %c0_i32, %c0_i32_0 : i32, i32
  }
  func.func @transform_6(%arg0: i32, %arg1: i32) -> (i32, i32) {
    %c0_i32 = arith.constant 0 : i32
    %c0_i32_0 = arith.constant 0 : i32
    %c0_i32_1 = arith.constant 0 : i32
    return %c0_i32, %c0_i32_0 : i32, i32
  }
  func.func @transform_7(%arg0: i32, %arg1: i32) -> (i32, i32) {
    %c0_i32 = arith.constant 0 : i32
    %c0_i32_0 = arith.constant 0 : i32
    return %arg0, %c0_i32 : i32, i32
  }
}

</mosaic_0001>

<llo_original>
// kernel: block_forward.2
$region0: #{block_forward.2}
  #allocation0 [shape = 'u32[]', space=smem, size = 0x4, offset = 0x4, fixed_abs, tag = 'smem constant byte address 0x4 - core index']
  #allocation1 [shape = 'u32[144,128]{1,0:T(1,128)}', space=vmem, size = 0x12000, scoped, tag = 'internal scratch']
  #allocation2 [shape = 'f32[16,64]{1,0:T(8,128)}', space=vmem, size = 0x2000, scoped, tag = 'scratch operand']
  %s0 = inlined_call_operand.vmem [shape: f32[2,16,64], index: 0, kind: input, shape index: {}]
  %s1 = inlined_call_operand.vmem [shape: bf16[64,192], index: 1, kind: input, shape index: {}]
  %s2 = inlined_call_operand.vmem [shape: bf16[64,64], index: 2, kind: input, shape index: {}]
  %s3 = inlined_call_operand.vmem [shape: f32[1,64], index: 3, kind: input, shape index: {}]
  %s4 = inlined_call_operand.vmem [shape: f32[1,64], index: 4, kind: input, shape index: {}]
  %s5 = inlined_call_operand.vmem [shape: f32[1,64], index: 5, kind: input, shape index: {}]
  %s6 = inlined_call_operand.vmem [shape: f32[2,16,64], index: 6, kind: output, shape index: {}]
  %s7 = sld [smem:[#allocation0]]
  $region57: #{block_forward.2} parent=0
    _
  %s9 = ssub.s32 1, %s7
  %s10 = scalar_select 0, %s9, %s7
  loop: start=0, step=1, limit=4
  $region2: #{block_forward.2} parent=0 // loop_pre_header
    _
  $region3: #{block_forward.2} parent=0 // loop_header
    %s12 = sphi 0, %s16
    %p13 = scmp.ge.s32.totalorder %s12, 4
    %s22 = sphi 0, %s24
    %s25 = sphi 0, %s22
    %s26 = sphi 0, %s25
    %s42 = sphi 0, %s26
    %s46 = sphi 0, %s46
    %s48 = sphi 0, %s46
    %s49 = sphi 0, %s48
    %s63 = sphi 0, %s49
    %s67 = sphi 0, %s67
    %s69 = sphi 0, %s67
    %s70 = sphi 0, %s69
    %s84 = sphi 0, %s70
    %s88 = sphi 0, %s88
    %s90 = sphi 0, %s88
    %s91 = sphi 0, %s90
    %s105 = sphi 0, %s91
    %s109 = sphi 0, %s109
    %s111 = sphi 0, %s109
    %s112 = sphi 0, %s111
    %s126 = sphi 0, %s112
    %s130 = sphi 0, %s130
    %s132 = sphi 0, %s130
    %s133 = sphi 0, %s132
    %s147 = sphi 0, %s133
    %s153 = sphi 0, %s155
    %s156 = sphi 0, %s153
    %s157 = sphi 0, %s156
    %s173 = sphi 0, %s157
  $region4: #{block_forward.2} parent=0 // loop_header_branch
    %15 = sbr.rel (%p13) target = $region8
  $region5: #{block_forward.2} parent=0 // loop_body
    %s17 = ssub.s32 %s12, 1
    %s18 = ssub.s32 %s12, 2
    %s19 = sadd.s32 %s12, 1
    %s20 = ssub.s32 %s12, %s19
    %p21 = scmp.eq.s32.totalorder %s20, 0
    %s23 = sadd.s32 %s22, 1
    %s24 = scalar_select %p21, %s22, %s23
    %p27 = pneg %p21
    %p28 = scmp.eq.s32.totalorder %s12, 1
    %p29 = por %p27, %p28
    %p30 = scmp.ne.s32.totalorder %s22, %s25
    %p31 = scmp.eq.s32.totalorder %s12, 0
    %p32 = por %p30, %p31
    %p33 = scmp.ne.s32.totalorder %s22, %s25
    %p34 = scmp.eq.s32.totalorder %s17, 1
    %p35 = por %p33, %p34
    %p36 = scmp.ne.s32.totalorder %s25, %s26
    %p37 = scmp.eq.s32.totalorder %s17, 0
    %p38 = por %p36, %p37
    %p39 = scmp.ne.s32.totalorder %s25, %s26
    %p40 = scmp.eq.s32.totalorder %s18, 1
    %p41 = por %p39, %p40
    %p43 = scmp.ne.s32.totalorder %s26, %s42
    %p44 = scmp.eq.s32.totalorder %s18, 0
    %p45 = por %p43, %p44
    %s47 = sadd.s32 %s46, 1
    %p50 = scmp.eq.s32.totalorder %s12, 1
    %p51 = scmp.ne.s32.totalorder %s46, %s48
    %p52 = scmp.eq.s32.totalorder %s12, 0
    %p53 = por %p51, %p52
    %p54 = scmp.ne.s32.totalorder %s46, %s48
    %p55 = scmp.eq.s32.totalorder %s17, 1
    %p56 = por %p54, %p55
    %p57 = scmp.ne.s32.totalorder %s48, %s49
    %p58 = scmp.eq.s32.totalorder %s17, 0
    %p59 = por %p57, %p58
    %p60 = scmp.ne.s32.totalorder %s48, %s49
    %p61 = scmp.eq.s32.totalorder %s18, 1
    %p62 = por %p60, %p61
    %p64 = scmp.ne.s32.totalorder %s49, %s63
    %p65 = scmp.eq.s32.totalorder %s18, 0
    %p66 = por %p64, %p65
    %s68 = sadd.s32 %s67, 1
    %p71 = scmp.eq.s32.totalorder %s12, 1
    %p72 = scmp.ne.s32.totalorder %s67, %s69
    %p73 = scmp.eq.s32.totalorder %s12, 0
    %p74 = por %p72, %p73
    %p75 = scmp.ne.s32.totalorder %s67, %s69
    %p76 = scmp.eq.s32.totalorder %s17, 1
    %p77 = por %p75, %p76
    %p78 = scmp.ne.s32.totalorder %s69, %s70
    %p79 = scmp.eq.s32.totalorder %s17, 0
    %p80 = por %p78, %p79
    %p81 = scmp.ne.s32.totalorder %s69, %s70
    %p82 = scmp.eq.s32.totalorder %s18, 1
    %p83 = por %p81, %p82
    %p85 = scmp.ne.s32.totalorder %s70, %s84
    %p86 = scmp.eq.s32.totalorder %s18, 0
    %p87 = por %p85, %p86
    %s89 = sadd.s32 %s88, 1
    %p92 = scmp.eq.s32.totalorder %s12, 1
    %p93 = scmp.ne.s32.totalorder %s88, %s90
    %p94 = scmp.eq.s32.totalorder %s12, 0
    %p95 = por %p93, %p94
    %p96 = scmp.ne.s32.totalorder %s88, %s90
    %p97 = scmp.eq.s32.totalorder %s17, 1
    %p98 = por %p96, %p97
    %p99 = scmp.ne.s32.totalorder %s90, %s91
    %p100 = scmp.eq.s32.totalorder %s17, 0
    %p101 = por %p99, %p100
    %p102 = scmp.ne.s32.totalorder %s90, %s91
    %p103 = scmp.eq.s32.totalorder %s18, 1
    %p104 = por %p102, %p103
    %p106 = scmp.ne.s32.totalorder %s91, %s105
    %p107 = scmp.eq.s32.totalorder %s18, 0
    %p108 = por %p106, %p107
    %s110 = sadd.s32 %s109, 1
    %p113 = scmp.eq.s32.totalorder %s12, 1
    %p114 = scmp.ne.s32.totalorder %s109, %s111
    %p115 = scmp.eq.s32.totalorder %s12, 0
    %p116 = por %p114, %p115
    %p117 = scmp.ne.s32.totalorder %s109, %s111
    %p118 = scmp.eq.s32.totalorder %s17, 1
    %p119 = por %p117, %p118
    %p120 = scmp.ne.s32.totalorder %s111, %s112
    %p121 = scmp.eq.s32.totalorder %s17, 0
    %p122 = por %p120, %p121
    %p123 = scmp.ne.s32.totalorder %s111, %s112
    %p124 = scmp.eq.s32.totalorder %s18, 1
    %p125 = por %p123, %p124
    %p127 = scmp.ne.s32.totalorder %s112, %s126
    %p128 = scmp.eq.s32.totalorder %s18, 0
    %p129 = por %p127, %p128
    %s131 = sadd.s32 %s130, 1
    %p134 = scmp.eq.s32.totalorder %s12, 1
    %p135 = scmp.ne.s32.totalorder %s130, %s132
    %p136 = scmp.eq.s32.totalorder %s12, 0
    %p137 = por %p135, %p136
    %p138 = scmp.ne.s32.totalorder %s130, %s132
    %p139 = scmp.eq.s32.totalorder %s17, 1
    %p140 = por %p138, %p139
    %p141 = scmp.ne.s32.totalorder %s132, %s133
    %p142 = scmp.eq.s32.totalorder %s17, 0
    %p143 = por %p141, %p142
    %p144 = scmp.ne.s32.totalorder %s132, %s133
    %p145 = scmp.eq.s32.totalorder %s18, 1
    %p146 = por %p144, %p145
    %p148 = scmp.ne.s32.totalorder %s133, %s147
    %p149 = scmp.eq.s32.totalorder %s18, 0
    %p150 = por %p148, %p149
    %s151 = ssub.s32 %s12, %s19
    %p152 = scmp.eq.s32.totalorder %s151, 0
    %s154 = sadd.s32 %s153, 1
    %s155 = scalar_select %p152, %s153, %s154
    %p158 = pneg %p152
    %p159 = scmp.eq.s32.totalorder %s12, 1
    %p160 = por %p158, %p159
    %p161 = scmp.ne.s32.totalorder %s153, %s156
    %p162 = scmp.eq.s32.totalorder %s12, 0
    %p163 = por %p161, %p162
    %p164 = scmp.ne.s32.totalorder %s153, %s156
    %p165 = scmp.eq.s32.totalorder %s17, 1
    %p166 = por %p164, %p165
    %p167 = scmp.ne.s32.totalorder %s156, %s157
    %p168 = scmp.eq.s32.totalorder %s17, 0
    %p169 = por %p167, %p168
    %p170 = scmp.ne.s32.totalorder %s156, %s157
    %p171 = scmp.eq.s32.totalorder %s18, 1
    %p172 = por %p170, %p171
    %p174 = scmp.ne.s32.totalorder %s157, %s173
    %p175 = scmp.eq.s32.totalorder %s18, 0
    %p176 = por %p174, %p175
    %p177 = scmp.le.s32.totalorder 1, %s12
    %p178 = scmp.lt.s32.totalorder %s12, 3
    %p179 = pnand %p177, %p178
    %p180 = pneg %p179
    // Predicated region
    $region9: #{block_forward.2} parent=5 // pred_check
      _
    $region10: #{block_forward.2} parent=5 // pred_check_branch
      %182 = sbr.rel (%p179) target = $region12
    $region11: #{block_forward.2} parent=5 // pred_region
      %s183 = ssub.s32 %s12, 1
      // Predicated region
      $region13: #{block_forward.2} parent=11 // pred_check
        %p184 = pneg %p59
      $region14: #{block_forward.2} parent=11 // pred_check_branch
        %186 = sbr.rel (%p184) target = $region16
      $region15: #{block_forward.2} parent=11 // pred_region
        _
      $region16: #{block_forward.2} parent=11 // pred_fallthru
        _
      // Predicated region
      $region17: #{block_forward.2} parent=11 // pred_check
        %p187 = pneg %p80
      $region18: #{block_forward.2} parent=11 // pred_check_branch
        %189 = sbr.rel (%p187) target = $region20
      $region19: #{block_forward.2} parent=11 // pred_region
        _
      $region20: #{block_forward.2} parent=11 // pred_fallthru
        _
      // Predicated region
      $region21: #{block_forward.2} parent=11 // pred_check
        %p190 = pneg %p101
      $region22: #{block_forward.2} parent=11 // pred_check_branch
        %192 = sbr.rel (%p190) target = $region24
      $region23: #{block_forward.2} parent=11 // pred_region
        _
      $region24: #{block_forward.2} parent=11 // pred_fallthru
        _
      // Predicated region
      $region25: #{block_forward.2} parent=11 // pred_check
        %p193 = pneg %p122
      $region26: #{block_forward.2} parent=11 // pred_check_branch
        %195 = sbr.rel (%p193) target = $region28
      $region27: #{block_forward.2} parent=11 // pred_region
        _
      $region28: #{block_forward.2} parent=11 // pred_fallthru
        _
      // Predicated region
      $region29: #{block_forward.2} parent=11 // pred_check
        %p196 = pneg %p143
      $region30: #{block_forward.2} parent=11 // pred_check_branch
        %198 = sbr.rel (%p196) target = $region32
      $region31: #{block_forward.2} parent=11 // pred_region
        _
      $region32: #{block_forward.2} parent=11 // pred_fallthru
        _
    $region12: #{block_forward.2} parent=5 // pred_fallthru
      _
    %p199 = scmp.lt.s32.totalorder %s12, 2
    // Predicated region
    $region33: #{block_forward.2} parent=5 // pred_check
      %p200 = pneg %p199
    $region34: #{block_forward.2} parent=5 // pred_check_branch
      %202 = sbr.rel (%p200) target = $region36
    $region35: #{block_forward.2} parent=5 // pred_region
      // Predicated region
      $region37: #{block_forward.2} parent=35 // pred_check
        %p203 = pneg %p32
      $region38: #{block_forward.2} parent=35 // pred_check_branch
        %205 = sbr.rel (%p203) target = $region40
      $region39: #{block_forward.2} parent=35 // pred_region
        %p206 = scmp.lt.s32.totalorder %s12, 1
        %s207 = scalar_select %p206, %s12, 1
        %s208 = smul.addr %s207, 2
        %s209 = smul.addr %s208, 8
        %s210 = scalar_lea.vmem %s0, %s209
      $region40: #{block_forward.2} parent=35 // pred_fallthru
        _
    $region36: #{block_forward.2} parent=5 // pred_fallthru
      _
    %p211 = scmp.le.s32.totalorder 1, %s12
    %p212 = scmp.lt.s32.totalorder %s12, 3
    %p213 = pnand %p211, %p212
    %p214 = pneg %p213
    // Predicated region
    $region41: #{block_forward.2} parent=5 // pred_check
      _
    $region42: #{block_forward.2} parent=5 // pred_check_branch
      %216 = sbr.rel (%p213) target = $region44
    $region43: #{block_forward.2} parent=5 // pred_region
      %s217 = ssub.s32 %s12, 1
      %p218 = scmp.lt.s32.totalorder %s17, 1
      %s219 = scalar_select %p218, %s17, 1
      %s220 = smul.addr %s219, 2
      %s221 = smul.addr %s220, 8
      %s222 = scalar_lea.vmem %s0, %s221
      %p223 = pneg %p38
      %p224 = pneg %p35
      %p225 = pneg %p59
      %p226 = pneg %p56
      %p227 = pneg %p80
      %p228 = pneg %p77
      %p229 = pneg %p101
      %p230 = pneg %p98
      %p231 = pneg %p122
      %p232 = pneg %p119
      %p233 = pneg %p143
      %p234 = pneg %p140
      %p235 = pneg %p169
      %p236 = pneg %p166
      %p237 = scmp.lt.s32.totalorder %s17, 1
      %s238 = scalar_select %p237, %s17, 1
      %s239 = smul.addr %s238, 2
      %s240 = smul.addr %s239, 8
      %s241 = scalar_lea.vmem %s6, %s240
      %p242 = scmp.lt.s32.totalorder %s17, 1
      %s243 = scalar_select %p242, %s17, 1
      %s244 = smul.addr %s243, 2
      %s245 = smul.addr %s244, 8
      %s246 = scalar_lea.vmem %s0, %s245
      %p247 = scmp.lt.s32.totalorder %s17, 1
      %s248 = scalar_select %p247, %s17, 1
      %s249 = smul.addr %s248, 2
      %s250 = smul.addr %s249, 8
      %s251 = scalar_lea.vmem %s6, %s250
      %v253 = vld [vmem:[%s246] sm:$0xff]
      %v254 = vld [vmem:[%s246 + $0x8] sm:$0xff]
      %v255 = vpack.c.bf16 %v254, %v253
      %v256 = vld [vmem:[%s1] sm:$0xff]
      %v257 = vld [vmem:[%s1 + $0x8] sm:$0xff]
      %v258 = vld [vmem:[%s1 + $0x10] sm:$0xff]
      %v259 = vld [vmem:[%s1 + $0x18] sm:$0xff]
      %v260 = vld [vmem:[%s1 + $0x20] sm:$0xff]
      %v261 = vld [vmem:[%s1 + $0x28] sm:$0xff]
      %v262 = vld [vmem:[%s1 + $0x30] sm:$0xff]
      %v263 = vld [vmem:[%s1 + $0x38] sm:$0xff]
      %v272 = vunpack.c.l.b16 %v256
      %v273 = vunpack.c.h.b16 %v256
      %v274 = vunpack.c.l.b16 %v257
      %v275 = vunpack.c.h.b16 %v257
      %v276 = vunpack.c.l.b16 %v258
      %v277 = vunpack.c.h.b16 %v258
      %v278 = vunpack.c.l.b16 %v259
      %v279 = vunpack.c.h.b16 %v259
      %v280 = vunpack.c.l.b16 %v260
      %v281 = vunpack.c.h.b16 %v260
      %v282 = vunpack.c.l.b16 %v261
      %v283 = vunpack.c.h.b16 %v261
      %v284 = vunpack.c.l.b16 %v262
      %v285 = vunpack.c.h.b16 %v262
      %v286 = vunpack.c.l.b16 %v263
      %v287 = vunpack.c.h.b16 %v263
      %v288 = vpack.c.b16 %v274, %v272
      %v289 = vpack.c.b16 %v275, %v273
      %v290 = vpack.c.b16 %v278, %v276
      %v291 = vpack.c.b16 %v279, %v277
      %v292 = vpack.c.b16 %v282, %v280
      %v293 = vpack.c.b16 %v283, %v281
      %v294 = vpack.c.b16 %v286, %v284
      %v295 = vpack.c.b16 %v287, %v285
      %vm304 = vcmask 523264
      %v306 = vsel %vm304, %v255, 0
      %308 = vmatprep.subr.bf16.mxu0 %v289
      %309 = vmatpush1.bf16.msra.mxu0 %v288
      %310 = vmatprep.subr.bf16.mxu0 %v291
      %311 = vmatpush1.bf16.msra.mxu0 %v290
      %312 = vmatprep.subr.bf16.mxu0 %v293
      %313 = vmatpush1.bf16.msra.mxu0 %v292
      %314 = vmatprep.subr.bf16.mxu0 %v295
      %315 = vmatpush1.bf16.msra.mxu0 %v294
      %316 = vmatprep.subr.bf16.mxu0 0
      %317 = vmatpush1.bf16.msra.mxu0 0
      %318 = vmatprep.subr.bf16.mxu0 0
      %319 = vmatpush1.bf16.msra.mxu0 0
      %320 = vmatprep.subr.bf16.mxu0 0
      %321 = vmatpush1.bf16.msra.mxu0 0
      %322 = vmatprep.subr.bf16.mxu0 0
      %323 = vmatpush1.bf16.msra.mxu0 0
      %324 = vmatprep.subr.bf16.mxu0 0
      %325 = vmatpush1.bf16.msra.mxu0 0
      %326 = vmatprep.subr.bf16.mxu0 0
      %327 = vmatpush1.bf16.msra.mxu0 0
      %328 = vmatprep.subr.bf16.mxu0 0
      %329 = vmatpush1.bf16.msra.mxu0 0
      %330 = vmatprep.subr.bf16.mxu0 0
      %331 = vmatpush1.bf16.msra.mxu0 0
      %332 = vmatprep.subr.bf16.mxu0 0
      %333 = vmatpush1.bf16.msra.mxu0 0
      %334 = vmatprep.subr.bf16.mxu0 0
      %335 = vmatpush1.bf16.msra.mxu0 0
      %336 = vmatprep.subr.bf16.mxu0 0
      %337 = vmatpush1.bf16.msra.mxu0 0
      %338 = vmatprep.subr.bf16.mxu0 0
      %339 = vmatpush1.bf16.msra.mxu0 0
      %340 = vmatprep.mubr.bf16.mxu0 0
      %341 = vmatmul.mubr.bf16.gmra.mrb[0].mxu0 %v306
      %v342 = vpop.f32.mrb[0].mxu0
      %v343 = vadd.f32 0.0, %v342
      %v344 = vpop.f32.mrb[0].mxu0
      %v345 = vadd.f32 0.0, %v344
      %v346 = vpop.f32.mrb[0].mxu0
      %v347 = vadd.f32 0.0, %v346
      %v348 = vpop.f32.mrb[0].mxu0
      %v349 = vadd.f32 0.0, %v348
      %350 = vdwg.mxu0
      %v351 = vpack.c.bf16 %v347, %v343
      %v352 = vpack.c.bf16 %v349, %v345
      %v353 = vlaneseq
      %v354 = vshrl.u32 %v353, 7
      %v355 = vadd.s32 %v354, 8
      %v356 = vlaneseq
      %v357 = vand.u32 %v356, 127
      %vm358 = vcmp.le.s32.totalorder %v357, %v354
      %vm359 = vcmp.le.s32.totalorder %v357, %v355
      %361 = vrot.lane.b32.xlu0 %v351, 64
      %v362 = vpop.permute.xlu0 %361
      %vm363 = vcmask 130048
      %v365 = vsel %vm363, %v351, 0
      %v368 = vsel %vm363, %v362, 0
      %370 = vmatprep.subr.bf16.mxu0 0
      %371 = vmatpush1.bf16.xpose.msra.mxu0 %v368
      %372 = vmatprep.subr.bf16.mxu0 0
      %373 = vmatpush1.bf16.xpose.msra.mxu0 0
      %374 = vmatprep.subr.bf16.mxu0 0
      %375 = vmatpush1.bf16.xpose.msra.mxu0 0
      %376 = vmatprep.subr.bf16.mxu0 0
      %377 = vmatpush1.bf16.xpose.msra.mxu0 0
      %378 = vmatprep.subr.bf16.mxu0 0
      %379 = vmatpush1.bf16.xpose.msra.mxu0 0
      %380 = vmatprep.subr.bf16.mxu0 0
      %381 = vmatpush1.bf16.xpose.msra.mxu0 0
      %382 = vmatprep.subr.bf16.mxu0 0
      %383 = vmatpush1.bf16.xpose.msra.mxu0 0
      %384 = vmatprep.subr.bf16.mxu0 0
      %385 = vmatpush1.bf16.xpose.msra.mxu0 0
      %386 = vmatprep.subr.bf16.mxu0 0
      %387 = vmatpush1.bf16.xpose.msra.mxu0 0
      %388 = vmatprep.subr.bf16.mxu0 0
      %389 = vmatpush1.bf16.xpose.msra.mxu0 0
      %390 = vmatprep.subr.bf16.mxu0 0
      %391 = vmatpush1.bf16.xpose.msra.mxu0 0
      %392 = vmatprep.subr.bf16.mxu0 0
      %393 = vmatpush1.bf16.xpose.msra.mxu0 0
      %394 = vmatprep.subr.bf16.mxu0 0
      %395 = vmatpush1.bf16.xpose.msra.mxu0 0
      %396 = vmatprep.subr.bf16.mxu0 0
      %397 = vmatpush1.bf16.xpose.msra.mxu0 0
      %398 = vmatprep.subr.bf16.mxu0 0
      %399 = vmatpush1.bf16.xpose.msra.mxu0 0
      %400 = vmatprep.subr.bf16.mxu0 0
      %401 = vmatpush1.bf16.xpose.msra.mxu0 0
      %402 = vmatprep.mubr.bf16.mxu0 0
      %403 = vmatmul.mubr.bf16.gmra.mrb[0].mxu0 %v365
      %v404 = vpop.f32.mrb[0].mxu0
      %v405 = vadd.f32 0.0, %v404
      %v406 = vpop.f32.mrb[0].mxu0
      %v407 = vpop.f32.mrb[0].mxu0
      %v408 = vadd.f32 0.0, %v407
      %v409 = vpop.f32.mrb[0].mxu0
      %410 = vdwg.mxu0
      %v411 = vsel %vm358, %v405, -1e+30
      %v412 = vsel %vm359, %v408, -1e+30
      %v413 = vsel %vm363, %v411, -inf
      %414 = vmax.xlane.f32.xlu0 %v413
      %v415 = vpop.xlane.xlu0 %414
      %v416 = vsel %vm363, %v412, -inf
      %417 = vmax.xlane.f32.xlu0 %v416
      %v418 = vpop.xlane.xlu0 %417
      %v419 = vsub.f32 %v411, %v415
      %v420 = vsub.f32 %v412, %v418
      %v421 = vmul.f32 %v419, 1.442695
      %v422 = vpow.pop %v421
      %v423 = vmul.f32 %v420, 1.442695
      %v424 = vpow.pop %v423
      %v425 = vsel %vm363, %v422, 0.0
      %426 = vadd.xlane.f32.xlu0 %v425
      %v427 = vpop.xlane.xlu0 %426
      %v428 = vsel %vm363, %v424, 0.0
      %429 = vadd.xlane.f32.xlu0 %v428
      %v430 = vpop.xlane.xlu0 %429
      %v431 = vrcp.pop %v427
      %v432 = vrcp.pop %v430
      %v433 = vmul.f32 %v422, %v431
      %v434 = vmul.f32 %v424, %v432
      %v435 = vpack.c.bf16 %v434, %v433
      %v437 = vsel %vm363, %v435, 0
      %439 = vmatprep.subr.bf16.mxu0 0
      %440 = vmatpush1.bf16.msra.mxu0 %v352
      %441 = vmatprep.subr.bf16.mxu0 0
      %442 = vmatpush1.bf16.msra.mxu0 0
      %443 = vmatprep.subr.bf16.mxu0 0
      %444 = vmatpush1.bf16.msra.mxu0 0
      %445 = vmatprep.subr.bf16.mxu0 0
      %446 = vmatpush1.bf16.msra.mxu0 0
      %447 = vmatprep.subr.bf16.mxu0 0
      %448 = vmatpush1.bf16.msra.mxu0 0
      %449 = vmatprep.subr.bf16.mxu0 0
      %450 = vmatpush1.bf16.msra.mxu0 0
      %451 = vmatprep.subr.bf16.mxu0 0
      %452 = vmatpush1.bf16.msra.mxu0 0
      %453 = vmatprep.subr.bf16.mxu0 0
      %454 = vmatpush1.bf16.msra.mxu0 0
      %455 = vmatprep.subr.bf16.mxu0 0
      %456 = vmatpush1.bf16.msra.mxu0 0
      %457 = vmatprep.subr.bf16.mxu0 0
      %458 = vmatpush1.bf16.msra.mxu0 0
      %459 = vmatprep.subr.bf16.mxu0 0
      %460 = vmatpush1.bf16.msra.mxu0 0
      %461 = vmatprep.subr.bf16.mxu0 0
      %462 = vmatpush1.bf16.msra.mxu0 0
      %463 = vmatprep.subr.bf16.mxu0 0
      %464 = vmatpush1.bf16.msra.mxu0 0
      %465 = vmatprep.subr.bf16.mxu0 0
      %466 = vmatpush1.bf16.msra.mxu0 0
      %467 = vmatprep.subr.bf16.mxu0 0
      %468 = vmatpush1.bf16.msra.mxu0 0
      %469 = vmatprep.subr.bf16.mxu0 0
      %470 = vmatpush1.bf16.msra.mxu0 0
      %471 = vmatprep.mubr.bf16.mxu0 0
      %472 = vmatmul.mubr.bf16.gmra.mrb[0].mxu0 %v437
      %v473 = vpop.f32.mrb[0].mxu0
      %v474 = vadd.f32 0.0, %v473
      %v475 = vpop.f32.mrb[0].mxu0
      %v476 = vpop.f32.mrb[0].mxu0
      %v477 = vadd.f32 0.0, %v476
      %v478 = vpop.f32.mrb[0].mxu0
      %479 = vdwg.mxu0
      %480 = vst.msk [vmem:[#allocation2] sm:$0xff] %vm363, %v474
      %481 = vst.msk [vmem:[#allocation2 + $0x8] sm:$0xff] %vm363, %v477
      %482 = vrot.lane.b32.xlu0 %v351, 112
      %v483 = vpop.permute.xlu0 %482
      %484 = vrot.lane.b32.xlu0 %v351, 48
      %v485 = vpop.permute.xlu0 %484
      %v487 = vsel %vm363, %v483, 0
      %v490 = vsel %vm363, %v485, 0
      %492 = vmatprep.subr.bf16.mxu0 0
      %493 = vmatpush1.bf16.xpose.msra.mxu0 %v490
      %494 = vmatprep.subr.bf16.mxu0 0
      %495 = vmatpush1.bf16.xpose.msra.mxu0 0
      %496 = vmatprep.subr.bf16.mxu0 0
      %497 = vmatpush1.bf16.xpose.msra.mxu0 0
      %498 = vmatprep.subr.bf16.mxu0 0
      %499 = vmatpush1.bf16.xpose.msra.mxu0 0
      %500 = vmatprep.subr.bf16.mxu0 0
      %501 = vmatpush1.bf16.xpose.msra.mxu0 0
      %502 = vmatprep.subr.bf16.mxu0 0
      %503 = vmatpush1.bf16.xpose.msra.mxu0 0
      %504 = vmatprep.subr.bf16.mxu0 0
      %505 = vmatpush1.bf16.xpose.msra.mxu0 0
      %506 = vmatprep.subr.bf16.mxu0 0
      %507 = vmatpush1.bf16.xpose.msra.mxu0 0
      %508 = vmatprep.subr.bf16.mxu0 0
      %509 = vmatpush1.bf16.xpose.msra.mxu0 0
      %510 = vmatprep.subr.bf16.mxu0 0
      %511 = vmatpush1.bf16.xpose.msra.mxu0 0
      %512 = vmatprep.subr.bf16.mxu0 0
      %513 = vmatpush1.bf16.xpose.msra.mxu0 0
      %514 = vmatprep.subr.bf16.mxu0 0
      %515 = vmatpush1.bf16.xpose.msra.mxu0 0
      %516 = vmatprep.subr.bf16.mxu0 0
      %517 = vmatpush1.bf16.xpose.msra.mxu0 0
      %518 = vmatprep.subr.bf16.mxu0 0
      %519 = vmatpush1.bf16.xpose.msra.mxu0 0
      %520 = vmatprep.subr.bf16.mxu0 0
      %521 = vmatpush1.bf16.xpose.msra.mxu0 0
      %522 = vmatprep.subr.bf16.mxu0 0
      %523 = vmatpush1.bf16.xpose.msra.mxu0 0
      %524 = vmatprep.mubr.bf16.mxu0 0
      %525 = vmatmul.mubr.bf16.gmra.mrb[0].mxu0 %v487
      %v526 = vpop.f32.mrb[0].mxu0
      %v527 = vadd.f32 0.0, %v526
      %v528 = vpop.f32.mrb[0].mxu0
      %v529 = vpop.f32.mrb[0].mxu0
      %v530 = vadd.f32 0.0, %v529
      %v531 = vpop.f32.mrb[0].mxu0
      %532 = vdwg.mxu0
      %v533 = vsel %vm358, %v527, -1e+30
      %v534 = vsel %vm359, %v530, -1e+30
      %v535 = vsel %vm363, %v533, -inf
      %536 = vmax.xlane.f32.xlu0 %v535
      %v537 = vpop.xlane.xlu0 %536
      %v538 = vsel %vm363, %v534, -inf
      %539 = vmax.xlane.f32.xlu0 %v538
      %v540 = vpop.xlane.xlu0 %539
      %v541 = vsub.f32 %v533, %v537
      %v542 = vsub.f32 %v534, %v540
      %v543 = vmul.f32 %v541, 1.442695
      %v544 = vpow.pop %v543
      %v545 = vmul.f32 %v542, 1.442695
      %v546 = vpow.pop %v545
      %v547 = vsel %vm363, %v544, 0.0
      %548 = vadd.xlane.f32.xlu0 %v547
      %v549 = vpop.xlane.xlu0 %548
      %v550 = vsel %vm363, %v546, 0.0
      %551 = vadd.xlane.f32.xlu0 %v550
      %v552 = vpop.xlane.xlu0 %551
      %v553 = vrcp.pop %v549
      %v554 = vrcp.pop %v552
      %v555 = vmul.f32 %v544, %v553
      %v556 = vmul.f32 %v546, %v554
      %v557 = vpack.c.bf16 %v556, %v555
      %559 = vrot.lane.b32.xlu0 %v352, 112
      %v560 = vpop.permute.xlu0 %559
      %v563 = vsel %vm363, %v557, 0
      %565 = vmatprep.subr.bf16.mxu0 0
      %566 = vmatpush1.bf16.msra.mxu0 %v560
      %567 = vmatprep.subr.bf16.mxu0 0
      %568 = vmatpush1.bf16.msra.mxu0 0
      %569 = vmatprep.subr.bf16.mxu0 0
      %570 = vmatpush1.bf16.msra.mxu0 0
      %571 = vmatprep.subr.bf16.mxu0 0
      %572 = vmatpush1.bf16.msra.mxu0 0
      %573 = vmatprep.subr.bf16.mxu0 0
      %574 = vmatpush1.bf16.msra.mxu0 0
      %575 = vmatprep.subr.bf16.mxu0 0
      %576 = vmatpush1.bf16.msra.mxu0 0
      %577 = vmatprep.subr.bf16.mxu0 0
      %578 = vmatpush1.bf16.msra.mxu0 0
      %579 = vmatprep.subr.bf16.mxu0 0
      %580 = vmatpush1.bf16.msra.mxu0 0
      %581 = vmatprep.subr.bf16.mxu0 0
      %582 = vmatpush1.bf16.msra.mxu0 0
      %583 = vmatprep.subr.bf16.mxu0 0
      %584 = vmatpush1.bf16.msra.mxu0 0
      %585 = vmatprep.subr.bf16.mxu0 0
      %586 = vmatpush1.bf16.msra.mxu0 0
      %587 = vmatprep.subr.bf16.mxu0 0
      %588 = vmatpush1.bf16.msra.mxu0 0
      %589 = vmatprep.subr.bf16.mxu0 0
      %590 = vmatpush1.bf16.msra.mxu0 0
      %591 = vmatprep.subr.bf16.mxu0 0
      %592 = vmatpush1.bf16.msra.mxu0 0
      %593 = vmatprep.subr.bf16.mxu0 0
      %594 = vmatpush1.bf16.msra.mxu0 0
      %595 = vmatprep.subr.bf16.mxu0 0
      %596 = vmatpush1.bf16.msra.mxu0 0
      %597 = vmatprep.mubr.bf16.mxu0 0
      %598 = vmatmul.mubr.bf16.gmra.mrb[0].mxu0 %v563
      %v599 = vpop.f32.mrb[0].mxu0
      %v600 = vadd.f32 0.0, %v599
      %v601 = vpop.f32.mrb[0].mxu0
      %v602 = vpop.f32.mrb[0].mxu0
      %v603 = vadd.f32 0.0, %v602
      %v604 = vpop.f32.mrb[0].mxu0
      %605 = vdwg.mxu0
      %608 = vrot.lane.b32.xlu0 %v600, 16
      %v609 = vpop.permute.xlu0 %608
      %610 = vrot.lane.b32.xlu0 %v603, 16
      %v611 = vpop.permute.xlu0 %610
      %vm614 = vcmask 261248
      %615 = vst.msk [vmem:[#allocation2] sm:$0xff] %vm614, %v609
      %616 = vst.msk [vmem:[#allocation2 + $0x8] sm:$0xff] %vm614, %v611
      %617 = vrot.lane.b32.xlu0 %v351, 96
      %v618 = vpop.permute.xlu0 %617
      %619 = vrot.lane.b32.xlu0 %v351, 32
      %v620 = vpop.permute.xlu0 %619
      %v622 = vsel %vm363, %v618, 0
      %v625 = vsel %vm363, %v620, 0
      %627 = vmatprep.subr.bf16.mxu0 0
      %628 = vmatpush1.bf16.xpose.msra.mxu0 %v625
      %629 = vmatprep.subr.bf16.mxu0 0
      %630 = vmatpush1.bf16.xpose.msra.mxu0 0
      %631 = vmatprep.subr.bf16.mxu0 0
      %632 = vmatpush1.bf16.xpose.msra.mxu0 0
      %633 = vmatprep.subr.bf16.mxu0 0
      %634 = vmatpush1.bf16.xpose.msra.mxu0 0
      %635 = vmatprep.subr.bf16.mxu0 0
      %636 = vmatpush1.bf16.xpose.msra.mxu0 0
      %637 = vmatprep.subr.bf16.mxu0 0
      %638 = vmatpush1.bf16.xpose.msra.mxu0 0
      %639 = vmatprep.subr.bf16.mxu0 0
      %640 = vmatpush1.bf16.xpose.msra.mxu0 0
      %641 = vmatprep.subr.bf16.mxu0 0
      %642 = vmatpush1.bf16.xpose.msra.mxu0 0
      %643 = vmatprep.subr.bf16.mxu0 0
      %644 = vmatpush1.bf16.xpose.msra.mxu0 0
      %645 = vmatprep.subr.bf16.mxu0 0
      %646 = vmatpush1.bf16.xpose.msra.mxu0 0
      %647 = vmatprep.subr.bf16.mxu0 0
      %648 = vmatpush1.bf16.xpose.msra.mxu0 0
      %649 = vmatprep.subr.bf16.mxu0 0
      %650 = vmatpush1.bf16.xpose.msra.mxu0 0
      %651 = vmatprep.subr.bf16.mxu0 0
      %652 = vmatpush1.bf16.xpose.msra.mxu0 0
      %653 = vmatprep.subr.bf16.mxu0 0
      %654 = vmatpush1.bf16.xpose.msra.mxu0 0
      %655 = vmatprep.subr.bf16.mxu0 0
      %656 = vmatpush1.bf16.xpose.msra.mxu0 0
      %657 = vmatprep.subr.bf16.mxu0 0
      %658 = vmatpush1.bf16.xpose.msra.mxu0 0
      %659 = vmatprep.mubr.bf16.mxu0 0
      %660 = vmatmul.mubr.bf16.gmra.mrb[0].mxu0 %v622
      %v661 = vpop.f32.mrb[0].mxu0
      %v662 = vadd.f32 0.0, %v661
      %v663 = vpop.f32.mrb[0].mxu0
      %v664 = vpop.f32.mrb[0].mxu0
      %v665 = vadd.f32 0.0, %v664
      %v666 = vpop.f32.mrb[0].mxu0
      %667 = vdwg.mxu0
      %v668 = vsel %vm358, %v662, -1e+30
      %v669 = vsel %vm359, %v665, -1e+30
      %v670 = vsel %vm363, %v668, -inf
      %671 = vmax.xlane.f32.xlu0 %v670
      %v672 = vpop.xlane.xlu0 %671
      %v673 = vsel %vm363, %v669, -inf
      %674 = vmax.xlane.f32.xlu0 %v673
      %v675 = vpop.xlane.xlu0 %674
      %v676 = vsub.f32 %v668, %v672
      %v677 = vsub.f32 %v669, %v675
      %v678 = vmul.f32 %v676, 1.442695
      %v679 = vpow.pop %v678
      %v680 = vmul.f32 %v677, 1.442695
      %v681 = vpow.pop %v680
      %v682 = vsel %vm363, %v679, 0.0
      %683 = vadd.xlane.f32.xlu0 %v682
      %v684 = vpop.xlane.xlu0 %683
      %v685 = vsel %vm363, %v681, 0.0
      %686 = vadd.xlane.f32.xlu0 %v685
      %v687 = vpop.xlane.xlu0 %686
      %v688 = vrcp.pop %v684
      %v689 = vrcp.pop %v687
      %v690 = vmul.f32 %v679, %v688
      %v691 = vmul.f32 %v681, %v689
      %v692 = vpack.c.bf16 %v691, %v690
      %693 = vrot.lane.b32.xlu0 %v352, 96
      %v694 = vpop.permute.xlu0 %693
      %v697 = vsel %vm363, %v692, 0
      %699 = vmatprep.subr.bf16.mxu0 0
      %700 = vmatpush1.bf16.msra.mxu0 %v694
      %701 = vmatprep.subr.bf16.mxu0 0
      %702 = vmatpush1.bf16.msra.mxu0 0
      %703 = vmatprep.subr.bf16.mxu0 0
      %704 = vmatpush1.bf16.msra.mxu0 0
      %705 = vmatprep.subr.bf16.mxu0 0
      %706 = vmatpush1.bf16.msra.mxu0 0
      %707 = vmatprep.subr.bf16.mxu0 0
      %708 = vmatpush1.bf16.msra.mxu0 0
      %709 = vmatprep.subr.bf16.mxu0 0
      %710 = vmatpush1.bf16.msra.mxu0 0
      %711 = vmatprep.subr.bf16.mxu0 0
      %712 = vmatpush1.bf16.msra.mxu0 0
      %713 = vmatprep.subr.bf16.mxu0 0
      %714 = vmatpush1.bf16.msra.mxu0 0
      %715 = vmatprep.subr.bf16.mxu0 0
      %716 = vmatpush1.bf16.msra.mxu0 0
      %717 = vmatprep.subr.bf16.mxu0 0
      %718 = vmatpush1.bf16.msra.mxu0 0
      %719 = vmatprep.subr.bf16.mxu0 0
      %720 = vmatpush1.bf16.msra.mxu0 0
      %721 = vmatprep.subr.bf16.mxu0 0
      %722 = vmatpush1.bf16.msra.mxu0 0
      %723 = vmatprep.subr.bf16.mxu0 0
      %724 = vmatpush1.bf16.msra.mxu0 0
      %725 = vmatprep.subr.bf16.mxu0 0
      %726 = vmatpush1.bf16.msra.mxu0 0
      %727 = vmatprep.subr.bf16.mxu0 0
      %728 = vmatpush1.bf16.msra.mxu0 0
      %729 = vmatprep.subr.bf16.mxu0 0
      %730 = vmatpush1.bf16.msra.mxu0 0
      %731 = vmatprep.mubr.bf16.mxu0 0
      %732 = vmatmul.mubr.bf16.gmra.mrb[0].mxu0 %v697
      %v733 = vpop.f32.mrb[0].mxu0
      %v734 = vadd.f32 0.0, %v733
      %v735 = vpop.f32.mrb[0].mxu0
      %v736 = vpop.f32.mrb[0].mxu0
      %v737 = vadd.f32 0.0, %v736
      %v738 = vpop.f32.mrb[0].mxu0
      %739 = vdwg.mxu0
      %742 = vrot.lane.b32.xlu0 %v734, 32
      %v743 = vpop.permute.xlu0 %742
      %744 = vrot.lane.b32.xlu0 %v737, 32
      %v745 = vpop.permute.xlu0 %744
      %vm748 = vcmask 392448
      %749 = vst.msk [vmem:[#allocation2] sm:$0xff] %vm748, %v743
      %750 = vst.msk [vmem:[#allocation2 + $0x8] sm:$0xff] %vm748, %v745
      %751 = vrot.lane.b32.xlu0 %v351, 80
      %v752 = vpop.permute.xlu0 %751
      %753 = vrot.lane.b32.xlu0 %v351, 16
      %v754 = vpop.permute.xlu0 %753
      %v756 = vsel %vm363, %v752, 0
      %v759 = vsel %vm363, %v754, 0
      %761 = vmatprep.subr.bf16.mxu0 0
      %762 = vmatpush1.bf16.xpose.msra.mxu0 %v759
      %763 = vmatprep.subr.bf16.mxu0 0
      %764 = vmatpush1.bf16.xpose.msra.mxu0 0
      %765 = vmatprep.subr.bf16.mxu0 0
      %766 = vmatpush1.bf16.xpose.msra.mxu0 0
      %767 = vmatprep.subr.bf16.mxu0 0
      %768 = vmatpush1.bf16.xpose.msra.mxu0 0
      %769 = vmatprep.subr.bf16.mxu0 0
      %770 = vmatpush1.bf16.xpose.msra.mxu0 0
      %771 = vmatprep.subr.bf16.mxu0 0
      %772 = vmatpush1.bf16.xpose.msra.mxu0 0
      %773 = vmatprep.subr.bf16.mxu0 0
      %774 = vmatpush1.bf16.xpose.msra.mxu0 0
      %775 = vmatprep.subr.bf16.mxu0 0
      %776 = vmatpush1.bf16.xpose.msra.mxu0 0
      %777 = vmatprep.subr.bf16.mxu0 0
      %778 = vmatpush1.bf16.xpose.msra.mxu0 0
      %779 = vmatprep.subr.bf16.mxu0 0
      %780 = vmatpush1.bf16.xpose.msra.mxu0 0
      %781 = vmatprep.subr.bf16.mxu0 0
      %782 = vmatpush1.bf16.xpose.msra.mxu0 0
      %783 = vmatprep.subr.bf16.mxu0 0
      %784 = vmatpush1.bf16.xpose.msra.mxu0 0
      %785 = vmatprep.subr.bf16.mxu0 0
      %786 = vmatpush1.bf16.xpose.msra.mxu0 0
      %787 = vmatprep.subr.bf16.mxu0 0
      %788 = vmatpush1.bf16.xpose.msra.mxu0 0
      %789 = vmatprep.subr.bf16.mxu0 0
      %790 = vmatpush1.bf16.xpose.msra.mxu0 0
      %791 = vmatprep.subr.bf16.mxu0 0
      %792 = vmatpush1.bf16.xpose.msra.mxu0 0
      %793 = vmatprep.mubr.bf16.mxu0 0
      %794 = vmatmul.mubr.bf16.gmra.mrb[0].mxu0 %v756
      %v795 = vpop.f32.mrb[0].mxu0
      %v796 = vadd.f32 0.0, %v795
      %v797 = vpop.f32.mrb[0].mxu0
      %v798 = vpop.f32.mrb[0].mxu0
      %v799 = vadd.f32 0.0, %v798
      %v800 = vpop.f32.mrb[0].mxu0
      %801 = vdwg.mxu0
      %v802 = vsel %vm358, %v796, -1e+30
      %v803 = vsel %vm359, %v799, -1e+30
      %v804 = vsel %vm363, %v802, -inf
      %805 = vmax.xlane.f32.xlu0 %v804
      %v806 = vpop.xlane.xlu0 %805
      %v807 = vsel %vm363, %v803, -inf
      %808 = vmax.xlane.f32.xlu0 %v807
      %v809 = vpop.xlane.xlu0 %808
      %v810 = vsub.f32 %v802, %v806
      %v811 = vsub.f32 %v803, %v809
      %v812 = vmul.f32 %v810, 1.442695
      %v813 = vpow.pop %v812
      %v814 = vmul.f32 %v811, 1.442695
      %v815 = vpow.pop %v814
      %v816 = vsel %vm363, %v813, 0.0
      %817 = vadd.xlane.f32.xlu0 %v816
      %v818 = vpop.xlane.xlu0 %817
      %v819 = vsel %vm363, %v815, 0.0
      %820 = vadd.xlane.f32.xlu0 %v819
      %v821 = vpop.xlane.xlu0 %820
      %v822 = vrcp.pop %v818
      %v823 = vrcp.pop %v821
      %v824 = vmul.f32 %v813, %v822
      %v825 = vmul.f32 %v815, %v823
      %v826 = vpack.c.bf16 %v825, %v824
      %827 = vrot.lane.b32.xlu0 %v352, 80
      %v828 = vpop.permute.xlu0 %827
      %v831 = vsel %vm363, %v826, 0
      %833 = vmatprep.subr.bf16.mxu0 0
      %834 = vmatpush1.bf16.msra.mxu0 %v828
      %835 = vmatprep.subr.bf16.mxu0 0
      %836 = vmatpush1.bf16.msra.mxu0 0
      %837 = vmatprep.subr.bf16.mxu0 0
      %838 = vmatpush1.bf16.msra.mxu0 0
      %839 = vmatprep.subr.bf16.mxu0 0
      %840 = vmatpush1.bf16.msra.mxu0 0
      %841 = vmatprep.subr.bf16.mxu0 0
      %842 = vmatpush1.bf16.msra.mxu0 0
      %843 = vmatprep.subr.bf16.mxu0 0
      %844 = vmatpush1.bf16.msra.mxu0 0
      %845 = vmatprep.subr.bf16.mxu0 0
      %846 = vmatpush1.bf16.msra.mxu0 0
      %847 = vmatprep.subr.bf16.mxu0 0
      %848 = vmatpush1.bf16.msra.mxu0 0
      %849 = vmatprep.subr.bf16.mxu0 0
      %850 = vmatpush1.bf16.msra.mxu0 0
      %851 = vmatprep.subr.bf16.mxu0 0
      %852 = vmatpush1.bf16.msra.mxu0 0
      %853 = vmatprep.subr.bf16.mxu0 0
      %854 = vmatpush1.bf16.msra.mxu0 0
      %855 = vmatprep.subr.bf16.mxu0 0
      %856 = vmatpush1.bf16.msra.mxu0 0
      %857 = vmatprep.subr.bf16.mxu0 0
      %858 = vmatpush1.bf16.msra.mxu0 0
      %859 = vmatprep.subr.bf16.mxu0 0
      %860 = vmatpush1.bf16.msra.mxu0 0
      %861 = vmatprep.subr.bf16.mxu0 0
      %862 = vmatpush1.bf16.msra.mxu0 0
      %863 = vmatprep.subr.bf16.mxu0 0
      %864 = vmatpush1.bf16.msra.mxu0 0
      %865 = vmatprep.mubr.bf16.mxu0 0
      %866 = vmatmul.mubr.bf16.gmra.mrb[0].mxu0 %v831
      %v867 = vpop.f32.mrb[0].mxu0
      %v868 = vadd.f32 0.0, %v867
      %v869 = vpop.f32.mrb[0].mxu0
      %v870 = vpop.f32.mrb[0].mxu0
      %v871 = vadd.f32 0.0, %v870
      %v872 = vpop.f32.mrb[0].mxu0
      %873 = vdwg.mxu0
      %876 = vrot.lane.b32.xlu0 %v868, 48
      %v877 = vpop.permute.xlu0 %876
      %878 = vrot.lane.b32.xlu0 %v871, 48
      %v879 = vpop.permute.xlu0 %878
      %vm882 = vcmask 523648
      %883 = vst.msk [vmem:[#allocation2] sm:$0xff] %vm882, %v877
      %884 = vst.msk [vmem:[#allocation2 + $0x8] sm:$0xff] %vm882, %v879
      %v885 = vld [vmem:[#allocation2] sm:$0xff]
      %v886 = vld [vmem:[#allocation2 + $0x8] sm:$0xff]
      %v887 = vpack.c.bf16 %v886, %v885
      %v888 = vld [vmem:[%s2] sm:$0xf]
      %v889 = vld [vmem:[%s2 + $0x4] sm:$0xf]
      %v890 = vld [vmem:[%s2 + $0x8] sm:$0xf]
      %v891 = vld [vmem:[%s2 + $0xc] sm:$0xf]
      %v892 = vld [vmem:[%s2 + $0x10] sm:$0xf]
      %v893 = vld [vmem:[%s2 + $0x14] sm:$0xf]
      %v894 = vld [vmem:[%s2 + $0x18] sm:$0xf]
      %v895 = vld [vmem:[%s2 + $0x1c] sm:$0xf]
      %v904 = vunpack.c.l.b16 %v888
      %v905 = vunpack.c.l.b16 %v889
      %v906 = vunpack.c.l.b16 %v890
      %v907 = vunpack.c.l.b16 %v891
      %v908 = vunpack.c.l.b16 %v892
      %v909 = vunpack.c.l.b16 %v893
      %v910 = vunpack.c.l.b16 %v894
      %v911 = vunpack.c.l.b16 %v895
      %v912 = vpack.c.b16 %v905, %v904
      %v913 = vpack.c.b16 %v907, %v906
      %v914 = vpack.c.b16 %v909, %v908
      %v915 = vpack.c.b16 %v911, %v910
      %v921 = vsel %vm304, %v887, 0
      %923 = vmatprep.subr.bf16.mxu0 0
      %924 = vmatpush1.bf16.msra.mxu0 %v912
      %925 = vmatprep.subr.bf16.mxu0 0
      %926 = vmatpush1.bf16.msra.mxu0 %v913
      %927 = vmatprep.subr.bf16.mxu0 0
      %928 = vmatpush1.bf16.msra.mxu0 %v914
      %929 = vmatprep.subr.bf16.mxu0 0
      %930 = vmatpush1.bf16.msra.mxu0 %v915
      %931 = vmatprep.subr.bf16.mxu0 0
      %932 = vmatpush1.bf16.msra.mxu0 0
      %933 = vmatprep.subr.bf16.mxu0 0
      %934 = vmatpush1.bf16.msra.mxu0 0
      %935 = vmatprep.subr.bf16.mxu0 0
      %936 = vmatpush1.bf16.msra.mxu0 0
      %937 = vmatprep.subr.bf16.mxu0 0
      %938 = vmatpush1.bf16.msra.mxu0 0
      %939 = vmatprep.subr.bf16.mxu0 0
      %940 = vmatpush1.bf16.msra.mxu0 0
      %941 = vmatprep.subr.bf16.mxu0 0
      %942 = vmatpush1.bf16.msra.mxu0 0
      %943 = vmatprep.subr.bf16.mxu0 0
      %944 = vmatpush1.bf16.msra.mxu0 0
      %945 = vmatprep.subr.bf16.mxu0 0
      %946 = vmatpush1.bf16.msra.mxu0 0
      %947 = vmatprep.subr.bf16.mxu0 0
      %948 = vmatpush1.bf16.msra.mxu0 0
      %949 = vmatprep.subr.bf16.mxu0 0
      %950 = vmatpush1.bf16.msra.mxu0 0
      %951 = vmatprep.subr.bf16.mxu0 0
      %952 = vmatpush1.bf16.msra.mxu0 0
      %953 = vmatprep.subr.bf16.mxu0 0
      %954 = vmatpush1.bf16.msra.mxu0 0
      %955 = vmatprep.mubr.bf16.mxu0 0
      %956 = vmatmul.mubr.bf16.gmra.mrb[0].mxu0 %v921
      %v957 = vpop.f32.mrb[0].mxu0
      %v958 = vadd.f32 0.0, %v957
      %v959 = vpop.f32.mrb[0].mxu0
      %v960 = vpop.f32.mrb[0].mxu0
      %v961 = vadd.f32 0.0, %v960
      %v962 = vpop.f32.mrb[0].mxu0
      %963 = vdwg.mxu0
      %v964 = vadd.f32 %v253, %v958
      %v965 = vadd.f32 %v254, %v961
      %v966 = vld [vmem:[%s3] sm:$0x1]
      %v968 = vlaneseq
      %v969 = vshrl.u32 %v968, 7
      %v970 = vsub.s32 0, %v969
      %v971 = vrot.slane %v966, %v970
      %v973 = vadd.f32 %v964, %v971
      %v974 = vadd.f32 %v965, %v971
      %v975 = vsel %vm304, %v973, 0.0
      %976 = vadd.xlane.f32.xlu0 %v975
      %v977 = vpop.xlane.xlu0 %976
      %v978 = vsel %vm304, %v974, 0.0
      %979 = vadd.xlane.f32.xlu0 %v978
      %v980 = vpop.xlane.xlu0 %979
      %v981 = vrcp.pop 64.0
      %v982 = vmul.f32 %v977, %v981
      %v983 = vmul.f32 %v980, %v981
      %v984 = vsub.f32 %v973, %v982
      %v985 = vsub.f32 %v974, %v983
      %v986 = vmul.f32 %v984, %v984
      %v987 = vmul.f32 %v985, %v985
      %v988 = vsel %vm304, %v986, 0.0
      %989 = vadd.xlane.f32.xlu0 %v988
      %v990 = vpop.xlane.xlu0 %989
      %v991 = vsel %vm304, %v987, 0.0
      %992 = vadd.xlane.f32.xlu0 %v991
      %v993 = vpop.xlane.xlu0 %992
      %v994 = vmul.f32 %v990, %v981
      %v995 = vmul.f32 %v993, %v981
      %v996 = vadd.f32 %v994, 1e-05
      %v997 = vadd.f32 %v995, 1e-05
      %v998 = vrsqrt.pop %v996
      %v999 = vrsqrt.pop %v997
      %v1000 = vmul.f32 %v984, %v998
      %v1001 = vmul.f32 %v985, %v999
      %v1002 = vld [vmem:[%s4] sm:$0x1]
      %v1004 = vlaneseq
      %v1005 = vshrl.u32 %v1004, 7
      %v1006 = vsub.s32 0, %v1005
      %v1007 = vrot.slane %v1002, %v1006
      %v1009 = vmul.f32 %v1000, %v1007
      %v1010 = vmul.f32 %v1001, %v1007
      %v1011 = vld [vmem:[%s5] sm:$0x1]
      %v1013 = vlaneseq
      %v1014 = vshrl.u32 %v1013, 7
      %v1015 = vsub.s32 0, %v1014
      %v1016 = vrot.slane %v1011, %v1015
      %v1018 = vadd.f32 %v1009, %v1016
      %v1019 = vadd.f32 %v1010, %v1016
      %1020 = vst.msk [vmem:[%s251] sm:$0xff] %vm304, %v1018
      %1021 = vst.msk [vmem:[%s251 + $0x8] sm:$0xff] %vm304, %v1019
      %p1022 = scmp.lt.s32.totalorder %s17, 1
      %s1023 = scalar_select %p1022, %s17, 1
      %s1024 = smul.addr %s1023, 2
      %s1025 = smul.addr %s1024, 8
      %s1026 = scalar_lea.vmem %s6, %s1025
      // Predicated region
      $region45: #{block_forward.2} parent=43 // pred_check
        %p1027 = pneg %p166
      $region46: #{block_forward.2} parent=43 // pred_check_branch
        %1029 = sbr.rel (%p1027) target = $region48
      $region47: #{block_forward.2} parent=43 // pred_region
        _
      $region48: #{block_forward.2} parent=43 // pred_fallthru
        _
    $region44: #{block_forward.2} parent=5 // pred_fallthru
      _
    %p1030 = scmp.le.s32.totalorder 2, %s12
    // Predicated region
    $region49: #{block_forward.2} parent=5 // pred_check
      %p1031 = pneg %p1030
    $region50: #{block_forward.2} parent=5 // pred_check_branch
      %1033 = sbr.rel (%p1031) target = $region52
    $region51: #{block_forward.2} parent=5 // pred_region
      %s1034 = ssub.s32 %s12, 2
      // Predicated region
      $region53: #{block_forward.2} parent=51 // pred_check
        %p1035 = pneg %p172
      $region54: #{block_forward.2} parent=51 // pred_check_branch
        %1037 = sbr.rel (%p1035) target = $region56
      $region55: #{block_forward.2} parent=51 // pred_region
        %p1038 = scmp.lt.s32.totalorder %s18, 1
        %s1039 = scalar_select %p1038, %s18, 1
        %s1040 = smul.addr %s1039, 2
        %s1041 = smul.addr %s1040, 8
        %s1042 = scalar_lea.vmem %s6, %s1041
      $region56: #{block_forward.2} parent=51 // pred_fallthru
        _
    $region52: #{block_forward.2} parent=5 // pred_fallthru
      _
  $region6: #{block_forward.2} parent=0 // loop_footer
    %s16 = sadd.s32 1, %s12
  $region7: #{block_forward.2} parent=0 // loop_footer_branch
    %11 = sbr.rel target = $region3
  $region8: #{block_forward.2} parent=0 // loop_exit
    _

// kernel: block_forward.3
$region0: #{block_forward.3}
  #allocation0 [shape = 'u32[]', space=smem, size = 0x4, offset = 0x4, fixed_abs, tag = 'smem constant byte address 0x4 - core index']
  #allocation1 [shape = 'u32[144,128]{1,0:T(1,128)}', space=vmem, size = 0x12000, scoped, tag = 'internal scratch']
  #allocation2 [shape = 'f32[16,64]{1,0:T(8,128)}', space=vmem, size = 0x2000, scoped, tag = 'scratch operand']
  %s0 = inlined_call_operand.vmem [shape: f32[32,64], index: 0, kind: input, shape index: {}]
  %s1 = inlined_call_operand.vmem [shape: bf16[64,256], index: 1, kind: input, shape index: {}]
  %s2 = inlined_call_operand.vmem [shape: f32[1,256], index: 2, kind: input, shape index: {}]
  %s3 = inlined_call_operand.vmem [shape: bf16[256,64], index: 3, kind: input, shape index: {}]
  %s4 = inlined_call_operand.vmem [shape: f32[1,64], index: 4, kind: input, shape index: {}]
  %s5 = inlined_call_operand.vmem [shape: f32[1,64], index: 5, kind: input, shape index: {}]
  %s6 = inlined_call_operand.vmem [shape: f32[1,64], index: 6, kind: input, shape index: {}]
  %s7 = inlined_call_operand.hbm [shape: f32[32,64], index: 7, kind: output, shape index: {}]
  %s8 = sld [smem:[#allocation0]]
  $region69: #{block_forward.3} parent=0
    _
  %s10 = ssub.s32 1, %s8
  %s11 = scalar_select 0, %s10, %s8
  $region1: #{block_forward.3} parent=0
    #allocation3 [shape = 'u8[16384]{0}', space=vmem, size = 0x4000, scoped, tag = 'output window, operand 0']
    #allocation4 [shape = 's32[2]{0}', space=sflag, size = 0x8, scoped, tag = 'scoped memory for block_forward.3']
    %12 = vsyncpa [#allocation4], 0
    %s13 = scalar_lea.sflag [#allocation4], 1
    %14 = vsyncpa %s13, 0
    loop: start=0, step=1, limit=4
    $region2: #{block_forward.3} parent=1 // loop_pre_header
      _
    $region3: #{block_forward.3} parent=1 // loop_header
      %s16 = sphi 0, %s20
      %p17 = scmp.ge.s32.totalorder %s16, 4
      %s23 = sphi 0, %s35
      %s24 = sphi 0, %s31
      %s25 = sphi 0, %s23
      %s26 = sphi 0, %s24
      %s27 = sphi 0, %s25
      %s28 = sphi 0, %s26
      %s38 = sphi 0, %s40
      %s41 = sphi 0, %s38
      %s42 = sphi 0, %s41
      %s58 = sphi 0, %s42
      %s64 = sphi 0, %s66
      %s67 = sphi 0, %s64
      %s68 = sphi 0, %s67
      %s84 = sphi 0, %s68
      %s90 = sphi 0, %s92
      %s93 = sphi 0, %s90
      %s94 = sphi 0, %s93
      %s110 = sphi 0, %s94
      %s116 = sphi 0, %s118
      %s119 = sphi 0, %s116
      %s120 = sphi 0, %s119
      %s136 = sphi 0, %s120
      %s140 = sphi 0, %s140
      %s142 = sphi 0, %s140
      %s143 = sphi 0, %s142
      %s157 = sphi 0, %s143
      %s161 = sphi 0, %s161
      %s163 = sphi 0, %s161
      %s164 = sphi 0, %s163
      %s178 = sphi 0, %s164
      %s182 = sphi 0, %s182
      %s184 = sphi 0, %s182
      %s185 = sphi 0, %s184
      %s199 = sphi 0, %s185
      %s205 = sphi 0, %s207
      %s208 = sphi 0, %s205
      %s209 = sphi 0, %s208
      %s225 = sphi 0, %s209
    $region4: #{block_forward.3} parent=1 // loop_header_branch
      %19 = sbr.rel (%p17) target = $region8
    $region5: #{block_forward.3} parent=1 // loop_body
      %s21 = ssub.s32 %s16, 1
      %s22 = ssub.s32 %s16, 2
      %s29 = sadd.s32 1, %s24
      %p30 = scmp.ge.s32.totalorder %s29, 1
      %s31 = scalar_select %p30, 0, %s29
      %s32 = sadd.s32 1, %s23
      %s33 = scalar_select %p30, %s32, %s23
      %p34 = scmp.ge.s32.totalorder %s33, 2
      %s35 = scalar_select %p34, 0, %s33
      %s36 = ssub.s32 %s23, %s35
      %p37 = scmp.eq.s32.totalorder %s36, 0
      %s39 = sadd.s32 %s38, 1
      %s40 = scalar_select %p37, %s38, %s39
      %p43 = pneg %p37
      %p44 = scmp.eq.s32.totalorder %s16, 1
      %p45 = por %p43, %p44
      %p46 = scmp.ne.s32.totalorder %s38, %s41
      %p47 = scmp.eq.s32.totalorder %s16, 0
      %p48 = por %p46, %p47
      %p49 = scmp.ne.s32.totalorder %s38, %s41
      %p50 = scmp.eq.s32.totalorder %s21, 1
      %p51 = por %p49, %p50
      %p52 = scmp.ne.s32.totalorder %s41, %s42
      %p53 = scmp.eq.s32.totalorder %s21, 0
      %p54 = por %p52, %p53
      %p55 = scmp.ne.s32.totalorder %s41, %s42
      %p56 = scmp.eq.s32.totalorder %s22, 1
      %p57 = por %p55, %p56
      %p59 = scmp.ne.s32.totalorder %s42, %s58
      %p60 = scmp.eq.s32.totalorder %s22, 0
      %p61 = por %p59, %p60
      %s62 = ssub.s32 %s24, %s31
      %p63 = scmp.eq.s32.totalorder %s62, 0
      %s65 = sadd.s32 %s64, 1
      %s66 = scalar_select %p63, %s64, %s65
      %p69 = pneg %p63
      %p70 = scmp.eq.s32.totalorder %s16, 1
      %p71 = por %p69, %p70
      %p72 = scmp.ne.s32.totalorder %s64, %s67
      %p73 = scmp.eq.s32.totalorder %s16, 0
      %p74 = por %p72, %p73
      %p75 = scmp.ne.s32.totalorder %s64, %s67
      %p76 = scmp.eq.s32.totalorder %s21, 1
      %p77 = por %p75, %p76
      %p78 = scmp.ne.s32.totalorder %s67, %s68
      %p79 = scmp.eq.s32.totalorder %s21, 0
      %p80 = por %p78, %p79
      %p81 = scmp.ne.s32.totalorder %s67, %s68
      %p82 = scmp.eq.s32.totalorder %s22, 1
      %p83 = por %p81, %p82
      %p85 = scmp.ne.s32.totalorder %s68, %s84
      %p86 = scmp.eq.s32.totalorder %s22, 0
      %p87 = por %p85, %p86
      %s88 = ssub.s32 %s24, %s31
      %p89 = scmp.eq.s32.totalorder %s88, 0
      %s91 = sadd.s32 %s90, 1
      %s92 = scalar_select %p89, %s90, %s91
      %p95 = pneg %p89
      %p96 = scmp.eq.s32.totalorder %s16, 1
      %p97 = por %p95, %p96
      %p98 = scmp.ne.s32.totalorder %s90, %s93
      %p99 = scmp.eq.s32.totalorder %s16, 0
      %p100 = por %p98, %p99
      %p101 = scmp.ne.s32.totalorder %s90, %s93
      %p102 = scmp.eq.s32.totalorder %s21, 1
      %p103 = por %p101, %p102
      %p104 = scmp.ne.s32.totalorder %s93, %s94
      %p105 = scmp.eq.s32.totalorder %s21, 0
      %p106 = por %p104, %p105
      %p107 = scmp.ne.s32.totalorder %s93, %s94
      %p108 = scmp.eq.s32.totalorder %s22, 1
      %p109 = por %p107, %p108
      %p111 = scmp.ne.s32.totalorder %s94, %s110
      %p112 = scmp.eq.s32.totalorder %s22, 0
      %p113 = por %p111, %p112
      %s114 = ssub.s32 %s24, %s31
      %p115 = scmp.eq.s32.totalorder %s114, 0
      %s117 = sadd.s32 %s116, 1
      %s118 = scalar_select %p115, %s116, %s117
      %p121 = pneg %p115
      %p122 = scmp.eq.s32.totalorder %s16, 1
      %p123 = por %p121, %p122
      %p124 = scmp.ne.s32.totalorder %s116, %s119
      %p125 = scmp.eq.s32.totalorder %s16, 0
      %p126 = por %p124, %p125
      %p127 = scmp.ne.s32.totalorder %s116, %s119
      %p128 = scmp.eq.s32.totalorder %s21, 1
      %p129 = por %p127, %p128
      %p130 = scmp.ne.s32.totalorder %s119, %s120
      %p131 = scmp.eq.s32.totalorder %s21, 0
      %p132 = por %p130, %p131
      %p133 = scmp.ne.s32.totalorder %s119, %s120
      %p134 = scmp.eq.s32.totalorder %s22, 1
      %p135 = por %p133, %p134
      %p137 = scmp.ne.s32.totalorder %s120, %s136
      %p138 = scmp.eq.s32.totalorder %s22, 0
      %p139 = por %p137, %p138
      %s141 = sadd.s32 %s140, 1
      %p144 = scmp.eq.s32.totalorder %s16, 1
      %p145 = scmp.ne.s32.totalorder %s140, %s142
      %p146 = scmp.eq.s32.totalorder %s16, 0
      %p147 = por %p145, %p146
      %p148 = scmp.ne.s32.totalorder %s140, %s142
      %p149 = scmp.eq.s32.totalorder %s21, 1
      %p150 = por %p148, %p149
      %p151 = scmp.ne.s32.totalorder %s142, %s143
      %p152 = scmp.eq.s32.totalorder %s21, 0
      %p153 = por %p151, %p152
      %p154 = scmp.ne.s32.totalorder %s142, %s143
      %p155 = scmp.eq.s32.totalorder %s22, 1
      %p156 = por %p154, %p155
      %p158 = scmp.ne.s32.totalorder %s143, %s157
      %p159 = scmp.eq.s32.totalorder %s22, 0
      %p160 = por %p158, %p159
      %s162 = sadd.s32 %s161, 1
      %p165 = scmp.eq.s32.totalorder %s16, 1
      %p166 = scmp.ne.s32.totalorder %s161, %s163
      %p167 = scmp.eq.s32.totalorder %s16, 0
      %p168 = por %p166, %p167
      %p169 = scmp.ne.s32.totalorder %s161, %s163
      %p170 = scmp.eq.s32.totalorder %s21, 1
      %p171 = por %p169, %p170
      %p172 = scmp.ne.s32.totalorder %s163, %s164
      %p173 = scmp.eq.s32.totalorder %s21, 0
      %p174 = por %p172, %p173
      %p175 = scmp.ne.s32.totalorder %s163, %s164
      %p176 = scmp.eq.s32.totalorder %s22, 1
      %p177 = por %p175, %p176
      %p179 = scmp.ne.s32.totalorder %s164, %s178
      %p180 = scmp.eq.s32.totalorder %s22, 0
      %p181 = por %p179, %p180
      %s183 = sadd.s32 %s182, 1
      %p186 = scmp.eq.s32.totalorder %s16, 1
      %p187 = scmp.ne.s32.totalorder %s182, %s184
      %p188 = scmp.eq.s32.totalorder %s16, 0
      %p189 = por %p187, %p188
      %p190 = scmp.ne.s32.totalorder %s182, %s184
      %p191 = scmp.eq.s32.totalorder %s21, 1
      %p192 = por %p190, %p191
      %p193 = scmp.ne.s32.totalorder %s184, %s185
      %p194 = scmp.eq.s32.totalorder %s21, 0
      %p195 = por %p193, %p194
      %p196 = scmp.ne.s32.totalorder %s184, %s185
      %p197 = scmp.eq.s32.totalorder %s22, 1
      %p198 = por %p196, %p197
      %p200 = scmp.ne.s32.totalorder %s185, %s199
      %p201 = scmp.eq.s32.totalorder %s22, 0
      %p202 = por %p200, %p201
      %s203 = ssub.s32 %s23, %s35
      %p204 = scmp.eq.s32.totalorder %s203, 0
      %s206 = sadd.s32 %s205, 1
      %s207 = scalar_select %p204, %s205, %s206
      %p210 = pneg %p204
      %p211 = scmp.eq.s32.totalorder %s16, 1
      %p212 = por %p210, %p211
      %p213 = scmp.ne.s32.totalorder %s205, %s208
      %p214 = scmp.eq.s32.totalorder %s16, 0
      %p215 = por %p213, %p214
      %p216 = scmp.ne.s32.totalorder %s205, %s208
      %p217 = scmp.eq.s32.totalorder %s21, 1
      %p218 = por %p216, %p217
      %p219 = scmp.ne.s32.totalorder %s208, %s209
      %p220 = scmp.eq.s32.totalorder %s21, 0
      %p221 = por %p219, %p220
      %p222 = scmp.ne.s32.totalorder %s208, %s209
      %p223 = scmp.eq.s32.totalorder %s22, 1
      %p224 = por %p222, %p223
      %p226 = scmp.ne.s32.totalorder %s209, %s225
      %p227 = scmp.eq.s32.totalorder %s22, 0
      %p228 = por %p226, %p227
      %p229 = scmp.le.s32.totalorder 1, %s16
      %p230 = scmp.lt.s32.totalorder %s16, 3
      %p231 = pnand %p229, %p230
      %p232 = pneg %p231
      // Predicated region
      $region9: #{block_forward.3} parent=5 // pred_check
        _
      $region10: #{block_forward.3} parent=5 // pred_check_branch
        %234 = sbr.rel (%p231) target = $region12
      $region11: #{block_forward.3} parent=5 // pred_region
        %s235 = ssub.s32 %s16, 1
        // Predicated region
        $region13: #{block_forward.3} parent=11 // pred_check
          %p236 = pneg %p80
        $region14: #{block_forward.3} parent=11 // pred_check_branch
          %238 = sbr.rel (%p236) target = $region16
        $region15: #{block_forward.3} parent=11 // pred_region
          %s239 = smul.u32 2, %s26
          %p240 = scmp.lt.s32.totalorder %s239, 1
          %s241 = scalar_select %p240, %s239, 1
          %s242 = smul.addr %s241, 4
          %s243 = scalar_lea.vmem %s1, %s242
          %s244 = smul.u32 2, %s26
        $region16: #{block_forward.3} parent=11 // pred_fallthru
          _
        // Predicated region
        $region17: #{block_forward.3} parent=11 // pred_check
          %p245 = pneg %p106
        $region18: #{block_forward.3} parent=11 // pred_check_branch
          %247 = sbr.rel (%p245) target = $region20
        $region19: #{block_forward.3} parent=11 // pred_region
          %s248 = smul.u32 2, %s26
          %p249 = scmp.lt.s32.totalorder %s248, 1
          %s250 = scalar_select %p249, %s248, 1
          %s251 = scalar_lea.vmem %s2, %s250
          %s252 = smul.u32 2, %s26
        $region20: #{block_forward.3} parent=11 // pred_fallthru
          _
        // Predicated region
        $region21: #{block_forward.3} parent=11 // pred_check
          %p253 = pneg %p132
        $region22: #{block_forward.3} parent=11 // pred_check_branch
          %255 = sbr.rel (%p253) target = $region24
        $region23: #{block_forward.3} parent=11 // pred_region
          %s256 = smul.u32 32, %s26
          %p257 = scmp.lt.s32.totalorder %s256, 31
          %s258 = scalar_select %p257, %s256, 31
          %s259 = smul.addr %s258, 4
          %s260 = scalar_lea.vmem %s3, %s259
          %s261 = smul.u32 32, %s26
        $region24: #{block_forward.3} parent=11 // pred_fallthru
          _
        // Predicated region
        $region25: #{block_forward.3} parent=11 // pred_check
          %p262 = pneg %p153
        $region26: #{block_forward.3} parent=11 // pred_check_branch
          %264 = sbr.rel (%p262) target = $region28
        $region27: #{block_forward.3} parent=11 // pred_region
          _
        $region28: #{block_forward.3} parent=11 // pred_fallthru
          _
        // Predicated region
        $region29: #{block_forward.3} parent=11 // pred_check
          %p265 = pneg %p174
        $region30: #{block_forward.3} parent=11 // pred_check_branch
          %267 = sbr.rel (%p265) target = $region32
        $region31: #{block_forward.3} parent=11 // pred_region
          _
        $region32: #{block_forward.3} parent=11 // pred_fallthru
          _
        // Predicated region
        $region33: #{block_forward.3} parent=11 // pred_check
          %p268 = pneg %p195
        $region34: #{block_forward.3} parent=11 // pred_check_branch
          %270 = sbr.rel (%p268) target = $region36
        $region35: #{block_forward.3} parent=11 // pred_region
          _
        $region36: #{block_forward.3} parent=11 // pred_fallthru
          _
      $region12: #{block_forward.3} parent=5 // pred_fallthru
        _
      %p271 = scmp.lt.s32.totalorder %s16, 2
      // Predicated region
      $region37: #{block_forward.3} parent=5 // pred_check
        %p272 = pneg %p271
      $region38: #{block_forward.3} parent=5 // pred_check_branch
        %274 = sbr.rel (%p272) target = $region40
      $region39: #{block_forward.3} parent=5 // pred_region
        // Predicated region
        $region41: #{block_forward.3} parent=39 // pred_check
          %p275 = pneg %p48
        $region42: #{block_forward.3} parent=39 // pred_check_branch
          %277 = sbr.rel (%p275) target = $region44
        $region43: #{block_forward.3} parent=39 // pred_region
          %s278 = smul.u32 2, %s23
          %p279 = scmp.lt.s32.totalorder %s278, 3
          %s280 = scalar_select %p279, %s278, 3
          %s281 = smul.addr %s280, 8
          %s282 = scalar_lea.vmem %s0, %s281
          %s283 = smul.u32 2, %s23
        $region44: #{block_forward.3} parent=39 // pred_fallthru
          _
      $region40: #{block_forward.3} parent=5 // pred_fallthru
        _
      %p284 = scmp.le.s32.totalorder 1, %s16
      %p285 = scmp.lt.s32.totalorder %s16, 3
      %p286 = pnand %p284, %p285
      %p287 = pneg %p286
      // Predicated region
      $region45: #{block_forward.3} parent=5 // pred_check
        _
      $region46: #{block_forward.3} parent=5 // pred_check_branch
        %289 = sbr.rel (%p286) target = $region48
      $region47: #{block_forward.3} parent=5 // pred_region
        %s290 = ssub.s32 %s16, 1
        %s291 = smul.u32 2, %s25
        %p292 = scmp.lt.s32.totalorder %s291, 3
        %s293 = scalar_select %p292, %s291, 3
        %s294 = smul.addr %s293, 8
        %s295 = scalar_lea.vmem %s0, %s294
        %p296 = pneg %p54
        %p297 = pneg %p51
        %s298 = smul.u32 2, %s26
        %p299 = scmp.lt.s32.totalorder %s298, 1
        %s300 = scalar_select %p299, %s298, 1
        %s301 = smul.addr %s300, 4
        %s302 = scalar_lea.vmem %s1, %s301
        %p303 = pneg %p80
        %p304 = pneg %p77
        %s305 = smul.u32 2, %s26
        %p306 = scmp.lt.s32.totalorder %s305, 1
        %s307 = scalar_select %p306, %s305, 1
        %s308 = scalar_lea.vmem %s2, %s307
        %p309 = pneg %p106
        %p310 = pneg %p103
        %s311 = smul.u32 32, %s26
        %p312 = scmp.lt.s32.totalorder %s311, 31
        %s313 = scalar_select %p312, %s311, 31
        %s314 = smul.addr %s313, 4
        %s315 = scalar_lea.vmem %s3, %s314
        %p316 = pneg %p132
        %p317 = pneg %p129
        %p318 = pneg %p153
        %p319 = pneg %p150
        %p320 = pneg %p174
        %p321 = pneg %p171
        %p322 = pneg %p195
        %p323 = pneg %p192
        %p324 = pneg %p221
        %p325 = pneg %p218
        %s326 = sand.u32 %s208, 1
        %s327 = scalar_lea.sflag [#allocation4], %s326
        %s328 = sand.u32 %s208, 1
        %s329 = smul.addr %s328, 16
        %s330 = scalar_lea.vmem [#allocation3], %s329
        %s331 = smul.u32 2, %s25
        %p332 = scmp.lt.s32.totalorder %s331, 3
        %s333 = scalar_select %p332, %s331, 3
        %s334 = smul.addr %s333, 8
        %s335 = scalar_lea.vmem %s0, %s334
        %s336 = smul.u32 2, %s25
        %s337 = smul.u32 2, %s26
        %p338 = scmp.lt.s32.totalorder %s337, 1
        %s339 = scalar_select %p338, %s337, 1
        %s340 = smul.addr %s339, 4
        %s341 = scalar_lea.vmem %s1, %s340
        %s342 = smul.u32 2, %s26
        %s343 = smul.u32 2, %s26
        %p344 = scmp.lt.s32.totalorder %s343, 1
        %s345 = scalar_select %p344, %s343, 1
        %s346 = scalar_lea.vmem %s2, %s345
        %s347 = smul.u32 2, %s26
        %s348 = smul.u32 32, %s26
        %p349 = scmp.lt.s32.totalorder %s348, 31
        %s350 = scalar_select %p349, %s348, 31
        %s351 = smul.addr %s350, 4
        %s352 = scalar_lea.vmem %s3, %s351
        %s353 = smul.u32 32, %s26
        %s354 = smul.u32 2, %s25
        %p356 = scmp.eq.s32.totalorder %s26, 0
        // Predicated region
        $region49: #{block_forward.3} parent=47 // pred_check
          %p357 = pneg %p356
        $region50: #{block_forward.3} parent=47 // pred_check_branch
          %359 = sbr.rel (%p357) target = $region52
        $region51: #{block_forward.3} parent=47 // pred_region
          %vm360 = vcmask 523264
          %361 = vst.msk [vmem:[#allocation2] sm:$0xff] %vm360, 0.0
          %362 = vst.msk [vmem:[#allocation2 + $0x8] sm:$0xff] %vm360, 0.0
        $region52: #{block_forward.3} parent=47 // pred_fallthru
          _
        %v363 = vld [vmem:[%s335] sm:$0xff]
        %v364 = vld [vmem:[%s335 + $0x8] sm:$0xff]
        %v365 = vpack.c.bf16 %v364, %v363
        %v366 = vld [vmem:[%s341] sm:$0xff]
        %v367 = vld [vmem:[%s341 + $0x8] sm:$0xff]
        %v368 = vld [vmem:[%s341 + $0x10] sm:$0xff]
        %v369 = vld [vmem:[%s341 + $0x18] sm:$0xff]
        %v370 = vld [vmem:[%s341 + $0x20] sm:$0xff]
        %v371 = vld [vmem:[%s341 + $0x28] sm:$0xff]
        %v372 = vld [vmem:[%s341 + $0x30] sm:$0xff]
        %v373 = vld [vmem:[%s341 + $0x38] sm:$0xff]
        %v374 = vld [vmem:[%s346] sm:$0x3]
        %v376 = vlaneseq
        %v377 = vshrl.u32 %v376, 7
        %v378 = vsub.s32 0, %v377
        %v379 = vrot.slane %v374, %v378
        %v380 = vlaneseq
        %v381 = vshrl.u32 %v380, 7
        %v382 = vsub.s32 1, %v381
        %v383 = vrot.slane %v374, %v382
        %v394 = vunpack.c.l.b16 %v366
        %v395 = vunpack.c.h.b16 %v366
        %v396 = vunpack.c.l.b16 %v367
        %v397 = vunpack.c.h.b16 %v367
        %v398 = vunpack.c.l.b16 %v368
        %v399 = vunpack.c.h.b16 %v368
        %v400 = vunpack.c.l.b16 %v369
        %v401 = vunpack.c.h.b16 %v369
        %v402 = vunpack.c.l.b16 %v370
        %v403 = vunpack.c.h.b16 %v370
        %v404 = vunpack.c.l.b16 %v371
        %v405 = vunpack.c.h.b16 %v371
        %v406 = vunpack.c.l.b16 %v372
        %v407 = vunpack.c.h.b16 %v372
        %v408 = vunpack.c.l.b16 %v373
        %v409 = vunpack.c.h.b16 %v373
        %v410 = vpack.c.b16 %v396, %v394
        %v411 = vpack.c.b16 %v397, %v395
        %v412 = vpack.c.b16 %v400, %v398
        %v413 = vpack.c.b16 %v401, %v399
        %v414 = vpack.c.b16 %v404, %v402
        %v415 = vpack.c.b16 %v405, %v403
        %v416 = vpack.c.b16 %v408, %v406
        %v417 = vpack.c.b16 %v409, %v407
        %vm426 = vcmask 523264
        %v428 = vsel %vm426, %v365, 0
        %430 = vmatprep.subr.bf16.mxu0 %v411
        %431 = vmatpush1.bf16.msra.mxu0 %v410
        %432 = vmatprep.subr.bf16.mxu0 %v413
        %433 = vmatpush1.bf16.msra.mxu0 %v412
        %434 = vmatprep.subr.bf16.mxu0 %v415
        %435 = vmatpush1.bf16.msra.mxu0 %v414
        %436 = vmatprep.subr.bf16.mxu0 %v417
        %437 = vmatpush1.bf16.msra.mxu0 %v416
        %438 = vmatprep.subr.bf16.mxu0 0
        %439 = vmatpush1.bf16.msra.mxu0 0
        %440 = vmatprep.subr.bf16.mxu0 0
        %441 = vmatpush1.bf16.msra.mxu0 0
        %442 = vmatprep.subr.bf16.mxu0 0
        %443 = vmatpush1.bf16.msra.mxu0 0
        %444 = vmatprep.subr.bf16.mxu0 0
        %445 = vmatpush1.bf16.msra.mxu0 0
        %446 = vmatprep.subr.bf16.mxu0 0
        %447 = vmatpush1.bf16.msra.mxu0 0
        %448 = vmatprep.subr.bf16.mxu0 0
        %449 = vmatpush1.bf16.msra.mxu0 0
        %450 = vmatprep.subr.bf16.mxu0 0
        %451 = vmatpush1.bf16.msra.mxu0 0
        %452 = vmatprep.subr.bf16.mxu0 0
        %453 = vmatpush1.bf16.msra.mxu0 0
        %454 = vmatprep.subr.bf16.mxu0 0
        %455 = vmatpush1.bf16.msra.mxu0 0
        %456 = vmatprep.subr.bf16.mxu0 0
        %457 = vmatpush1.bf16.msra.mxu0 0
        %458 = vmatprep.subr.bf16.mxu0 0
        %459 = vmatpush1.bf16.msra.mxu0 0
        %460 = vmatprep.subr.bf16.mxu0 0
        %461 = vmatpush1.bf16.msra.mxu0 0
        %462 = vmatprep.mubr.bf16.mxu0 0
        %463 = vmatmul.mubr.bf16.gmra.mrb[0].mxu0 %v428
        %v464 = vpop.f32.mrb[0].mxu0
        %v465 = vadd.f32 %v379, %v464
        %v466 = vpop.f32.mrb[0].mxu0
        %v467 = vadd.f32 %v383, %v466
        %v468 = vpop.f32.mrb[0].mxu0
        %v469 = vadd.f32 %v379, %v468
        %v470 = vpop.f32.mrb[0].mxu0
        %v471 = vadd.f32 %v383, %v470
        %472 = vdwg.mxu0
        %v473 = vmax.f32 %v465, 0.0
        %v474 = vmax.f32 %v467, 0.0
        %v475 = vmax.f32 %v469, 0.0
        %v476 = vmax.f32 %v471, 0.0
        %v477 = vld [vmem:[#allocation2] sm:$0xff]
        %v478 = vld [vmem:[#allocation2 + $0x8] sm:$0xff]
        %v479 = vpack.c.bf16 %v475, %v473
        %v480 = vpack.c.bf16 %v476, %v474
        %v481 = vld [vmem:[%s352] sm:$0xf]
        %v482 = vld [vmem:[%s352 + $0x4] sm:$0xf]
        %v483 = vld [vmem:[%s352 + $0x8] sm:$0xf]
        %v484 = vld [vmem:[%s352 + $0xc] sm:$0xf]
        %v485 = vld [vmem:[%s352 + $0x10] sm:$0xf]
        %v486 = vld [vmem:[%s352 + $0x14] sm:$0xf]
        %v487 = vld [vmem:[%s352 + $0x18] sm:$0xf]
        %v488 = vld [vmem:[%s352 + $0x1c] sm:$0xf]
        %v489 = vld [vmem:[%s352 + $0x20] sm:$0xf]
        %v490 = vld [vmem:[%s352 + $0x24] sm:$0xf]
        %v491 = vld [vmem:[%s352 + $0x28] sm:$0xf]
        %v492 = vld [vmem:[%s352 + $0x2c] sm:$0xf]
        %v493 = vld [vmem:[%s352 + $0x30] sm:$0xf]
        %v494 = vld [vmem:[%s352 + $0x34] sm:$0xf]
        %v495 = vld [vmem:[%s352 + $0x38] sm:$0xf]
        %v496 = vld [vmem:[%s352 + $0x3c] sm:$0xf]
        %v497 = vld [vmem:[%s352 + $0x40] sm:$0xf]
        %v498 = vld [vmem:[%s352 + $0x44] sm:$0xf]
        %v499 = vld [vmem:[%s352 + $0x48] sm:$0xf]
        %v500 = vld [vmem:[%s352 + $0x4c] sm:$0xf]
        %v501 = vld [vmem:[%s352 + $0x50] sm:$0xf]
        %v502 = vld [vmem:[%s352 + $0x54] sm:$0xf]
        %v503 = vld [vmem:[%s352 + $0x58] sm:$0xf]
        %v504 = vld [vmem:[%s352 + $0x5c] sm:$0xf]
        %v505 = vld [vmem:[%s352 + $0x60] sm:$0xf]
        %v506 = vld [vmem:[%s352 + $0x64] sm:$0xf]
        %v507 = vld [vmem:[%s352 + $0x68] sm:$0xf]
        %v508 = vld [vmem:[%s352 + $0x6c] sm:$0xf]
        %v509 = vld [vmem:[%s352 + $0x70] sm:$0xf]
        %v510 = vld [vmem:[%s352 + $0x74] sm:$0xf]
        %v511 = vld [vmem:[%s352 + $0x78] sm:$0xf]
        %v512 = vld [vmem:[%s352 + $0x7c] sm:$0xf]
        %v545 = vunpack.c.l.b16 %v481
        %v546 = vunpack.c.l.b16 %v482
        %v547 = vunpack.c.l.b16 %v483
        %v548 = vunpack.c.l.b16 %v484
        %v549 = vunpack.c.l.b16 %v485
        %v550 = vunpack.c.l.b16 %v486
        %v551 = vunpack.c.l.b16 %v487
        %v552 = vunpack.c.l.b16 %v488
        %v553 = vunpack.c.l.b16 %v489
        %v554 = vunpack.c.l.b16 %v490
        %v555 = vunpack.c.l.b16 %v491
        %v556 = vunpack.c.l.b16 %v492
        %v557 = vunpack.c.l.b16 %v493
        %v558 = vunpack.c.l.b16 %v494
        %v559 = vunpack.c.l.b16 %v495
        %v560 = vunpack.c.l.b16 %v496
        %v561 = vunpack.c.l.b16 %v497
        %v562 = vunpack.c.l.b16 %v498
        %v563 = vunpack.c.l.b16 %v499
        %v564 = vunpack.c.l.b16 %v500
        %v565 = vunpack.c.l.b16 %v501
        %v566 = vunpack.c.l.b16 %v502
        %v567 = vunpack.c.l.b16 %v503
        %v568 = vunpack.c.l.b16 %v504
        %v569 = vunpack.c.l.b16 %v505
        %v570 = vunpack.c.l.b16 %v506
        %v571 = vunpack.c.l.b16 %v507
        %v572 = vunpack.c.l.b16 %v508
        %v573 = vunpack.c.l.b16 %v509
        %v574 = vunpack.c.l.b16 %v510
        %v575 = vunpack.c.l.b16 %v511
        %v576 = vunpack.c.l.b16 %v512
        %v577 = vpack.c.b16 %v546, %v545
        %v578 = vpack.c.b16 %v548, %v547
        %v579 = vpack.c.b16 %v550, %v549
        %v580 = vpack.c.b16 %v552, %v551
        %v581 = vpack.c.b16 %v554, %v553
        %v582 = vpack.c.b16 %v556, %v555
        %v583 = vpack.c.b16 %v558, %v557
        %v584 = vpack.c.b16 %v560, %v559
        %v585 = vpack.c.b16 %v562, %v561
        %v586 = vpack.c.b16 %v564, %v563
        %v587 = vpack.c.b16 %v566, %v565
        %v588 = vpack.c.b16 %v568, %v567
        %v589 = vpack.c.b16 %v570, %v569
        %v590 = vpack.c.b16 %v572, %v571
        %v591 = vpack.c.b16 %v574, %v573
        %v592 = vpack.c.b16 %v576, %v575
        %609 = vmatprep.subr.bf16.mxu0 0
        %610 = vmatpush1.bf16.msra.mxu0 %v577
        %611 = vmatprep.subr.bf16.mxu0 0
        %612 = vmatpush1.bf16.msra.mxu0 %v578
        %613 = vmatprep.subr.bf16.mxu0 0
        %614 = vmatpush1.bf16.msra.mxu0 %v579
        %615 = vmatprep.subr.bf16.mxu0 0
        %616 = vmatpush1.bf16.msra.mxu0 %v580
        %617 = vmatprep.subr.bf16.mxu0 0
        %618 = vmatpush1.bf16.msra.mxu0 %v581
        %619 = vmatprep.subr.bf16.mxu0 0
        %620 = vmatpush1.bf16.msra.mxu0 %v582
        %621 = vmatprep.subr.bf16.mxu0 0
        %622 = vmatpush1.bf16.msra.mxu0 %v583
        %623 = vmatprep.subr.bf16.mxu0 0
        %624 = vmatpush1.bf16.msra.mxu0 %v584
        %625 = vmatprep.subr.bf16.mxu0 0
        %626 = vmatpush1.bf16.msra.mxu0 %v585
        %627 = vmatprep.subr.bf16.mxu0 0
        %628 = vmatpush1.bf16.msra.mxu0 %v586
        %629 = vmatprep.subr.bf16.mxu0 0
        %630 = vmatpush1.bf16.msra.mxu0 %v587
        %631 = vmatprep.subr.bf16.mxu0 0
        %632 = vmatpush1.bf16.msra.mxu0 %v588
        %633 = vmatprep.subr.bf16.mxu0 0
        %634 = vmatpush1.bf16.msra.mxu0 %v589
        %635 = vmatprep.subr.bf16.mxu0 0
        %636 = vmatpush1.bf16.msra.mxu0 %v590
        %637 = vmatprep.subr.bf16.mxu0 0
        %638 = vmatpush1.bf16.msra.mxu0 %v591
        %639 = vmatprep.subr.bf16.mxu0 0
        %640 = vmatpush1.bf16.msra.mxu0 %v592
        %641 = vmatprep.mubr.bf16.mxu0 %v480
        %642 = vmatmul.mubr.bf16.gmra.mrb[0].mxu0 %v479
        %v643 = vpop.f32.mrb[0].mxu0
        %v644 = vadd.f32 0.0, %v643
        %v645 = vpop.f32.mrb[0].mxu0
        %v646 = vpop.f32.mrb[0].mxu0
        %v647 = vadd.f32 0.0, %v646
        %v648 = vpop.f32.mrb[0].mxu0
        %649 = vdwg.mxu0
        %v650 = vadd.f32 %v477, %v644
        %v651 = vadd.f32 %v478, %v647
        %652 = vst.msk [vmem:[#allocation2] sm:$0xff] %vm426, %v650
        %653 = vst.msk [vmem:[#allocation2 + $0x8] sm:$0xff] %vm426, %v651
        // Predicated region
        $region53: #{block_forward.3} parent=47 // pred_check
          %p654 = pneg %p356
        $region54: #{block_forward.3} parent=47 // pred_check_branch
          %656 = sbr.rel (%p654) target = $region56
        $region55: #{block_forward.3} parent=47 // pred_region
          %v657 = vld [vmem:[#allocation2] sm:$0xff]
          %v658 = vld [vmem:[#allocation2 + $0x8] sm:$0xff]
          %v659 = vadd.f32 %v363, %v657
          %v660 = vadd.f32 %v364, %v658
          %v661 = vld [vmem:[%s4] sm:$0x1]
          %v663 = vlaneseq
          %v664 = vshrl.u32 %v663, 7
          %v665 = vsub.s32 0, %v664
          %v666 = vrot.slane %v661, %v665
          %v668 = vadd.f32 %v659, %v666
          %v669 = vadd.f32 %v660, %v666
          %v670 = vsel %vm426, %v668, 0.0
          %671 = vadd.xlane.f32.xlu0 %v670
          %v672 = vpop.xlane.xlu0 %671
          %v673 = vsel %vm426, %v669, 0.0
          %674 = vadd.xlane.f32.xlu0 %v673
          %v675 = vpop.xlane.xlu0 %674
          %v676 = vrcp.pop 64.0
          %v677 = vmul.f32 %v672, %v676
          %v678 = vmul.f32 %v675, %v676
          %v679 = vsub.f32 %v668, %v677
          %v680 = vsub.f32 %v669, %v678
          %v681 = vmul.f32 %v679, %v679
          %v682 = vmul.f32 %v680, %v680
          %v683 = vsel %vm426, %v681, 0.0
          %684 = vadd.xlane.f32.xlu0 %v683
          %v685 = vpop.xlane.xlu0 %684
          %v686 = vsel %vm426, %v682, 0.0
          %687 = vadd.xlane.f32.xlu0 %v686
          %v688 = vpop.xlane.xlu0 %687
          %v689 = vmul.f32 %v685, %v676
          %v690 = vmul.f32 %v688, %v676
          %v691 = vadd.f32 %v689, 1e-05
          %v692 = vadd.f32 %v690, 1e-05
          %v693 = vrsqrt.pop %v691
          %v694 = vrsqrt.pop %v692
          %v695 = vmul.f32 %v679, %v693
          %v696 = vmul.f32 %v680, %v694
          %v697 = vld [vmem:[%s5] sm:$0x1]
          %v699 = vlaneseq
          %v700 = vshrl.u32 %v699, 7
          %v701 = vsub.s32 0, %v700
          %v702 = vrot.slane %v697, %v701
          %v704 = vmul.f32 %v695, %v702
          %v705 = vmul.f32 %v696, %v702
          %v706 = vld [vmem:[%s6] sm:$0x1]
          %v708 = vlaneseq
          %v709 = vshrl.u32 %v708, 7
          %v710 = vsub.s32 0, %v709
          %v711 = vrot.slane %v706, %v710
          %v713 = vadd.f32 %v704, %v711
          %v714 = vadd.f32 %v705, %v711
          %715 = vst.msk [vmem:[%s330] sm:$0xff] %vm426, %v713
          %716 = vst.msk [vmem:[%s330 + $0x8] sm:$0xff] %vm426, %v714
        $region56: #{block_forward.3} parent=47 // pred_fallthru
          _
        %s717 = sand.u32 %s208, 1
        %s718 = scalar_lea.sflag [#allocation4], %s717
        %s719 = sand.u32 %s208, 1
        %s720 = smul.addr %s719, 16
        %s721 = scalar_lea.vmem [#allocation3], %s720
        // Predicated region
        $region57: #{block_forward.3} parent=47 // pred_check
          %p722 = pneg %p218
        $region58: #{block_forward.3} parent=47 // pred_check_branch
          %724 = sbr.rel (%p722) target = $region60
        $region59: #{block_forward.3} parent=47 // pred_region
          %s725 = smul.u32 2, %s25
          %s727 = ssub.s32 256, 256
          %728 = vsyncadd %s718, %s727
          %s729 = smul.addr %s725, 128
          %s730 = scalar_lea.hbm %s7, %s729
          %s731 = sshll.u32 %s721, 4
          %s732 = int_to_ptr.vmem [resolvable:$true] %s731
          %737 = dma.vmem_to_hbm [thread:$0]  %s732, 256, %s730, %s718, 128, 128, 8
        $region60: #{block_forward.3} parent=47 // pred_fallthru
          _
      $region48: #{block_forward.3} parent=5 // pred_fallthru
        _
      %p738 = scmp.le.s32.totalorder 2, %s16
      // Predicated region
      $region61: #{block_forward.3} parent=5 // pred_check
        %p739 = pneg %p738
      $region62: #{block_forward.3} parent=5 // pred_check_branch
        %741 = sbr.rel (%p739) target = $region64
      $region63: #{block_forward.3} parent=5 // pred_region
        %s742 = ssub.s32 %s16, 2
        // Predicated region
        $region65: #{block_forward.3} parent=63 // pred_check
          %p743 = pneg %p224
        $region66: #{block_forward.3} parent=63 // pred_check_branch
          %745 = sbr.rel (%p743) target = $region68
        $region67: #{block_forward.3} parent=63 // pred_region
          %s746 = sand.u32 %s209, 1
          %s747 = scalar_lea.sflag [#allocation4], %s746
          %s748 = sand.u32 %s209, 1
          %s749 = smul.addr %s748, 16
          %s750 = scalar_lea.vmem [#allocation3], %s749
          %751 = dma.done %s747, 256
        $region68: #{block_forward.3} parent=63 // pred_fallthru
          _
      $region64: #{block_forward.3} parent=5 // pred_fallthru
        _
    $region6: #{block_forward.3} parent=1 // loop_footer
      %s20 = sadd.s32 1, %s16
    $region7: #{block_forward.3} parent=1 // loop_footer_branch
      %15 = sbr.rel target = $region3
    $region8: #{block_forward.3} parent=1 // loop_exit
      _
    %752 = vsyncpa [#allocation4], 1
    %s753 = scalar_lea.sflag [#allocation4], 1
    %754 = vsyncpa %s753, 1

// kernel: block_forward.2
$region0: #{block_forward.2}
  #allocation0 [shape = 'u32[]', space=smem, size = 0x4, offset = 0x4, fixed_abs, tag = 'smem constant byte address 0x4 - core index']
  #allocation1 [shape = 'u32[144,128]{1,0:T(1,128)}', space=vmem, size = 0x12000, scoped, tag = 'internal scratch']
  #allocation2 [shape = 'f32[16,64]{1,0:T(8,128)}', space=vmem, size = 0x2000, scoped, tag = 'scratch operand']
  %s0 = inlined_call_operand.vmem [shape: f32[2,16,64], index: 0, kind: input, shape index: {}]
  %s1 = inlined_call_operand.vmem [shape: bf16[64,192], index: 1, kind: input, shape index: {}]
  %s2 = inlined_call_operand.vmem [shape: bf16[64,64], index: 2, kind: input, shape index: {}]
  %s3 = inlined_call_operand.vmem [shape: f32[1,64], index: 3, kind: input, shape index: {}]
  %s4 = inlined_call_operand.vmem [shape: f32[1,64], index: 4, kind: input, shape index: {}]
  %s5 = inlined_call_operand.vmem [shape: f32[1,64], index: 5, kind: input, shape index: {}]
  %s6 = inlined_call_operand.vmem [shape: f32[2,16,64], index: 6, kind: output, shape index: {}]
  %s7 = sld [smem:[#allocation0]]
  $region57: #{block_forward.2} parent=0
    _
  %s9 = ssub.s32 1, %s7
  %s10 = scalar_select 0, %s9, %s7
  loop: start=0, step=1, limit=4
  $region2: #{block_forward.2} parent=0 // loop_pre_header
    _
  $region3: #{block_forward.2} parent=0 // loop_header
    %s12 = sphi 0, %s16
    %p13 = scmp.ge.s32.totalorder %s12, 4
    %s22 = sphi 0, %s24
    %s25 = sphi 0, %s22
    %s26 = sphi 0, %s25
    %s42 = sphi 0, %s26
    %s46 = sphi 0, %s46
    %s48 = sphi 0, %s46
    %s49 = sphi 0, %s48
    %s63 = sphi 0, %s49
    %s67 = sphi 0, %s67
    %s69 = sphi 0, %s67
    %s70 = sphi 0, %s69
    %s84 = sphi 0, %s70
    %s88 = sphi 0, %s88
    %s90 = sphi 0, %s88
    %s91 = sphi 0, %s90
    %s105 = sphi 0, %s91
    %s109 = sphi 0, %s109
    %s111 = sphi 0, %s109
    %s112 = sphi 0, %s111
    %s126 = sphi 0, %s112
    %s130 = sphi 0, %s130
    %s132 = sphi 0, %s130
    %s133 = sphi 0, %s132
    %s147 = sphi 0, %s133
    %s153 = sphi 0, %s155
    %s156 = sphi 0, %s153
    %s157 = sphi 0, %s156
    %s173 = sphi 0, %s157
  $region4: #{block_forward.2} parent=0 // loop_header_branch
    %15 = sbr.rel (%p13) target = $region8
  $region5: #{block_forward.2} parent=0 // loop_body
    %s17 = ssub.s32 %s12, 1
    %s18 = ssub.s32 %s12, 2
    %s19 = sadd.s32 %s12, 1
    %s20 = ssub.s32 %s12, %s19
    %p21 = scmp.eq.s32.totalorder %s20, 0
    %s23 = sadd.s32 %s22, 1
    %s24 = scalar_select %p21, %s22, %s23
    %p27 = pneg %p21
    %p28 = scmp.eq.s32.totalorder %s12, 1
    %p29 = por %p27, %p28
    %p30 = scmp.ne.s32.totalorder %s22, %s25
    %p31 = scmp.eq.s32.totalorder %s12, 0
    %p32 = por %p30, %p31
    %p33 = scmp.ne.s32.totalorder %s22, %s25
    %p34 = scmp.eq.s32.totalorder %s17, 1
    %p35 = por %p33, %p34
    %p36 = scmp.ne.s32.totalorder %s25, %s26
    %p37 = scmp.eq.s32.totalorder %s17, 0
    %p38 = por %p36, %p37
    %p39 = scmp.ne.s32.totalorder %s25, %s26
    %p40 = scmp.eq.s32.totalorder %s18, 1
    %p41 = por %p39, %p40
    %p43 = scmp.ne.s32.totalorder %s26, %s42
    %p44 = scmp.eq.s32.totalorder %s18, 0
    %p45 = por %p43, %p44
    %s47 = sadd.s32 %s46, 1
    %p50 = scmp.eq.s32.totalorder %s12, 1
    %p51 = scmp.ne.s32.totalorder %s46, %s48
    %p52 = scmp.eq.s32.totalorder %s12, 0
    %p53 = por %p51, %p52
    %p54 = scmp.ne.s32.totalorder %s46, %s48
    %p55 = scmp.eq.s32.totalorder %s17, 1
    %p56 = por %p54, %p55
    %p57 = scmp.ne.s32.totalorder %s48, %s49
    %p58 = scmp.eq.s32.totalorder %s17, 0
    %p59 = por %p57, %p58
    %p60 = scmp.ne.s32.totalorder %s48, %s49
    %p61 = scmp.eq.s32.totalorder %s18, 1
    %p62 = por %p60, %p61
    %p64 = scmp.ne.s32.totalorder %s49, %s63
    %p65 = scmp.eq.s32.totalorder %s18, 0
    %p66 = por %p64, %p65
    %s68 = sadd.s32 %s67, 1
    %p71 = scmp.eq.s32.totalorder %s12, 1
    %p72 = scmp.ne.s32.totalorder %s67, %s69
    %p73 = scmp.eq.s32.totalorder %s12, 0
    %p74 = por %p72, %p73
    %p75 = scmp.ne.s32.totalorder %s67, %s69
    %p76 = scmp.eq.s32.totalorder %s17, 1
    %p77 = por %p75, %p76
    %p78 = scmp.ne.s32.totalorder %s69, %s70
    %p79 = scmp.eq.s32.totalorder %s17, 0
    %p80 = por %p78, %p79
    %p81 = scmp.ne.s32.totalorder %s69, %s70
    %p82 = scmp.eq.s32.totalorder %s18, 1
    %p83 = por %p81, %p82
    %p85 = scmp.ne.s32.totalorder %s70, %s84
    %p86 = scmp.eq.s32.totalorder %s18, 0
    %p87 = por %p85, %p86
    %s89 = sadd.s32 %s88, 1
    %p92 = scmp.eq.s32.totalorder %s12, 1
    %p93 = scmp.ne.s32.totalorder %s88, %s90
    %p94 = scmp.eq.s32.totalorder %s12, 0
    %p95 = por %p93, %p94
    %p96 = scmp.ne.s32.totalorder %s88, %s90
    %p97 = scmp.eq.s32.totalorder %s17, 1
    %p98 = por %p96, %p97
    %p99 = scmp.ne.s32.totalorder %s90, %s91
    %p100 = scmp.eq.s32.totalorder %s17, 0
    %p101 = por %p99, %p100
    %p102 = scmp.ne.s32.totalorder %s90, %s91
    %p103 = scmp.eq.s32.totalorder %s18, 1
    %p104 = por %p102, %p103
    %p106 = scmp.ne.s32.totalorder %s91, %s105
    %p107 = scmp.eq.s32.totalorder %s18, 0
    %p108 = por %p106, %p107
    %s110 = sadd.s32 %s109, 1
    %p113 = scmp.eq.s32.totalorder %s12, 1
    %p114 = scmp.ne.s32.totalorder %s109, %s111
    %p115 = scmp.eq.s32.totalorder %s12, 0
    %p116 = por %p114, %p115
    %p117 = scmp.ne.s32.totalorder %s109, %s111
    %p118 = scmp.eq.s32.totalorder %s17, 1
    %p119 = por %p117, %p118
    %p120 = scmp.ne.s32.totalorder %s111, %s112
    %p121 = scmp.eq.s32.totalorder %s17, 0
    %p122 = por %p120, %p121
    %p123 = scmp.ne.s32.totalorder %s111, %s112
    %p124 = scmp.eq.s32.totalorder %s18, 1
    %p125 = por %p123, %p124
    %p127 = scmp.ne.s32.totalorder %s112, %s126
    %p128 = scmp.eq.s32.totalorder %s18, 0
    %p129 = por %p127, %p128
    %s131 = sadd.s32 %s130, 1
    %p134 = scmp.eq.s32.totalorder %s12, 1
    %p135 = scmp.ne.s32.totalorder %s130, %s132
    %p136 = scmp.eq.s32.totalorder %s12, 0
    %p137 = por %p135, %p136
    %p138 = scmp.ne.s32.totalorder %s130, %s132
    %p139 = scmp.eq.s32.totalorder %s17, 1
    %p140 = por %p138, %p139
    %p141 = scmp.ne.s32.totalorder %s132, %s133
    %p142 = scmp.eq.s32.totalorder %s17, 0
    %p143 = por %p141, %p142
    %p144 = scmp.ne.s32.totalorder %s132, %s133
    %p145 = scmp.eq.s32.totalorder %s18, 1
    %p146 = por %p144, %p145
    %p148 = scmp.ne.s32.totalorder %s133, %s147
    %p149 = scmp.eq.s32.totalorder %s18, 0
    %p150 = por %p148, %p149
    %s151 = ssub.s32 %s12, %s19
    %p152 = scmp.eq.s32.totalorder %s151, 0
    %s154 = sadd.s32 %s153, 1
    %s155 = scalar_select %p152, %s153, %s154
    %p158 = pneg %p152
    %p159 = scmp.eq.s32.totalorder %s12, 1
    %p160 = por %p158, %p159
    %p161 = scmp.ne.s32.totalorder %s153, %s156
    %p162 = scmp.eq.s32.totalorder %s12, 0
    %p163 = por %p161, %p162
    %p164 = scmp.ne.s32.totalorder %s153, %s156
    %p165 = scmp.eq.s32.totalorder %s17, 1
    %p166 = por %p164, %p165
    %p167 = scmp.ne.s32.totalorder %s156, %s157
    %p168 = scmp.eq.s32.totalorder %s17, 0
    %p169 = por %p167, %p168
    %p170 = scmp.ne.s32.totalorder %s156, %s157
    %p171 = scmp.eq.s32.totalorder %s18, 1
    %p172 = por %p170, %p171
    %p174 = scmp.ne.s32.totalorder %s157, %s173
    %p175 = scmp.eq.s32.totalorder %s18, 0
    %p176 = por %p174, %p175
    %p177 = scmp.le.s32.totalorder 1, %s12
    %p178 = scmp.lt.s32.totalorder %s12, 3
    %p179 = pnand %p177, %p178
    %p180 = pneg %p179
    // Predicated region
    $region9: #{block_forward.2} parent=5 // pred_check
      _
    $region10: #{block_forward.2} parent=5 // pred_check_branch
      %182 = sbr.rel (%p179) target = $region12
    $region11: #{block_forward.2} parent=5 // pred_region
      %s183 = ssub.s32 %s12, 1
      // Predicated region
      $region13: #{block_forward.2} parent=11 // pred_check
        %p184 = pneg %p59
      $region14: #{block_forward.2} parent=11 // pred_check_branch
        %186 = sbr.rel (%p184) target = $region16
      $region15: #{block_forward.2} parent=11 // pred_region
        _
      $region16: #{block_forward.2} parent=11 // pred_fallthru
        _
      // Predicated region
      $region17: #{block_forward.2} parent=11 // pred_check
        %p187 = pneg %p80
      $region18: #{block_forward.2} parent=11 // pred_check_branch
        %189 = sbr.rel (%p187) target = $region20
      $region19: #{block_forward.2} parent=11 // pred_region
        _
      $region20: #{block_forward.2} parent=11 // pred_fallthru
        _
      // Predicated region
      $region21: #{block_forward.2} parent=11 // pred_check
        %p190 = pneg %p101
      $region22: #{block_forward.2} parent=11 // pred_check_branch
        %192 = sbr.rel (%p190) target = $region24
      $region23: #{block_forward.2} parent=11 // pred_region
        _
      $region24: #{block_forward.2} parent=11 // pred_fallthru
        _
      // Predicated region
      $region25: #{block_forward.2} parent=11 // pred_check
        %p193 = pneg %p122
      $region26: #{block_forward.2} parent=11 // pred_check_branch
        %195 = sbr.rel (%p193) target = $region28
      $region27: #{block_forward.2} parent=11 // pred_region
        _
      $region28: #{block_forward.2} parent=11 // pred_fallthru
        _
      // Predicated region
      $region29: #{block_forward.2} parent=11 // pred_check
        %p196 = pneg %p143
      $region30: #{block_forward.2} parent=11 // pred_check_branch
        %198 = sbr.rel (%p196) target = $region32
      $region31: #{block_forward.2} parent=11 // pred_region
        _
      $region32: #{block_forward.2} parent=11 // pred_fallthru
        _
    $region12: #{block_forward.2} parent=5 // pred_fallthru
      _
    %p199 = scmp.lt.s32.totalorder %s12, 2
    // Predicated region
    $region33: #{block_forward.2} parent=5 // pred_check
      %p200 = pneg %p199
    $region34: #{block_forward.2} parent=5 // pred_check_branch
      %202 = sbr.rel (%p200) target = $region36
    $region35: #{block_forward.2} parent=5 // pred_region
      // Predicated region
      $region37: #{block_forward.2} parent=35 // pred_check
        %p203 = pneg %p32
      $region38: #{block_forward.2} parent=35 // pred_check_branch
        %205 = sbr.rel (%p203) target = $region40
      $region39: #{block_forward.2} parent=35 // pred_region
        %p206 = scmp.lt.s32.totalorder %s12, 1
        %s207 = scalar_select %p206, %s12, 1
        %s208 = smul.addr %s207, 2
        %s209 = smul.addr %s208, 8
        %s210 = scalar_lea.vmem %s0, %s209
      $region40: #{block_forward.2} parent=35 // pred_fallthru
        _
    $region36: #{block_forward.2} parent=5 // pred_fallthru
      _
    %p211 = scmp.le.s32.totalorder 1, %s12
    %p212 = scmp.lt.s32.totalorder %s12, 3
    %p213 = pnand %p211, %p212
    %p214 = pneg %p213
    // Predicated region
    $region41: #{block_forward.2} parent=5 // pred_check
      _
    $region42: #{block_forward.2} parent=5 // pred_check_branch
      %216 = sbr.rel (%p213) target = $region44
    $region43: #{block_forward.2} parent=5 // pred_region
      %s217 = ssub.s32 %s12, 1
      %p218 = scmp.lt.s32.totalorder %s17, 1
      %s219 = scalar_select %p218, %s17, 1
      %s220 = smul.addr %s219, 2
      %s221 = smul.addr %s220, 8
      %s222 = scalar_lea.vmem %s0, %s221
      %p223 = pneg %p38
      %p224 = pneg %p35
      %p225 = pneg %p59
      %p226 = pneg %p56
      %p227 = pneg %p80
      %p228 = pneg %p77
      %p229 = pneg %p101
      %p230 = pneg %p98
      %p231 = pneg %p122
      %p232 = pneg %p119
      %p233 = pneg %p143
      %p234 = pneg %p140
      %p235 = pneg %p169
      %p236 = pneg %p166
      %p237 = scmp.lt.s32.totalorder %s17, 1
      %s238 = scalar_select %p237, %s17, 1
      %s239 = smul.addr %s238, 2
      %s240 = smul.addr %s239, 8
      %s241 = scalar_lea.vmem %s6, %s240
      %p242 = scmp.lt.s32.totalorder %s17, 1
      %s243 = scalar_select %p242, %s17, 1
      %s244 = smul.addr %s243, 2
      %s245 = smul.addr %s244, 8
      %s246 = scalar_lea.vmem %s0, %s245
      %p247 = scmp.lt.s32.totalorder %s17, 1
      %s248 = scalar_select %p247, %s17, 1
      %s249 = smul.addr %s248, 2
      %s250 = smul.addr %s249, 8
      %s251 = scalar_lea.vmem %s6, %s250
      %v253 = vld [vmem:[%s246] sm:$0xff]
      %v254 = vld [vmem:[%s246 + $0x8] sm:$0xff]
      %v255 = vpack.c.bf16 %v254, %v253
      %v256 = vld [vmem:[%s1] sm:$0xff]
      %v257 = vld [vmem:[%s1 + $0x8] sm:$0xff]
      %v258 = vld [vmem:[%s1 + $0x10] sm:$0xff]
      %v259 = vld [vmem:[%s1 + $0x18] sm:$0xff]
      %v260 = vld [vmem:[%s1 + $0x20] sm:$0xff]
      %v261 = vld [vmem:[%s1 + $0x28] sm:$0xff]
      %v262 = vld [vmem:[%s1 + $0x30] sm:$0xff]
      %v263 = vld [vmem:[%s1 + $0x38] sm:$0xff]
      %v272 = vunpack.c.l.b16 %v256
      %v273 = vunpack.c.h.b16 %v256
      %v274 = vunpack.c.l.b16 %v257
      %v275 = vunpack.c.h.b16 %v257
      %v276 = vunpack.c.l.b16 %v258
      %v277 = vunpack.c.h.b16 %v258
      %v278 = vunpack.c.l.b16 %v259
      %v279 = vunpack.c.h.b16 %v259
      %v280 = vunpack.c.l.b16 %v260
      %v281 = vunpack.c.h.b16 %v260
      %v282 = vunpack.c.l.b16 %v261
      %v283 = vunpack.c.h.b16 %v261
      %v284 = vunpack.c.l.b16 %v262
      %v285 = vunpack.c.h.b16 %v262
      %v286 = vunpack.c.l.b16 %v263
      %v287 = vunpack.c.h.b16 %v263
      %v288 = vpack.c.b16 %v274, %v272
      %v289 = vpack.c.b16 %v275, %v273
      %v290 = vpack.c.b16 %v278, %v276
      %v291 = vpack.c.b16 %v279, %v277
      %v292 = vpack.c.b16 %v282, %v280
      %v293 = vpack.c.b16 %v283, %v281
      %v294 = vpack.c.b16 %v286, %v284
      %v295 = vpack.c.b16 %v287, %v285
      %vm304 = vcmask 523264
      %v306 = vsel %vm304, %v255, 0
      %308 = vmatprep.subr.bf16.mxu0 %v289
      %309 = vmatpush1.bf16.msra.mxu0 %v288
      %310 = vmatprep.subr.bf16.mxu0 %v291
      %311 = vmatpush1.bf16.msra.mxu0 %v290
      %312 = vmatprep.subr.bf16.mxu0 %v293
      %313 = vmatpush1.bf16.msra.mxu0 %v292
      %314 = vmatprep.subr.bf16.mxu0 %v295
      %315 = vmatpush1.bf16.msra.mxu0 %v294
      %316 = vmatprep.subr.bf16.mxu0 0
      %317 = vmatpush1.bf16.msra.mxu0 0
      %318 = vmatprep.subr.bf16.mxu0 0
      %319 = vmatpush1.bf16.msra.mxu0 0
      %320 = vmatprep.subr.bf16.mxu0 0
      %321 = vmatpush1.bf16.msra.mxu0 0
      %322 = vmatprep.subr.bf16.mxu0 0
      %323 = vmatpush1.bf16.msra.mxu0 0
      %324 = vmatprep.subr.bf16.mxu0 0
      %325 = vmatpush1.bf16.msra.mxu0 0
      %326 = vmatprep.subr.bf16.mxu0 0
      %327 = vmatpush1.bf16.msra.mxu0 0
      %328 = vmatprep.subr.bf16.mxu0 0
      %329 = vmatpush1.bf16.msra.mxu0 0
      %330 = vmatprep.subr.bf16.mxu0 0
      %331 = vmatpush1.bf16.msra.mxu0 0
      %332 = vmatprep.subr.bf16.mxu0 0
      %333 = vmatpush1.bf16.msra.mxu0 0
      %334 = vmatprep.subr.bf16.mxu0 0
      %335 = vmatpush1.bf16.msra.mxu0 0
      %336 = vmatprep.subr.bf16.mxu0 0
      %337 = vmatpush1.bf16.msra.mxu0 0
      %338 = vmatprep.subr.bf16.mxu0 0
      %339 = vmatpush1.bf16.msra.mxu0 0
      %340 = vmatprep.mubr.bf16.mxu0 0
      %341 = vmatmul.mubr.bf16.gmra.mrb[0].mxu0 %v306
      %v342 = vpop.f32.mrb[0].mxu0
      %v343 = vadd.f32 0.0, %v342
      %v344 = vpop.f32.mrb[0].mxu0
      %v345 = vadd.f32 0.0, %v344
      %v346 = vpop.f32.mrb[0].mxu0
      %v347 = vadd.f32 0.0, %v346
      %v348 = vpop.f32.mrb[0].mxu0
      %v349 = vadd.f32 0.0, %v348
      %350 = vdwg.mxu0
      %v351 = vpack.c.bf16 %v347, %v343
      %v352 = vpack.c.bf16 %v349, %v345
      %v353 = vlaneseq
      %v354 = vshrl.u32 %v353, 7
      %v355 = vadd.s32 %v354, 8
      %v356 = vlaneseq
      %v357 = vand.u32 %v356, 127
      %vm358 = vcmp.le.s32.totalorder %v357, %v354
      %vm359 = vcmp.le.s32.totalorder %v357, %v355
      %361 = vrot.lane.b32.xlu0 %v351, 64
      %v362 = vpop.permute.xlu0 %361
      %vm363 = vcmask 130048
      %v365 = vsel %vm363, %v351, 0
      %v368 = vsel %vm363, %v362, 0
      %370 = vmatprep.subr.bf16.mxu0 0
      %371 = vmatpush1.bf16.xpose.msra.mxu0 %v368
      %372 = vmatprep.subr.bf16.mxu0 0
      %373 = vmatpush1.bf16.xpose.msra.mxu0 0
      %374 = vmatprep.subr.bf16.mxu0 0
      %375 = vmatpush1.bf16.xpose.msra.mxu0 0
      %376 = vmatprep.subr.bf16.mxu0 0
      %377 = vmatpush1.bf16.xpose.msra.mxu0 0
      %378 = vmatprep.subr.bf16.mxu0 0
      %379 = vmatpush1.bf16.xpose.msra.mxu0 0
      %380 = vmatprep.subr.bf16.mxu0 0
      %381 = vmatpush1.bf16.xpose.msra.mxu0 0
      %382 = vmatprep.subr.bf16.mxu0 0
      %383 = vmatpush1.bf16.xpose.msra.mxu0 0
      %384 = vmatprep.subr.bf16.mxu0 0
      %385 = vmatpush1.bf16.xpose.msra.mxu0 0
      %386 = vmatprep.subr.bf16.mxu0 0
      %387 = vmatpush1.bf16.xpose.msra.mxu0 0
      %388 = vmatprep.subr.bf16.mxu0 0
      %389 = vmatpush1.bf16.xpose.msra.mxu0 0
      %390 = vmatprep.subr.bf16.mxu0 0
      %391 = vmatpush1.bf16.xpose.msra.mxu0 0
      %392 = vmatprep.subr.bf16.mxu0 0
      %393 = vmatpush1.bf16.xpose.msra.mxu0 0
      %394 = vmatprep.subr.bf16.mxu0 0
      %395 = vmatpush1.bf16.xpose.msra.mxu0 0
      %396 = vmatprep.subr.bf16.mxu0 0
      %397 = vmatpush1.bf16.xpose.msra.mxu0 0
      %398 = vmatprep.subr.bf16.mxu0 0
      %399 = vmatpush1.bf16.xpose.msra.mxu0 0
      %400 = vmatprep.subr.bf16.mxu0 0
      %401 = vmatpush1.bf16.xpose.msra.mxu0 0
      %402 = vmatprep.mubr.bf16.mxu0 0
      %403 = vmatmul.mubr.bf16.gmra.mrb[0].mxu0 %v365
      %v404 = vpop.f32.mrb[0].mxu0
      %v405 = vadd.f32 0.0, %v404
      %v406 = vpop.f32.mrb[0].mxu0
      %v407 = vpop.f32.mrb[0].mxu0
      %v408 = vadd.f32 0.0, %v407
      %v409 = vpop.f32.mrb[0].mxu0
      %410 = vdwg.mxu0
      %v411 = vsel %vm358, %v405, -1e+30
      %v412 = vsel %vm359, %v408, -1e+30
      %v413 = vsel %vm363, %v411, -inf
      %414 = vmax.xlane.f32.xlu0 %v413
      %v415 = vpop.xlane.xlu0 %414
      %v416 = vsel %vm363, %v412, -inf
      %417 = vmax.xlane.f32.xlu0 %v416
      %v418 = vpop.xlane.xlu0 %417
      %v419 = vsub.f32 %v411, %v415
      %v420 = vsub.f32 %v412, %v418
      %v421 = vmul.f32 %v419, 1.442695
      %v422 = vpow.pop %v421
      %v423 = vmul.f32 %v420, 1.442695
      %v424 = vpow.pop %v423
      %v425 = vsel %vm363, %v422, 0.0
      %426 = vadd.xlane.f32.xlu0 %v425
      %v427 = vpop.xlane.xlu0 %426
      %v428 = vsel %vm363, %v424, 0.0
      %429 = vadd.xlane.f32.xlu0 %v428
      %v430 = vpop.xlane.xlu0 %429
      %v431 = vrcp.pop %v427
      %v432 = vrcp.pop %v430
      %v433 = vmul.f32 %v422, %v431
      %v434 = vmul.f32 %v424, %v432
      %v435 = vpack.c.bf16 %v434, %v433
      %v437 = vsel %vm363, %v435, 0
      %439 = vmatprep.subr.bf16.mxu0 0
      %440 = vmatpush1.bf16.msra.mxu0 %v352
      %441 = vmatprep.subr.bf16.mxu0 0
      %442 = vmatpush1.bf16.msra.mxu0 0
      %443 = vmatprep.subr.bf16.mxu0 0
      %444 = vmatpush1.bf16.msra.mxu0 0
      %445 = vmatprep.subr.bf16.mxu0 0
      %446 = vmatpush1.bf16.msra.mxu0 0
      %447 = vmatprep.subr.bf16.mxu0 0
      %448 = vmatpush1.bf16.msra.mxu0 0
      %449 = vmatprep.subr.bf16.mxu0 0
      %450 = vmatpush1.bf16.msra.mxu0 0
      %451 = vmatprep.subr.bf16.mxu0 0
      %452 = vmatpush1.bf16.msra.mxu0 0
      %453 = vmatprep.subr.bf16.mxu0 0
      %454 = vmatpush1.bf16.msra.mxu0 0
      %455 = vmatprep.subr.bf16.mxu0 0
      %456 = vmatpush1.bf16.msra.mxu0 0
      %457 = vmatprep.subr.bf16.mxu0 0
      %458 = vmatpush1.bf16.msra.mxu0 0
      %459 = vmatprep.subr.bf16.mxu0 0
      %460 = vmatpush1.bf16.msra.mxu0 0
      %461 = vmatprep.subr.bf16.mxu0 0
      %462 = vmatpush1.bf16.msra.mxu0 0
      %463 = vmatprep.subr.bf16.mxu0 0
      %464 = vmatpush1.bf16.msra.mxu0 0
      %465 = vmatprep.subr.bf16.mxu0 0
      %466 = vmatpush1.bf16.msra.mxu0 0
      %467 = vmatprep.subr.bf16.mxu0 0
      %468 = vmatpush1.bf16.msra.mxu0 0
      %469 = vmatprep.subr.bf16.mxu0 0
      %470 = vmatpush1.bf16.msra.mxu0 0
      %471 = vmatprep.mubr.bf16.mxu0 0
      %472 = vmatmul.mubr.bf16.gmra.mrb[0].mxu0 %v437
      %v473 = vpop.f32.mrb[0].mxu0
      %v474 = vadd.f32 0.0, %v473
      %v475 = vpop.f32.mrb[0].mxu0
      %v476 = vpop.f32.mrb[0].mxu0
      %v477 = vadd.f32 0.0, %v476
      %v478 = vpop.f32.mrb[0].mxu0
      %479 = vdwg.mxu0
      %480 = vst.msk [vmem:[#allocation2] sm:$0xff] %vm363, %v474
      %481 = vst.msk [vmem:[#allocation2 + $0x8] sm:$0xff] %vm363, %v477
      %482 = vrot.lane.b32.xlu0 %v351, 112
      %v483 = vpop.permute.xlu0 %482
      %484 = vrot.lane.b32.xlu0 %v351, 48
      %v485 = vpop.permute.xlu0 %484
      %v487 = vsel %vm363, %v483, 0
      %v490 = vsel %vm363, %v485, 0
      %492 = vmatprep.subr.bf16.mxu0 0
      %493 = vmatpush1.bf16.xpose.msra.mxu0 %v490
      %494 = vmatprep.subr.bf16.mxu0 0
      %495 = vmatpush1.bf16.xpose.msra.mxu0 0
      %496 = vmatprep.subr.bf16.mxu0 0
      %497 = vmatpush1.bf16.xpose.msra.mxu0 0
      %498 = vmatprep.subr.bf16.mxu0 0
      %499 = vmatpush1.bf16.xpose.msra.mxu0 0
      %500 = vmatprep.subr.bf16.mxu0 0
      %501 = vmatpush1.bf16.xpose.msra.mxu0 0
      %502 = vmatprep.subr.bf16.mxu0 0
      %503 = vmatpush1.bf16.xpose.msra.mxu0 0
      %504 = vmatprep.subr.bf16.mxu0 0
      %505 = vmatpush1.bf16.xpose.msra.mxu0 0
      %506 = vmatprep.subr.bf16.mxu0 0
      %507 = vmatpush1.bf16.xpose.msra.mxu0 0
      %508 = vmatprep.subr.bf16.mxu0 0
      %509 = vmatpush1.bf16.xpose.msra.mxu0 0
      %510 = vmatprep.subr.bf16.mxu0 0
      %511 = vmatpush1.bf16.xpose.msra.mxu0 0
      %512 = vmatprep.subr.bf16.mxu0 0
      %513 = vmatpush1.bf16.xpose.msra.mxu0 0
      %514 = vmatprep.subr.bf16.mxu0 0
      %515 = vmatpush1.bf16.xpose.msra.mxu0 0
      %516 = vmatprep.subr.bf16.mxu0 0
      %517 = vmatpush1.bf16.xpose.msra.mxu0 0
      %518 = vmatprep.subr.bf16.mxu0 0
      %519 = vmatpush1.bf16.xpose.msra.mxu0 0
      %520 = vmatprep.subr.bf16.mxu0 0
      %521 = vmatpush1.bf16.xpose.msra.mxu0 0
      %522 = vmatprep.subr.bf16.mxu0 0
      %523 = vmatpush1.bf16.xpose.msra.mxu0 0
      %524 = vmatprep.mubr.bf16.mxu0 0
      %525 = vmatmul.mubr.bf16.gmra.mrb[0].mxu0 %v487
      %v526 = vpop.f32.mrb[0].mxu0
      %v527 = vadd.f32 0.0, %v526
      %v528 = vpop.f32.mrb[0].mxu0
      %v529 = vpop.f32.mrb[0].mxu0
      %v530 = vadd.f32 0.0, %v529
      %v531 = vpop.f32.mrb[0].mxu0
      %532 = vdwg.mxu0
      %v533 = vsel %vm358, %v527, -1e+30
      %v534 = vsel %vm359, %v530, -1e+30
      %v535 = vsel %vm363, %v533, -inf
      %536 = vmax.xlane.f32.xlu0 %v535
      %v537 = vpop.xlane.xlu0 %536
      %v538 = vsel %vm363, %v534, -inf
      %539 = vmax.xlane.f32.xlu0 %v538
      %v540 = vpop.xlane.xlu0 %539
      %v541 = vsub.f32 %v533, %v537
      %v542 = vsub.f32 %v534, %v540
      %v543 = vmul.f32 %v541, 1.442695
      %v544 = vpow.pop %v543
      %v545 = vmul.f32 %v542, 1.442695
      %v546 = vpow.pop %v545
      %v547 = vsel %vm363, %v544, 0.0
      %548 = vadd.xlane.f32.xlu0 %v547
      %v549 = vpop.xlane.xlu0 %548
      %v550 = vsel %vm363, %v546, 0.0
      %551 = vadd.xlane.f32.xlu0 %v550
      %v552 = vpop.xlane.xlu0 %551
      %v553 = vrcp.pop %v549
      %v554 = vrcp.pop %v552
      %v555 = vmul.f32 %v544, %v553
      %v556 = vmul.f32 %v546, %v554
      %v557 = vpack.c.bf16 %v556, %v555
      %559 = vrot.lane.b32.xlu0 %v352, 112
      %v560 = vpop.permute.xlu0 %559
      %v563 = vsel %vm363, %v557, 0
      %565 = vmatprep.subr.bf16.mxu0 0
      %566 = vmatpush1.bf16.msra.mxu0 %v560
      %567 = vmatprep.subr.bf16.mxu0 0
      %568 = vmatpush1.bf16.msra.mxu0 0
      %569 = vmatprep.subr.bf16.mxu0 0
      %570 = vmatpush1.bf16.msra.mxu0 0
      %571 = vmatprep.subr.bf16.mxu0 0
      %572 = vmatpush1.bf16.msra.mxu0 0
      %573 = vmatprep.subr.bf16.mxu0 0
      %574 = vmatpush1.bf16.msra.mxu0 0
      %575 = vmatprep.subr.bf16.mxu0 0
      %576 = vmatpush1.bf16.msra.mxu0 0
      %577 = vmatprep.subr.bf16.mxu0 0
      %578 = vmatpush1.bf16.msra.mxu0 0
      %579 = vmatprep.subr.bf16.mxu0 0
      %580 = vmatpush1.bf16.msra.mxu0 0
      %581 = vmatprep.subr.bf16.mxu0 0
      %582 = vmatpush1.bf16.msra.mxu0 0
      %583 = vmatprep.subr.bf16.mxu0 0
      %584 = vmatpush1.bf16.msra.mxu0 0
      %585 = vmatprep.subr.bf16.mxu0 0
      %586 = vmatpush1.bf16.msra.mxu0 0
      %587 = vmatprep.subr.bf16.mxu0 0
      %588 = vmatpush1.bf16.msra.mxu0 0
      %589 = vmatprep.subr.bf16.mxu0 0
      %590 = vmatpush1.bf16.msra.mxu0 0
      %591 = vmatprep.subr.bf16.mxu0 0
      %592 = vmatpush1.bf16.msra.mxu0 0
      %593 = vmatprep.subr.bf16.mxu0 0
      %594 = vmatpush1.bf16.msra.mxu0 0
      %595 = vmatprep.subr.bf16.mxu0 0
      %596 = vmatpush1.bf16.msra.mxu0 0
      %597 = vmatprep.mubr.bf16.mxu0 0
      %598 = vmatmul.mubr.bf16.gmra.mrb[0].mxu0 %v563
      %v599 = vpop.f32.mrb[0].mxu0
      %v600 = vadd.f32 0.0, %v599
      %v601 = vpop.f32.mrb[0].mxu0
      %v602 = vpop.f32.mrb[0].mxu0
      %v603 = vadd.f32 0.0, %v602
      %v604 = vpop.f32.mrb[0].mxu0
      %605 = vdwg.mxu0
      %608 = vrot.lane.b32.xlu0 %v600, 16
      %v609 = vpop.permute.xlu0 %608
      %610 = vrot.lane.b32.xlu0 %v603, 16
      %v611 = vpop.permute.xlu0 %610
      %vm614 = vcmask 261248
      %615 = vst.msk [vmem:[#allocation2] sm:$0xff] %vm614, %v609
      %616 = vst.msk [vmem:[#allocation2 + $0x8] sm:$0xff] %vm614, %v611
      %617 = vrot.lane.b32.xlu0 %v351, 96
      %v618 = vpop.permute.xlu0 %617
      %619 = vrot.lane.b32.xlu0 %v351, 32
      %v620 = vpop.permute.xlu0 %619
      %v622 = vsel %vm363, %v618, 0
      %v625 = vsel %vm363, %v620, 0
      %627 = vmatprep.subr.bf16.mxu0 0
      %628 = vmatpush1.bf16.xpose.msra.mxu0 %v625
      %629 = vmatprep.subr.bf16.mxu0 0
      %630 = vmatpush1.bf16.xpose.msra.mxu0 0
      %631 = vmatprep.subr.bf16.mxu0 0
      %632 = vmatpush1.bf16.xpose.msra.mxu0 0
      %633 = vmatprep.subr.bf16.mxu0 0
      %634 = vmatpush1.bf16.xpose.msra.mxu0 0
      %635 = vmatprep.subr.bf16.mxu0 0
      %636 = vmatpush1.bf16.xpose.msra.mxu0 0
      %637 = vmatprep.subr.bf16.mxu0 0
      %638 = vmatpush1.bf16.xpose.msra.mxu0 0
      %639 = vmatprep.subr.bf16.mxu0 0
      %640 = vmatpush1.bf16.xpose.msra.mxu0 0
      %641 = vmatprep.subr.bf16.mxu0 0
      %642 = vmatpush1.bf16.xpose.msra.mxu0 0
      %643 = vmatprep.subr.bf16.mxu0 0
      %644 = vmatpush1.bf16.xpose.msra.mxu0 0
      %645 = vmatprep.subr.bf16.mxu0 0
      %646 = vmatpush1.bf16.xpose.msra.mxu0 0
      %647 = vmatprep.subr.bf16.mxu0 0
      %648 = vmatpush1.bf16.xpose.msra.mxu0 0
      %649 = vmatprep.subr.bf16.mxu0 0
      %650 = vmatpush1.bf16.xpose.msra.mxu0 0
      %651 = vmatprep.subr.bf16.mxu0 0
      %652 = vmatpush1.bf16.xpose.msra.mxu0 0
      %653 = vmatprep.subr.bf16.mxu0 0
      %654 = vmatpush1.bf16.xpose.msra.mxu0 0
      %655 = vmatprep.subr.bf16.mxu0 0
      %656 = vmatpush1.bf16.xpose.msra.mxu0 0
      %657 = vmatprep.subr.bf16.mxu0 0
      %658 = vmatpush1.bf16.xpose.msra.mxu0 0
      %659 = vmatprep.mubr.bf16.mxu0 0
      %660 = vmatmul.mubr.bf16.gmra.mrb[0].mxu0 %v622
      %v661 = vpop.f32.mrb[0].mxu0
      %v662 = vadd.f32 0.0, %v661
      %v663 = vpop.f32.mrb[0].mxu0
      %v664 = vpop.f32.mrb[0].mxu0
      %v665 = vadd.f32 0.0, %v664
      %v666 = vpop.f32.mrb[0].mxu0
      %667 = vdwg.mxu0
      %v668 = vsel %vm358, %v662, -1e+30
      %v669 = vsel %vm359, %v665, -1e+30
      %v670 = vsel %vm363, %v668, -inf
      %671 = vmax.xlane.f32.xlu0 %v670
      %v672 = vpop.xlane.xlu0 %671
      %v673 = vsel %vm363, %v669, -inf
      %674 = vmax.xlane.f32.xlu0 %v673
      %v675 = vpop.xlane.xlu0 %674
      %v676 = vsub.f32 %v668, %v672
      %v677 = vsub.f32 %v669, %v675
      %v678 = vmul.f32 %v676, 1.442695
      %v679 = vpow.pop %v678
      %v680 = vmul.f32 %v677, 1.442695
      %v681 = vpow.pop %v680
      %v682 = vsel %vm363, %v679, 0.0
      %683 = vadd.xlane.f32.xlu0 %v682
      %v684 = vpop.xlane.xlu0 %683
      %v685 = vsel %vm363, %v681, 0.0
      %686 = vadd.xlane.f32.xlu0 %v685
      %v687 = vpop.xlane.xlu0 %686
      %v688 = vrcp.pop %v684
      %v689 = vrcp.pop %v687
      %v690 = vmul.f32 %v679, %v688
      %v691 = vmul.f32 %v681, %v689
      %v692 = vpack.c.bf16 %v691, %v690
      %693 = vrot.lane.b32.xlu0 %v352, 96
      %v694 = vpop.permute.xlu0 %693
      %v697 = vsel %vm363, %v692, 0
      %699 = vmatprep.subr.bf16.mxu0 0
      %700 = vmatpush1.bf16.msra.mxu0 %v694
      %701 = vmatprep.subr.bf16.mxu0 0
      %702 = vmatpush1.bf16.msra.mxu0 0
      %703 = vmatprep.subr.bf16.mxu0 0
      %704 = vmatpush1.bf16.msra.mxu0 0
      %705 = vmatprep.subr.bf16.mxu0 0
      %706 = vmatpush1.bf16.msra.mxu0 0
      %707 = vmatprep.subr.bf16.mxu0 0
      %708 = vmatpush1.bf16.msra.mxu0 0
      %709 = vmatprep.subr.bf16.mxu0 0
      %710 = vmatpush1.bf16.msra.mxu0 0
      %711 = vmatprep.subr.bf16.mxu0 0
      %712 = vmatpush1.bf16.msra.mxu0 0
      %713 = vmatprep.subr.bf16.mxu0 0
      %714 = vmatpush1.bf16.msra.mxu0 0
      %715 = vmatprep.subr.bf16.mxu0 0
      %716 = vmatpush1.bf16.msra.mxu0 0
      %717 = vmatprep.subr.bf16.mxu0 0
      %718 = vmatpush1.bf16.msra.mxu0 0
      %719 = vmatprep.subr.bf16.mxu0 0
      %720 = vmatpush1.bf16.msra.mxu0 0
      %721 = vmatprep.subr.bf16.mxu0 0
      %722 = vmatpush1.bf16.msra.mxu0 0
      %723 = vmatprep.subr.bf16.mxu0 0
      %724 = vmatpush1.bf16.msra.mxu0 0
      %725 = vmatprep.subr.bf16.mxu0 0
      %726 = vmatpush1.bf16.msra.mxu0 0
      %727 = vmatprep.subr.bf16.mxu0 0
      %728 = vmatpush1.bf16.msra.mxu0 0
      %729 = vmatprep.subr.bf16.mxu0 0
      %730 = vmatpush1.bf16.msra.mxu0 0
      %731 = vmatprep.mubr.bf16.mxu0 0
      %732 = vmatmul.mubr.bf16.gmra.mrb[0].mxu0 %v697
      %v733 = vpop.f32.mrb[0].mxu0
      %v734 = vadd.f32 0.0, %v733
      %v735 = vpop.f32.mrb[0].mxu0
      %v736 = vpop.f32.mrb[0].mxu0
      %v737 = vadd.f32 0.0, %v736
      %v738 = vpop.f32.mrb[0].mxu0
      %739 = vdwg.mxu0
      %742 = vrot.lane.b32.xlu0 %v734, 32
      %v743 = vpop.permute.xlu0 %742
      %744 = vrot.lane.b32.xlu0 %v737, 32
      %v745 = vpop.permute.xlu0 %744
      %vm748 = vcmask 392448
      %749 = vst.msk [vmem:[#allocation2] sm:$0xff] %vm748, %v743
      %750 = vst.msk [vmem:[#allocation2 + $0x8] sm:$0xff] %vm748, %v745
      %751 = vrot.lane.b32.xlu0 %v351, 80
      %v752 = vpop.permute.xlu0 %751
      %753 = vrot.lane.b32.xlu0 %v351, 16
      %v754 = vpop.permute.xlu0 %753
      %v756 = vsel %vm363, %v752, 0
      %v759 = vsel %vm363, %v754, 0
      %761 = vmatprep.subr.bf16.mxu0 0
      %762 = vmatpush1.bf16.xpose.msra.mxu0 %v759
      %763 = vmatprep.subr.bf16.mxu0 0
      %764 = vmatpush1.bf16.xpose.msra.mxu0 0
      %765 = vmatprep.subr.bf16.mxu0 0
      %766 = vmatpush1.bf16.xpose.msra.mxu0 0
      %767 = vmatprep.subr.bf16.mxu0 0
      %768 = vmatpush1.bf16.xpose.msra.mxu0 0
      %769 = vmatprep.subr.bf16.mxu0 0
      %770 = vmatpush1.bf16.xpose.msra.mxu0 0
      %771 = vmatprep.subr.bf16.mxu0 0
      %772 = vmatpush1.bf16.xpose.msra.mxu0 0
      %773 = vmatprep.subr.bf16.mxu0 0
      %774 = vmatpush1.bf16.xpose.msra.mxu0 0
      %775 = vmatprep.subr.bf16.mxu0 0
      %776 = vmatpush1.bf16.xpose.msra.mxu0 0
      %777 = vmatprep.subr.bf16.mxu0 0
      %778 = vmatpush1.bf16.xpose.msra.mxu0 0
      %779 = vmatprep.subr.bf16.mxu0 0
      %780 = vmatpush1.bf16.xpose.msra.mxu0 0
      %781 = vmatprep.subr.bf16.mxu0 0
      %782 = vmatpush1.bf16.xpose.msra.mxu0 0
      %783 = vmatprep.subr.bf16.mxu0 0
      %784 = vmatpush1.bf16.xpose.msra.mxu0 0
      %785 = vmatprep.subr.bf16.mxu0 0
      %786 = vmatpush1.bf16.xpose.msra.mxu0 0
      %787 = vmatprep.subr.bf16.mxu0 0
      %788 = vmatpush1.bf16.xpose.msra.mxu0 0
      %789 = vmatprep.subr.bf16.mxu0 0
      %790 = vmatpush1.bf16.xpose.msra.mxu0 0
      %791 = vmatprep.subr.bf16.mxu0 0
      %792 = vmatpush1.bf16.xpose.msra.mxu0 0
      %793 = vmatprep.mubr.bf16.mxu0 0
      %794 = vmatmul.mubr.bf16.gmra.mrb[0].mxu0 %v756
      %v795 = vpop.f32.mrb[0].mxu0
      %v796 = vadd.f32 0.0, %v795
      %v797 = vpop.f32.mrb[0].mxu0
      %v798 = vpop.f32.mrb[0].mxu0
      %v799 = vadd.f32 0.0, %v798
      %v800 = vpop.f32.mrb[0].mxu0
      %801 = vdwg.mxu0
      %v802 = vsel %vm358, %v796, -1e+30
      %v803 = vsel %vm359, %v799, -1e+30
      %v804 = vsel %vm363, %v802, -inf
      %805 = vmax.xlane.f32.xlu0 %v804
      %v806 = vpop.xlane.xlu0 %805
      %v807 = vsel %vm363, %v803, -inf
      %808 = vmax.xlane.f32.xlu0 %v807
      %v809 = vpop.xlane.xlu0 %808
      %v810 = vsub.f32 %v802, %v806
      %v811 = vsub.f32 %v803, %v809
      %v812 = vmul.f32 %v810, 1.442695
      %v813 = vpow.pop %v812
      %v814 = vmul.f32 %v811, 1.442695
      %v815 = vpow.pop %v814
      %v816 = vsel %vm363, %v813, 0.0
      %817 = vadd.xlane.f32.xlu0 %v816
      %v818 = vpop.xlane.xlu0 %817
      %v819 = vsel %vm363, %v815, 0.0
      %820 = vadd.xlane.f32.xlu0 %v819
      %v821 = vpop.xlane.xlu0 %820
      %v822 = vrcp.pop %v818
      %v823 = vrcp.pop %v821
      %v824 = vmul.f32 %v813, %v822
      %v825 = vmul.f32 %v815, %v823
      %v826 = vpack.c.bf16 %v825, %v824
      %827 = vrot.lane.b32.xlu0 %v352, 80
      %v828 = vpop.permute.xlu0 %827
      %v831 = vsel %vm363, %v826, 0
      %833 = vmatprep.subr.bf16.mxu0 0
      %834 = vmatpush1.bf16.msra.mxu0 %v828
      %835 = vmatprep.subr.bf16.mxu0 0
      %836 = vmatpush1.bf16.msra.mxu0 0
      %837 = vmatprep.subr.bf16.mxu0 0
      %838 = vmatpush1.bf16.msra.mxu0 0
      %839 = vmatprep.subr.bf16.mxu0 0
      %840 = vmatpush1.bf16.msra.mxu0 0
      %841 = vmatprep.subr.bf16.mxu0 0
      %842 = vmatpush1.bf16.msra.mxu0 0
      %843 = vmatprep.subr.bf16.mxu0 0
      %844 = vmatpush1.bf16.msra.mxu0 0
      %845 = vmatprep.subr.bf16.mxu0 0
      %846 = vmatpush1.bf16.msra.mxu0 0
      %847 = vmatprep.subr.bf16.mxu0 0
      %848 = vmatpush1.bf16.msra.mxu0 0
      %849 = vmatprep.subr.bf16.mxu0 0
      %850 = vmatpush1.bf16.msra.mxu0 0
      %851 = vmatprep.subr.bf16.mxu0 0
      %852 = vmatpush1.bf16.msra.mxu0 0
      %853 = vmatprep.subr.bf16.mxu0 0
      %854 = vmatpush1.bf16.msra.mxu0 0
      %855 = vmatprep.subr.bf16.mxu0 0
      %856 = vmatpush1.bf16.msra.mxu0 0
      %857 = vmatprep.subr.bf16.mxu0 0
      %858 = vmatpush1.bf16.msra.mxu0 0
      %859 = vmatprep.subr.bf16.mxu0 0
      %860 = vmatpush1.bf16.msra.mxu0 0
      %861 = vmatprep.subr.bf16.mxu0 0
      %862 = vmatpush1.bf16.msra.mxu0 0
      %863 = vmatprep.subr.bf16.mxu0 0
      %864 = vmatpush1.bf16.msra.mxu0 0
      %865 = vmatprep.mubr.bf16.mxu0 0
      %866 = vmatmul.mubr.bf16.gmra.mrb[0].mxu0 %v831
      %v867 = vpop.f32.mrb[0].mxu0
      %v868 = vadd.f32 0.0, %v867
      %v869 = vpop.f32.mrb[0].mxu0
      %v870 = vpop.f32.mrb[0].mxu0
      %v871 = vadd.f32 0.0, %v870
      %v872 = vpop.f32.mrb[0].mxu0
      %873 = vdwg.mxu0
      %876 = vrot.lane.b32.xlu0 %v868, 48
      %v877 = vpop.permute.xlu0 %876
      %878 = vrot.lane.b32.xlu0 %v871, 48
      %v879 = vpop.permute.xlu0 %878
      %vm882 = vcmask 523648
      %883 = vst.msk [vmem:[#allocation2] sm:$0xff] %vm882, %v877
      %884 = vst.msk [vmem:[#allocation2 + $0x8] sm:$0xff] %vm882, %v879
      %v885 = vld [vmem:[#allocation2] sm:$0xff]
      %v886 = vld [vmem:[#allocation2 + $0x8] sm:$0xff]
      %v887 = vpack.c.bf16 %v886, %v885
      %v888 = vld [vmem:[%s2] sm:$0xf]
      %v889 = vld [vmem:[%s2 + $0x4] sm:$0xf]
      %v890 = vld [vmem:[%s2 + $0x8] sm:$0xf]
      %v891 = vld [vmem:[%s2 + $0xc] sm:$0xf]
      %v892 = vld [vmem:[%s2 + $0x10] sm:$0xf]
      %v893 = vld [vmem:[%s2 + $0x14] sm:$0xf]
      %v894 = vld [vmem:[%s2 + $0x18] sm:$0xf]
      %v895 = vld [vmem:[%s2 + $0x1c] sm:$0xf]
      %v904 = vunpack.c.l.b16 %v888
      %v905 = vunpack.c.l.b16 %v889
      %v906 = vunpack.c.l.b16 %v890
      %v907 = vunpack.c.l.b16 %v891
      %v908 = vunpack.c.l.b16 %v892
      %v909 = vunpack.c.l.b16 %v893
      %v910 = vunpack.c.l.b16 %v894
      %v911 = vunpack.c.l.b16 %v895
      %v912 = vpack.c.b16 %v905, %v904
      %v913 = vpack.c.b16 %v907, %v906
      %v914 = vpack.c.b16 %v909, %v908
      %v915 = vpack.c.b16 %v911, %v910
      %v921 = vsel %vm304, %v887, 0
      %923 = vmatprep.subr.bf16.mxu0 0
      %924 = vmatpush1.bf16.msra.mxu0 %v912
      %925 = vmatprep.subr.bf16.mxu0 0
      %926 = vmatpush1.bf16.msra.mxu0 %v913
      %927 = vmatprep.subr.bf16.mxu0 0
      %928 = vmatpush1.bf16.msra.mxu0 %v914
      %929 = vmatprep.subr.bf16.mxu0 0
      %930 = vmatpush1.bf16.msra.mxu0 %v915
      %931 = vmatprep.subr.bf16.mxu0 0
      %932 = vmatpush1.bf16.msra.mxu0 0
      %933 = vmatprep.subr.bf16.mxu0 0
      %934 = vmatpush1.bf16.msra.mxu0 0
      %935 = vmatprep.subr.bf16.mxu0 0
      %936 = vmatpush1.bf16.msra.mxu0 0
      %937 = vmatprep.subr.bf16.mxu0 0
      %938 = vmatpush1.bf16.msra.mxu0 0
      %939 = vmatprep.subr.bf16.mxu0 0
      %940 = vmatpush1.bf16.msra.mxu0 0
      %941 = vmatprep.subr.bf16.mxu0 0
      %942 = vmatpush1.bf16.msra.mxu0 0
      %943 = vmatprep.subr.bf16.mxu0 0
      %944 = vmatpush1.bf16.msra.mxu0 0
      %945 = vmatprep.subr.bf16.mxu0 0
      %946 = vmatpush1.bf16.msra.mxu0 0
      %947 = vmatprep.subr.bf16.mxu0 0
      %948 = vmatpush1.bf16.msra.mxu0 0
      %949 = vmatprep.subr.bf16.mxu0 0
      %950 = vmatpush1.bf16.msra.mxu0 0
      %951 = vmatprep.subr.bf16.mxu0 0
      %952 = vmatpush1.bf16.msra.mxu0 0
      %953 = vmatprep.subr.bf16.mxu0 0
      %954 = vmatpush1.bf16.msra.mxu0 0
      %955 = vmatprep.mubr.bf16.mxu0 0
      %956 = vmatmul.mubr.bf16.gmra.mrb[0].mxu0 %v921
      %v957 = vpop.f32.mrb[0].mxu0
      %v958 = vadd.f32 0.0, %v957
      %v959 = vpop.f32.mrb[0].mxu0
      %v960 = vpop.f32.mrb[0].mxu0
      %v961 = vadd.f32 0.0, %v960
      %v962 = vpop.f32.mrb[0].mxu0
      %963 = vdwg.mxu0
      %v964 = vadd.f32 %v253, %v958
      %v965 = vadd.f32 %v254, %v961
      %v966 = vld [vmem:[%s3] sm:$0x1]
      %v968 = vlaneseq
      %v969 = vshrl.u32 %v968, 7
      %v970 = vsub.s32 0, %v969
      %v971 = vrot.slane %v966, %v970
      %v973 = vadd.f32 %v964, %v971
      %v974 = vadd.f32 %v965, %v971
      %v975 = vsel %vm304, %v973, 0.0
      %976 = vadd.xlane.f32.xlu0 %v975
      %v977 = vpop.xlane.xlu0 %976
      %v978 = vsel %vm304, %v974, 0.0
      %979 = vadd.xlane.f32.xlu0 %v978
      %v980 = vpop.xlane.xlu0 %979
      %v981 = vrcp.pop 64.0
      %v982 = vmul.f32 %v977, %v981
      %v983 = vmul.f32 %v980, %v981
      %v984 = vsub.f32 %v973, %v982
      %v985 = vsub.f32 %v974, %v983
      %v986 = vmul.f32 %v984, %v984
      %v987 = vmul.f32 %v985, %v985
      %v988 = vsel %vm304, %v986, 0.0
      %989 = vadd.xlane.f32.xlu0 %v988
      %v990 = vpop.xlane.xlu0 %989
      %v991 = vsel %vm304, %v987, 0.0
      %992 = vadd.xlane.f32.xlu0 %v991
      %v993 = vpop.xlane.xlu0 %992
      %v994 = vmul.f32 %v990, %v981
      %v995 = vmul.f32 %v993, %v981
      %v996 = vadd.f32 %v994, 1e-05
      %v997 = vadd.f32 %v995, 1e-05
      %v998 = vrsqrt.pop %v996
      %v999 = vrsqrt.pop %v997
      %v1000 = vmul.f32 %v984, %v998
      %v1001 = vmul.f32 %v985, %v999
      %v1002 = vld [vmem:[%s4] sm:$0x1]
      %v1004 = vlaneseq
      %v1005 = vshrl.u32 %v1004, 7
      %v1006 = vsub.s32 0, %v1005
      %v1007 = vrot.slane %v1002, %v1006
      %v1009 = vmul.f32 %v1000, %v1007
      %v1010 = vmul.f32 %v1001, %v1007
      %v1011 = vld [vmem:[%s5] sm:$0x1]
      %v1013 = vlaneseq
      %v1014 = vshrl.u32 %v1013, 7
      %v1015 = vsub.s32 0, %v1014
      %v1016 = vrot.slane %v1011, %v1015
      %v1018 = vadd.f32 %v1009, %v1016
      %v1019 = vadd.f32 %v1010, %v1016
      %1020 = vst.msk [vmem:[%s251] sm:$0xff] %vm304, %v1018
      %1021 = vst.msk [vmem:[%s251 + $0x8] sm:$0xff] %vm304, %v1019
      %p1022 = scmp.lt.s32.totalorder %s17, 1
      %s1023 = scalar_select %p1022, %s17, 1
      %s1024 = smul.addr %s1023, 2
      %s1025 = smul.addr %s1024, 8
      %s1026 = scalar_lea.vmem %s6, %s1025
      // Predicated region
      $region45: #{block_forward.2} parent=43 // pred_check
        %p1027 = pneg %p166
      $region46: #{block_forward.2} parent=43 // pred_check_branch
        %1029 = sbr.rel (%p1027) target = $region48
      $region47: #{block_forward.2} parent=43 // pred_region
        _
      $region48: #{block_forward.2} parent=43 // pred_fallthru
        _
    $region44: #{block_forward.2} parent=5 // pred_fallthru
      _
    %p1030 = scmp.le.s32.totalorder 2, %s12
    // Predicated region
    $region49: #{block_forward.2} parent=5 // pred_check
      %p1031 = pneg %p1030
    $region50: #{block_forward.2} parent=5 // pred_check_branch
      %1033 = sbr.rel (%p1031) target = $region52
    $region51: #{block_forward.2} parent=5 // pred_region
      %s1034 = ssub.s32 %s12, 2
      // Predicated region
      $region53: #{block_forward.2} parent=51 // pred_check
        %p1035 = pneg %p172
      $region54: #{block_forward.2} parent=51 // pred_check_branch
        %1037 = sbr.rel (%p1035) target = $region56
      $region55: #{block_forward.2} parent=51 // pred_region
        %p1038 = scmp.lt.s32.totalorder %s18, 1
        %s1039 = scalar_select %p1038, %s18, 1
        %s1040 = smul.addr %s1039, 2
        %s1041 = smul.addr %s1040, 8
        %s1042 = scalar_lea.vmem %s6, %s1041
      $region56: #{block_forward.2} parent=51 // pred_fallthru
        _
    $region52: #{block_forward.2} parent=5 // pred_fallthru
      _
  $region6: #{block_forward.2} parent=0 // loop_footer
    %s16 = sadd.s32 1, %s12
  $region7: #{block_forward.2} parent=0 // loop_footer_branch
    %11 = sbr.rel target = $region3
  $region8: #{block_forward.2} parent=0 // loop_exit
    _

// kernel: block_forward.3
$region0: #{block_forward.3}
  #allocation0 [shape = 'u32[]', space=smem, size = 0x4, offset = 0x4, fixed_abs, tag = 'smem constant byte address 0x4 - core index']
  #allocation1 [shape = 'u32[144,128]{1,0:T(1,128)}', space=vmem, size = 0x12000, scoped, tag = 'internal scratch']
  #allocation2 [shape = 'f32[16,64]{1,0:T(8,128)}', space=vmem, size = 0x2000, scoped, tag = 'scratch operand']
  %s0 = inlined_call_operand.vmem [shape: f32[32,64], index: 0, kind: input, shape index: {}]
  %s1 = inlined_call_operand.vmem [shape: bf16[64,256], index: 1, kind: input, shape index: {}]
  %s2 = inlined_call_operand.vmem [shape: f32[1,256], index: 2, kind: input, shape index: {}]
  %s3 = inlined_call_operand.vmem [shape: bf16[256,64], index: 3, kind: input, shape index: {}]
  %s4 = inlined_call_operand.vmem [shape: f32[1,64], index: 4, kind: input, shape index: {}]
  %s5 = inlined_call_operand.vmem [shape: f32[1,64], index: 5, kind: input, shape index: {}]
  %s6 = inlined_call_operand.vmem [shape: f32[1,64], index: 6, kind: input, shape index: {}]
  %s7 = inlined_call_operand.hbm [shape: f32[32,64], index: 7, kind: output, shape index: {}]
  %s8 = sld [smem:[#allocation0]]
  $region69: #{block_forward.3} parent=0
    _
  %s10 = ssub.s32 1, %s8
  %s11 = scalar_select 0, %s10, %s8
  $region1: #{block_forward.3} parent=0
    #allocation3 [shape = 'u8[16384]{0}', space=vmem, size = 0x4000, scoped, tag = 'output window, operand 0']
    #allocation4 [shape = 's32[2]{0}', space=sflag, size = 0x8, scoped, tag = 'scoped memory for block_forward.3']
    %12 = vsyncpa [#allocation4], 0
    %s13 = scalar_lea.sflag [#allocation4], 1
    %14 = vsyncpa %s13, 0
    loop: start=0, step=1, limit=4
    $region2: #{block_forward.3} parent=1 // loop_pre_header
      _
    $region3: #{block_forward.3} parent=1 // loop_header
      %s16 = sphi 0, %s20
      %p17 = scmp.ge.s32.totalorder %s16, 4
      %s23 = sphi 0, %s35
      %s24 = sphi 0, %s31
      %s25 = sphi 0, %s23
      %s26 = sphi 0, %s24
      %s27 = sphi 0, %s25
      %s28 = sphi 0, %s26
      %s38 = sphi 0, %s40
      %s41 = sphi 0, %s38
      %s42 = sphi 0, %s41
      %s58 = sphi 0, %s42
      %s64 = sphi 0, %s66
      %s67 = sphi 0, %s64
      %s68 = sphi 0, %s67
      %s84 = sphi 0, %s68
      %s90 = sphi 0, %s92
      %s93 = sphi 0, %s90
      %s94 = sphi 0, %s93
      %s110 = sphi 0, %s94
      %s116 = sphi 0, %s118
      %s119 = sphi 0, %s116
      %s120 = sphi 0, %s119
      %s136 = sphi 0, %s120
      %s140 = sphi 0, %s140
      %s142 = sphi 0, %s140
      %s143 = sphi 0, %s142
      %s157 = sphi 0, %s143
      %s161 = sphi 0, %s161
      %s163 = sphi 0, %s161
      %s164 = sphi 0, %s163
      %s178 = sphi 0, %s164
      %s182 = sphi 0, %s182
      %s184 = sphi 0, %s182
      %s185 = sphi 0, %s184
      %s199 = sphi 0, %s185
      %s205 = sphi 0, %s207
      %s208 = sphi 0, %s205
      %s209 = sphi 0, %s208
      %s225 = sphi 0, %s209
    $region4: #{block_forward.3} parent=1 // loop_header_branch
      %19 = sbr.rel (%p17) target = $region8
    $region5: #{block_forward.3} parent=1 // loop_body
      %s21 = ssub.s32 %s16, 1
      %s22 = ssub.s32 %s16, 2
      %s29 = sadd.s32 1, %s24
      %p30 = scmp.ge.s32.totalorder %s29, 1
      %s31 = scalar_select %p30, 0, %s29
      %s32 = sadd.s32 1, %s23
      %s33 = scalar_select %p30, %s32, %s23
      %p34 = scmp.ge.s32.totalorder %s33, 2
      %s35 = scalar_select %p34, 0, %s33
      %s36 = ssub.s32 %s23, %s35
      %p37 = scmp.eq.s32.totalorder %s36, 0
      %s39 = sadd.s32 %s38, 1
      %s40 = scalar_select %p37, %s38, %s39
      %p43 = pneg %p37
      %p44 = scmp.eq.s32.totalorder %s16, 1
      %p45 = por %p43, %p44
      %p46 = scmp.ne.s32.totalorder %s38, %s41
      %p47 = scmp.eq.s32.totalorder %s16, 0
      %p48 = por %p46, %p47
      %p49 = scmp.ne.s32.totalorder %s38, %s41
      %p50 = scmp.eq.s32.totalorder %s21, 1
      %p51 = por %p49, %p50
      %p52 = scmp.ne.s32.totalorder %s41, %s42
      %p53 = scmp.eq.s32.totalorder %s21, 0
      %p54 = por %p52, %p53
      %p55 = scmp.ne.s32.totalorder %s41, %s42
      %p56 = scmp.eq.s32.totalorder %s22, 1
      %p57 = por %p55, %p56
      %p59 = scmp.ne.s32.totalorder %s42, %s58
      %p60 = scmp.eq.s32.totalorder %s22, 0
      %p61 = por %p59, %p60
      %s62 = ssub.s32 %s24, %s31
      %p63 = scmp.eq.s32.totalorder %s62, 0
      %s65 = sadd.s32 %s64, 1
      %s66 = scalar_select %p63, %s64, %s65
      %p69 = pneg %p63
      %p70 = scmp.eq.s32.totalorder %s16, 1
      %p71 = por %p69, %p70
      %p72 = scmp.ne.s32.totalorder %s64, %s67
      %p73 = scmp.eq.s32.totalorder %s16, 0
      %p74 = por %p72, %p73
      %p75 = scmp.ne.s32.totalorder %s64, %s67
      %p76 = scmp.eq.s32.totalorder %s21, 1
      %p77 = por %p75, %p76
      %p78 = scmp.ne.s32.totalorder %s67, %s68
      %p79 = scmp.eq.s32.totalorder %s21, 0
      %p80 = por %p78, %p79
      %p81 = scmp.ne.s32.totalorder %s67, %s68
      %p82 = scmp.eq.s32.totalorder %s22, 1
      %p83 = por %p81, %p82
      %p85 = scmp.ne.s32.totalorder %s68, %s84
      %p86 = scmp.eq.s32.totalorder %s22, 0
      %p87 = por %p85, %p86
      %s88 = ssub.s32 %s24, %s31
      %p89 = scmp.eq.s32.totalorder %s88, 0
      %s91 = sadd.s32 %s90, 1
      %s92 = scalar_select %p89, %s90, %s91
      %p95 = pneg %p89
      %p96 = scmp.eq.s32.totalorder %s16, 1
      %p97 = por %p95, %p96
      %p98 = scmp.ne.s32.totalorder %s90, %s93
      %p99 = scmp.eq.s32.totalorder %s16, 0
      %p100 = por %p98, %p99
      %p101 = scmp.ne.s32.totalorder %s90, %s93
      %p102 = scmp.eq.s32.totalorder %s21, 1
      %p103 = por %p101, %p102
      %p104 = scmp.ne.s32.totalorder %s93, %s94
      %p105 = scmp.eq.s32.totalorder %s21, 0
      %p106 = por %p104, %p105
      %p107 = scmp.ne.s32.totalorder %s93, %s94
      %p108 = scmp.eq.s32.totalorder %s22, 1
      %p109 = por %p107, %p108
      %p111 = scmp.ne.s32.totalorder %s94, %s110
      %p112 = scmp.eq.s32.totalorder %s22, 0
      %p113 = por %p111, %p112
      %s114 = ssub.s32 %s24, %s31
      %p115 = scmp.eq.s32.totalorder %s114, 0
      %s117 = sadd.s32 %s116, 1
      %s118 = scalar_select %p115, %s116, %s117
      %p121 = pneg %p115
      %p122 = scmp.eq.s32.totalorder %s16, 1
      %p123 = por %p121, %p122
      %p124 = scmp.ne.s32.totalorder %s116, %s119
      %p125 = scmp.eq.s32.totalorder %s16, 0
      %p126 = por %p124, %p125
      %p127 = scmp.ne.s32.totalorder %s116, %s119
      %p128 = scmp.eq.s32.totalorder %s21, 1
      %p129 = por %p127, %p128
      %p130 = scmp.ne.s32.totalorder %s119, %s120
      %p131 = scmp.eq.s32.totalorder %s21, 0
      %p132 = por %p130, %p131
      %p133 = scmp.ne.s32.totalorder %s119, %s120
      %p134 = scmp.eq.s32.totalorder %s22, 1
      %p135 = por %p133, %p134
      %p137 = scmp.ne.s32.totalorder %s120, %s136
      %p138 = scmp.eq.s32.totalorder %s22, 0
      %p139 = por %p137, %p138
      %s141 = sadd.s32 %s140, 1
      %p144 = scmp.eq.s32.totalorder %s16, 1
      %p145 = scmp.ne.s32.totalorder %s140, %s142
      %p146 = scmp.eq.s32.totalorder %s16, 0
      %p147 = por %p145, %p146
      %p148 = scmp.ne.s32.totalorder %s140, %s142
      %p149 = scmp.eq.s32.totalorder %s21, 1
      %p150 = por %p148, %p149
      %p151 = scmp.ne.s32.totalorder %s142, %s143
      %p152 = scmp.eq.s32.totalorder %s21, 0
      %p153 = por %p151, %p152
      %p154 = scmp.ne.s32.totalorder %s142, %s143
      %p155 = scmp.eq.s32.totalorder %s22, 1
      %p156 = por %p154, %p155
      %p158 = scmp.ne.s32.totalorder %s143, %s157
      %p159 = scmp.eq.s32.totalorder %s22, 0
      %p160 = por %p158, %p159
      %s162 = sadd.s32 %s161, 1
      %p165 = scmp.eq.s32.totalorder %s16, 1
      %p166 = scmp.ne.s32.totalorder %s161, %s163
      %p167 = scmp.eq.s32.totalorder %s16, 0
      %p168 = por %p166, %p167
      %p169 = scmp.ne.s32.totalorder %s161, %s163
      %p170 = scmp.eq.s32.totalorder %s21, 1
      %p171 = por %p169, %p170
      %p172 = scmp.ne.s32.totalorder %s163, %s164
      %p173 = scmp.eq.s32.totalorder %s21, 0
      %p174 = por %p172, %p173
      %p175 = scmp.ne.s32.totalorder %s163, %s164
      %p176 = scmp.eq.s32.totalorder %s22, 1
      %p177 = por %p175, %p176
      %p179 = scmp.ne.s32.totalorder %s164, %s178
      %p180 = scmp.eq.s32.totalorder %s22, 0
      %p181 = por %p179, %p180
      %s183 = sadd.s32 %s182, 1
      %p186 = scmp.eq.s32.totalorder %s16, 1
      %p187 = scmp.ne.s32.totalorder %s182, %s184
      %p188 = scmp.eq.s32.totalorder %s16, 0
      %p189 = por %p187, %p188
      %p190 = scmp.ne.s32.totalorder %s182, %s184
      %p191 = scmp.eq.s32.totalorder %s21, 1
      %p192 = por %p190, %p191
      %p193 = scmp.ne.s32.totalorder %s184, %s185
      %p194 = scmp.eq.s32.totalorder %s21, 0
      %p195 = por %p193, %p194
      %p196 = scmp.ne.s32.totalorder %s184, %s185
      %p197 = scmp.eq.s32.totalorder %s22, 1
      %p198 = por %p196, %p197
      %p200 = scmp.ne.s32.totalorder %s185, %s199
      %p201 = scmp.eq.s32.totalorder %s22, 0
      %p202 = por %p200, %p201
      %s203 = ssub.s32 %s23, %s35
      %p204 = scmp.eq.s32.totalorder %s203, 0
      %s206 = sadd.s32 %s205, 1
      %s207 = scalar_select %p204, %s205, %s206
      %p210 = pneg %p204
      %p211 = scmp.eq.s32.totalorder %s16, 1
      %p212 = por %p210, %p211
      %p213 = scmp.ne.s32.totalorder %s205, %s208
      %p214 = scmp.eq.s32.totalorder %s16, 0
      %p215 = por %p213, %p214
      %p216 = scmp.ne.s32.totalorder %s205, %s208
      %p217 = scmp.eq.s32.totalorder %s21, 1
      %p218 = por %p216, %p217
      %p219 = scmp.ne.s32.totalorder %s208, %s209
      %p220 = scmp.eq.s32.totalorder %s21, 0
      %p221 = por %p219, %p220
      %p222 = scmp.ne.s32.totalorder %s208, %s209
      %p223 = scmp.eq.s32.totalorder %s22, 1
      %p224 = por %p222, %p223
      %p226 = scmp.ne.s32.totalorder %s209, %s225
      %p227 = scmp.eq.s32.totalorder %s22, 0
      %p228 = por %p226, %p227
      %p229 = scmp.le.s32.totalorder 1, %s16
      %p230 = scmp.lt.s32.totalorder %s16, 3
      %p231 = pnand %p229, %p230
      %p232 = pneg %p231
      // Predicated region
      $region9: #{block_forward.3} parent=5 // pred_check
        _
      $region10: #{block_forward.3} parent=5 // pred_check_branch
        %234 = sbr.rel (%p231) target = $region12
      $region11: #{block_forward.3} parent=5 // pred_region
        %s235 = ssub.s32 %s16, 1
        // Predicated region
        $region13: #{block_forward.3} parent=11 // pred_check
          %p236 = pneg %p80
        $region14: #{block_forward.3} parent=11 // pred_check_branch
          %238 = sbr.rel (%p236) target = $region16
        $region15: #{block_forward.3} parent=11 // pred_region
          %s239 = smul.u32 2, %s26
          %p240 = scmp.lt.s32.totalorder %s239, 1
          %s241 = scalar_select %p240, %s239, 1
          %s242 = smul.addr %s241, 4
          %s243 = scalar_lea.vmem %s1, %s242
          %s244 = smul.u32 2, %s26
        $region16: #{block_forward.3} parent=11 // pred_fallthru
          _
        // Predicated region
        $region17: #{block_forward.3} parent=11 // pred_check
          %p245 = pneg %p106
        $region18: #{block_forward.3} parent=11 // pred_check_branch
          %247 = sbr.rel (%p245) target = $region20
        $region19: #{block_forward.3} parent=11 // pred_region
          %s248 = smul.u32 2, %s26
          %p249 = scmp.lt.s32.totalorder %s248, 1
          %s250 = scalar_select %p249, %s248, 1
          %s251 = scalar_lea.vmem %s2, %s250
          %s252 = smul.u32 2, %s26
        $region20: #{block_forward.3} parent=11 // pred_fallthru
          _
        // Predicated region
        $region21: #{block_forward.3} parent=11 // pred_check
          %p253 = pneg %p132
        $region22: #{block_forward.3} parent=11 // pred_check_branch
          %255 = sbr.rel (%p253) target = $region24
        $region23: #{block_forward.3} parent=11 // pred_region
          %s256 = smul.u32 32, %s26
          %p257 = scmp.lt.s32.totalorder %s256, 31
          %s258 = scalar_select %p257, %s256, 31
          %s259 = smul.addr %s258, 4
          %s260 = scalar_lea.vmem %s3, %s259
          %s261 = smul.u32 32, %s26
        $region24: #{block_forward.3} parent=11 // pred_fallthru
          _
        // Predicated region
        $region25: #{block_forward.3} parent=11 // pred_check
          %p262 = pneg %p153
        $region26: #{block_forward.3} parent=11 // pred_check_branch
          %264 = sbr.rel (%p262) target = $region28
        $region27: #{block_forward.3} parent=11 // pred_region
          _
        $region28: #{block_forward.3} parent=11 // pred_fallthru
          _
        // Predicated region
        $region29: #{block_forward.3} parent=11 // pred_check
          %p265 = pneg %p174
        $region30: #{block_forward.3} parent=11 // pred_check_branch
          %267 = sbr.rel (%p265) target = $region32
        $region31: #{block_forward.3} parent=11 // pred_region
          _
        $region32: #{block_forward.3} parent=11 // pred_fallthru
          _
        // Predicated region
        $region33: #{block_forward.3} parent=11 // pred_check
          %p268 = pneg %p195
        $region34: #{block_forward.3} parent=11 // pred_check_branch
          %270 = sbr.rel (%p268) target = $region36
        $region35: #{block_forward.3} parent=11 // pred_region
          _
        $region36: #{block_forward.3} parent=11 // pred_fallthru
          _
      $region12: #{block_forward.3} parent=5 // pred_fallthru
        _
      %p271 = scmp.lt.s32.totalorder %s16, 2
      // Predicated region
      $region37: #{block_forward.3} parent=5 // pred_check
        %p272 = pneg %p271
      $region38: #{block_forward.3} parent=5 // pred_check_branch
        %274 = sbr.rel (%p272) target = $region40
      $region39: #{block_forward.3} parent=5 // pred_region
        // Predicated region
        $region41: #{block_forward.3} parent=39 // pred_check
          %p275 = pneg %p48
        $region42: #{block_forward.3} parent=39 // pred_check_branch
          %277 = sbr.rel (%p275) target = $region44
        $region43: #{block_forward.3} parent=39 // pred_region
          %s278 = smul.u32 2, %s23
          %p279 = scmp.lt.s32.totalorder %s278, 3
          %s280 = scalar_select %p279, %s278, 3
          %s281 = smul.addr %s280, 8
          %s282 = scalar_lea.vmem %s0, %s281
          %s283 = smul.u32 2, %s23
        $region44: #{block_forward.3} parent=39 // pred_fallthru
          _
      $region40: #{block_forward.3} parent=5 // pred_fallthru
        _
      %p284 = scmp.le.s32.totalorder 1, %s16
      %p285 = scmp.lt.s32.totalorder %s16, 3
      %p286 = pnand %p284, %p285
      %p287 = pneg %p286
      // Predicated region
      $region45: #{block_forward.3} parent=5 // pred_check
        _
      $region46: #{block_forward.3} parent=5 // pred_check_branch
        %289 = sbr.rel (%p286) target = $region48
      $region47: #{block_forward.3} parent=5 // pred_region
        %s290 = ssub.s32 %s16, 1
        %s291 = smul.u32 2, %s25
        %p292 = scmp.lt.s32.totalorder %s291, 3
        %s293 = scalar_select %p292, %s291, 3
        %s294 = smul.addr %s293, 8
        %s295 = scalar_lea.vmem %s0, %s294
        %p296 = pneg %p54
        %p297 = pneg %p51
        %s298 = smul.u32 2, %s26
        %p299 = scmp.lt.s32.totalorder %s298, 1
        %s300 = scalar_select %p299, %s298, 1
        %s301 = smul.addr %s300, 4
        %s302 = scalar_lea.vmem %s1, %s301
        %p303 = pneg %p80
        %p304 = pneg %p77
        %s305 = smul.u32 2, %s26
        %p306 = scmp.lt.s32.totalorder %s305, 1
        %s307 = scalar_select %p306, %s305, 1
        %s308 = scalar_lea.vmem %s2, %s307
        %p309 = pneg %p106
        %p310 = pneg %p103
        %s311 = smul.u32 32, %s26
        %p312 = scmp.lt.s32.totalorder %s311, 31
        %s313 = scalar_select %p312, %s311, 31
        %s314 = smul.addr %s313, 4
        %s315 = scalar_lea.vmem %s3, %s314
        %p316 = pneg %p132
        %p317 = pneg %p129
        %p318 = pneg %p153
        %p319 = pneg %p150
        %p320 = pneg %p174
        %p321 = pneg %p171
        %p322 = pneg %p195
        %p323 = pneg %p192
        %p324 = pneg %p221
        %p325 = pneg %p218
        %s326 = sand.u32 %s208, 1
        %s327 = scalar_lea.sflag [#allocation4], %s326
        %s328 = sand.u32 %s208, 1
        %s329 = smul.addr %s328, 16
        %s330 = scalar_lea.vmem [#allocation3], %s329
        %s331 = smul.u32 2, %s25
        %p332 = scmp.lt.s32.totalorder %s331, 3
        %s333 = scalar_select %p332, %s331, 3
        %s334 = smul.addr %s333, 8
        %s335 = scalar_lea.vmem %s0, %s334
        %s336 = smul.u32 2, %s25
        %s337 = smul.u32 2, %s26
        %p338 = scmp.lt.s32.totalorder %s337, 1
        %s339 = scalar_select %p338, %s337, 1
        %s340 = smul.addr %s339, 4
        %s341 = scalar_lea.vmem %s1, %s340
        %s342 = smul.u32 2, %s26
        %s343 = smul.u32 2, %s26
        %p344 = scmp.lt.s32.totalorder %s343, 1
        %s345 = scalar_select %p344, %s343, 1
        %s346 = scalar_lea.vmem %s2, %s345
        %s347 = smul.u32 2, %s26
        %s348 = smul.u32 32, %s26
        %p349 = scmp.lt.s32.totalorder %s348, 31
        %s350 = scalar_select %p349, %s348, 31
        %s351 = smul.addr %s350, 4
        %s352 = scalar_lea.vmem %s3, %s351
        %s353 = smul.u32 32, %s26
        %s354 = smul.u32 2, %s25
        %p356 = scmp.eq.s32.totalorder %s26, 0
        // Predicated region
        $region49: #{block_forward.3} parent=47 // pred_check
          %p357 = pneg %p356
        $region50: #{block_forward.3} parent=47 // pred_check_branch
          %359 = sbr.rel (%p357) target = $region52
        $region51: #{block_forward.3} parent=47 // pred_region
          %vm360 = vcmask 523264
          %361 = vst.msk [vmem:[#allocation2] sm:$0xff] %vm360, 0.0
          %362 = vst.msk [vmem:[#allocation2 + $0x8] sm:$0xff] %vm360, 0.0
        $region52: #{block_forward.3} parent=47 // pred_fallthru
          _
        %v363 = vld [vmem:[%s335] sm:$0xff]
        %v364 = vld [vmem:[%s335 + $0x8] sm:$0xff]
        %v365 = vpack.c.bf16 %v364, %v363
        %v366 = vld [vmem:[%s341] sm:$0xff]
        %v367 = vld [vmem:[%s341 + $0x8] sm:$0xff]
        %v368 = vld [vmem:[%s341 + $0x10] sm:$0xff]
        %v369 = vld [vmem:[%s341 + $0x18] sm:$0xff]
        %v370 = vld [vmem:[%s341 + $0x20] sm:$0xff]
        %v371 = vld [vmem:[%s341 + $0x28] sm:$0xff]
        %v372 = vld [vmem:[%s341 + $0x30] sm:$0xff]
        %v373 = vld [vmem:[%s341 + $0x38] sm:$0xff]
        %v374 = vld [vmem:[%s346] sm:$0x3]
        %v376 = vlaneseq
        %v377 = vshrl.u32 %v376, 7
        %v378 = vsub.s32 0, %v377
        %v379 = vrot.slane %v374, %v378
        %v380 = vlaneseq
        %v381 = vshrl.u32 %v380, 7
        %v382 = vsub.s32 1, %v381
        %v383 = vrot.slane %v374, %v382
        %v394 = vunpack.c.l.b16 %v366
        %v395 = vunpack.c.h.b16 %v366
        %v396 = vunpack.c.l.b16 %v367
        %v397 = vunpack.c.h.b16 %v367
        %v398 = vunpack.c.l.b16 %v368
        %v399 = vunpack.c.h.b16 %v368
        %v400 = vunpack.c.l.b16 %v369
        %v401 = vunpack.c.h.b16 %v369
        %v402 = vunpack.c.l.b16 %v370
        %v403 = vunpack.c.h.b16 %v370
        %v404 = vunpack.c.l.b16 %v371
        %v405 = vunpack.c.h.b16 %v371
        %v406 = vunpack.c.l.b16 %v372
        %v407 = vunpack.c.h.b16 %v372
        %v408 = vunpack.c.l.b16 %v373
        %v409 = vunpack.c.h.b16 %v373
        %v410 = vpack.c.b16 %v396, %v394
        %v411 = vpack.c.b16 %v397, %v395
        %v412 = vpack.c.b16 %v400, %v398
        %v413 = vpack.c.b16 %v401, %v399
        %v414 = vpack.c.b16 %v404, %v402
        %v415 = vpack.c.b16 %v405, %v403
        %v416 = vpack.c.b16 %v408, %v406
        %v417 = vpack.c.b16 %v409, %v407
        %vm426 = vcmask 523264
        %v428 = vsel %vm426, %v365, 0
        %430 = vmatprep.subr.bf16.mxu0 %v411
        %431 = vmatpush1.bf16.msra.mxu0 %v410
        %432 = vmatprep.subr.bf16.mxu0 %v413
        %433 = vmatpush1.bf16.msra.mxu0 %v412
        %434 = vmatprep.subr.bf16.mxu0 %v415
        %435 = vmatpush1.bf16.msra.mxu0 %v414
        %436 = vmatprep.subr.bf16.mxu0 %v417
        %437 = vmatpush1.bf16.msra.mxu0 %v416
        %438 = vmatprep.subr.bf16.mxu0 0
        %439 = vmatpush1.bf16.msra.mxu0 0
        %440 = vmatprep.subr.bf16.mxu0 0
        %441 = vmatpush1.bf16.msra.mxu0 0
        %442 = vmatprep.subr.bf16.mxu0 0
        %443 = vmatpush1.bf16.msra.mxu0 0
        %444 = vmatprep.subr.bf16.mxu0 0
        %445 = vmatpush1.bf16.msra.mxu0 0
        %446 = vmatprep.subr.bf16.mxu0 0
        %447 = vmatpush1.bf16.msra.mxu0 0
        %448 = vmatprep.subr.bf16.mxu0 0
        %449 = vmatpush1.bf16.msra.mxu0 0
        %450 = vmatprep.subr.bf16.mxu0 0
        %451 = vmatpush1.bf16.msra.mxu0 0
        %452 = vmatprep.subr.bf16.mxu0 0
        %453 = vmatpush1.bf16.msra.mxu0 0
        %454 = vmatprep.subr.bf16.mxu0 0
        %455 = vmatpush1.bf16.msra.mxu0 0
        %456 = vmatprep.subr.bf16.mxu0 0
        %457 = vmatpush1.bf16.msra.mxu0 0
        %458 = vmatprep.subr.bf16.mxu0 0
        %459 = vmatpush1.bf16.msra.mxu0 0
        %460 = vmatprep.subr.bf16.mxu0 0
        %461 = vmatpush1.bf16.msra.mxu0 0
        %462 = vmatprep.mubr.bf16.mxu0 0
        %463 = vmatmul.mubr.bf16.gmra.mrb[0].mxu0 %v428
        %v464 = vpop.f32.mrb[0].mxu0
        %v465 = vadd.f32 %v379, %v464
        %v466 = vpop.f32.mrb[0].mxu0
        %v467 = vadd.f32 %v383, %v466
        %v468 = vpop.f32.mrb[0].mxu0
        %v469 = vadd.f32 %v379, %v468
        %v470 = vpop.f32.mrb[0].mxu0
        %v471 = vadd.f32 %v383, %v470
        %472 = vdwg.mxu0
        %v473 = vmax.f32 %v465, 0.0
        %v474 = vmax.f32 %v467, 0.0
        %v475 = vmax.f32 %v469, 0.0
        %v476 = vmax.f32 %v471, 0.0
        %v477 = vld [vmem:[#allocation2] sm:$0xff]
        %v478 = vld [vmem:[#allocation2 + $0x8] sm:$0xff]
        %v479 = vpack.c.bf16 %v475, %v473
        %v480 = vpack.c.bf16 %v476, %v474
        %v481 = vld [vmem:[%s352] sm:$0xf]
        %v482 = vld [vmem:[%s352 + $0x4] sm:$0xf]
        %v483 = vld [vmem:[%s352 + $0x8] sm:$0xf]
        %v484 = vld [vmem:[%s352 + $0xc] sm:$0xf]
        %v485 = vld [vmem:[%s352 + $0x10] sm:$0xf]
        %v486 = vld [vmem:[%s352 + $0x14] sm:$0xf]
        %v487 = vld [vmem:[%s352 + $0x18] sm:$0xf]
        %v488 = vld [vmem:[%s352 + $0x1c] sm:$0xf]
        %v489 = vld [vmem:[%s352 + $0x20] sm:$0xf]
        %v490 = vld [vmem:[%s352 + $0x24] sm:$0xf]
        %v491 = vld [vmem:[%s352 + $0x28] sm:$0xf]
        %v492 = vld [vmem:[%s352 + $0x2c] sm:$0xf]
        %v493 = vld [vmem:[%s352 + $0x30] sm:$0xf]
        %v494 = vld [vmem:[%s352 + $0x34] sm:$0xf]
        %v495 = vld [vmem:[%s352 + $0x38] sm:$0xf]
        %v496 = vld [vmem:[%s352 + $0x3c] sm:$0xf]
        %v497 = vld [vmem:[%s352 + $0x40] sm:$0xf]
        %v498 = vld [vmem:[%s352 + $0x44] sm:$0xf]
        %v499 = vld [vmem:[%s352 + $0x48] sm:$0xf]
        %v500 = vld [vmem:[%s352 + $0x4c] sm:$0xf]
        %v501 = vld [vmem:[%s352 + $0x50] sm:$0xf]
        %v502 = vld [vmem:[%s352 + $0x54] sm:$0xf]
        %v503 = vld [vmem:[%s352 + $0x58] sm:$0xf]
        %v504 = vld [vmem:[%s352 + $0x5c] sm:$0xf]
        %v505 = vld [vmem:[%s352 + $0x60] sm:$0xf]
        %v506 = vld [vmem:[%s352 + $0x64] sm:$0xf]
        %v507 = vld [vmem:[%s352 + $0x68] sm:$0xf]
        %v508 = vld [vmem:[%s352 + $0x6c] sm:$0xf]
        %v509 = vld [vmem:[%s352 + $0x70] sm:$0xf]
        %v510 = vld [vmem:[%s352 + $0x74] sm:$0xf]
        %v511 = vld [vmem:[%s352 + $0x78] sm:$0xf]
        %v512 = vld [vmem:[%s352 + $0x7c] sm:$0xf]
        %v545 = vunpack.c.l.b16 %v481
        %v546 = vunpack.c.l.b16 %v482
        %v547 = vunpack.c.l.b16 %v483
        %v548 = vunpack.c.l.b16 %v484
        %v549 = vunpack.c.l.b16 %v485
        %v550 = vunpack.c.l.b16 %v486
        %v551 = vunpack.c.l.b16 %v487
        %v552 = vunpack.c.l.b16 %v488
        %v553 = vunpack.c.l.b16 %v489
        %v554 = vunpack.c.l.b16 %v490
        %v555 = vunpack.c.l.b16 %v491
        %v556 = vunpack.c.l.b16 %v492
        %v557 = vunpack.c.l.b16 %v493
        %v558 = vunpack.c.l.b16 %v494
        %v559 = vunpack.c.l.b16 %v495
        %v560 = vunpack.c.l.b16 %v496
        %v561 = vunpack.c.l.b16 %v497
        %v562 = vunpack.c.l.b16 %v498
        %v563 = vunpack.c.l.b16 %v499
        %v564 = vunpack.c.l.b16 %v500
        %v565 = vunpack.c.l.b16 %v501
        %v566 = vunpack.c.l.b16 %v502
        %v567 = vunpack.c.l.b16 %v503
        %v568 = vunpack.c.l.b16 %v504
        %v569 = vunpack.c.l.b16 %v505
        %v570 = vunpack.c.l.b16 %v506
        %v571 = vunpack.c.l.b16 %v507
        %v572 = vunpack.c.l.b16 %v508
        %v573 = vunpack.c.l.b16 %v509
        %v574 = vunpack.c.l.b16 %v510
        %v575 = vunpack.c.l.b16 %v511
        %v576 = vunpack.c.l.b16 %v512
        %v577 = vpack.c.b16 %v546, %v545
        %v578 = vpack.c.b16 %v548, %v547
        %v579 = vpack.c.b16 %v550, %v549
        %v580 = vpack.c.b16 %v552, %v551
        %v581 = vpack.c.b16 %v554, %v553
        %v582 = vpack.c.b16 %v556, %v555
        %v583 = vpack.c.b16 %v558, %v557
        %v584 = vpack.c.b16 %v560, %v559
        %v585 = vpack.c.b16 %v562, %v561
        %v586 = vpack.c.b16 %v564, %v563
        %v587 = vpack.c.b16 %v566, %v565
        %v588 = vpack.c.b16 %v568, %v567
        %v589 = vpack.c.b16 %v570, %v569
        %v590 = vpack.c.b16 %v572, %v571
        %v591 = vpack.c.b16 %v574, %v573
        %v592 = vpack.c.b16 %v576, %v575
        %609 = vmatprep.subr.bf16.mxu0 0
        %610 = vmatpush1.bf16.msra.mxu0 %v577
        %611 = vmatprep.subr.bf16.mxu0 0
        %612 = vmatpush1.bf16.msra.mxu0 %v578
        %613 = vmatprep.subr.bf16.mxu0 0
        %614 = vmatpush1.bf16.msra.mxu0 %v579
        %615 = vmatprep.subr.bf16.mxu0 0
        %616 = vmatpush1.bf16.msra.mxu0 %v580
        %617 = vmatprep.subr.bf16.mxu0 0
        %618 = vmatpush1.bf16.msra.mxu0 %v581
        %619 = vmatprep.subr.bf16.mxu0 0
        %620 = vmatpush1.bf16.msra.mxu0 %v582
        %621 = vmatprep.subr.bf16.mxu0 0
        %622 = vmatpush1.bf16.msra.mxu0 %v583
        %623 = vmatprep.subr.bf16.mxu0 0
        %624 = vmatpush1.bf16.msra.mxu0 %v584
        %625 = vmatprep.subr.bf16.mxu0 0
        %626 = vmatpush1.bf16.msra.mxu0 %v585
        %627 = vmatprep.subr.bf16.mxu0 0
        %628 = vmatpush1.bf16.msra.mxu0 %v586
        %629 = vmatprep.subr.bf16.mxu0 0
        %630 = vmatpush1.bf16.msra.mxu0 %v587
        %631 = vmatprep.subr.bf16.mxu0 0
        %632 = vmatpush1.bf16.msra.mxu0 %v588
        %633 = vmatprep.subr.bf16.mxu0 0
        %634 = vmatpush1.bf16.msra.mxu0 %v589
        %635 = vmatprep.subr.bf16.mxu0 0
        %636 = vmatpush1.bf16.msra.mxu0 %v590
        %637 = vmatprep.subr.bf16.mxu0 0
        %638 = vmatpush1.bf16.msra.mxu0 %v591
        %639 = vmatprep.subr.bf16.mxu0 0
        %640 = vmatpush1.bf16.msra.mxu0 %v592
        %641 = vmatprep.mubr.bf16.mxu0 %v480
        %642 = vmatmul.mubr.bf16.gmra.mrb[0].mxu0 %v479
        %v643 = vpop.f32.mrb[0].mxu0
        %v644 = vadd.f32 0.0, %v643
        %v645 = vpop.f32.mrb[0].mxu0
        %v646 = vpop.f32.mrb[0].mxu0
        %v647 = vadd.f32 0.0, %v646
        %v648 = vpop.f32.mrb[0].mxu0
        %649 = vdwg.mxu0
        %v650 = vadd.f32 %v477, %v644
        %v651 = vadd.f32 %v478, %v647
        %652 = vst.msk [vmem:[#allocation2] sm:$0xff] %vm426, %v650
        %653 = vst.msk [vmem:[#allocation2 + $0x8] sm:$0xff] %vm426, %v651
        // Predicated region
        $region53: #{block_forward.3} parent=47 // pred_check
          %p654 = pneg %p356
        $region54: #{block_forward.3} parent=47 // pred_check_branch
          %656 = sbr.rel (%p654) target = $region56
        $region55: #{block_forward.3} parent=47 // pred_region
          %v657 = vld [vmem:[#allocation2] sm:$0xff]
          %v658 = vld [vmem:[#allocation2 + $0x8] sm:$0xff]
          %v659 = vadd.f32 %v363, %v657
          %v660 = vadd.f32 %v364, %v658
          %v661 = vld [vmem:[%s4] sm:$0x1]
          %v663 = vlaneseq
          %v664 = vshrl.u32 %v663, 7
          %v665 = vsub.s32 0, %v664
          %v666 = vrot.slane %v661, %v665
          %v668 = vadd.f32 %v659, %v666
          %v669 = vadd.f32 %v660, %v666
          %v670 = vsel %vm426, %v668, 0.0
          %671 = vadd.xlane.f32.xlu0 %v670
          %v672 = vpop.xlane.xlu0 %671
          %v673 = vsel %vm426, %v669, 0.0
          %674 = vadd.xlane.f32.xlu0 %v673
          %v675 = vpop.xlane.xlu0 %674
          %v676 = vrcp.pop 64.0
          %v677 = vmul.f32 %v672, %v676
          %v678 = vmul.f32 %v675, %v676
          %v679 = vsub.f32 %v668, %v677
          %v680 = vsub.f32 %v669, %v678
          %v681 = vmul.f32 %v679, %v679
          %v682 = vmul.f32 %v680, %v680
          %v683 = vsel %vm426, %v681, 0.0
          %684 = vadd.xlane.f32.xlu0 %v683
          %v685 = vpop.xlane.xlu0 %684
          %v686 = vsel %vm426, %v682, 0.0
          %687 = vadd.xlane.f32.xlu0 %v686
          %v688 = vpop.xlane.xlu0 %687
          %v689 = vmul.f32 %v685, %v676
          %v690 = vmul.f32 %v688, %v676
          %v691 = vadd.f32 %v689, 1e-05
          %v692 = vadd.f32 %v690, 1e-05
          %v693 = vrsqrt.pop %v691
          %v694 = vrsqrt.pop %v692
          %v695 = vmul.f32 %v679, %v693
          %v696 = vmul.f32 %v680, %v694
          %v697 = vld [vmem:[%s5] sm:$0x1]
          %v699 = vlaneseq
          %v700 = vshrl.u32 %v699, 7
          %v701 = vsub.s32 0, %v700
          %v702 = vrot.slane %v697, %v701
          %v704 = vmul.f32 %v695, %v702
          %v705 = vmul.f32 %v696, %v702
          %v706 = vld [vmem:[%s6] sm:$0x1]
          %v708 = vlaneseq
          %v709 = vshrl.u32 %v708, 7
          %v710 = vsub.s32 0, %v709
          %v711 = vrot.slane %v706, %v710
          %v713 = vadd.f32 %v704, %v711
          %v714 = vadd.f32 %v705, %v711
          %715 = vst.msk [vmem:[%s330] sm:$0xff] %vm426, %v713
          %716 = vst.msk [vmem:[%s330 + $0x8] sm:$0xff] %vm426, %v714
        $region56: #{block_forward.3} parent=47 // pred_fallthru
          _
        %s717 = sand.u32 %s208, 1
        %s718 = scalar_lea.sflag [#allocation4], %s717
        %s719 = sand.u32 %s208, 1
        %s720 = smul.addr %s719, 16
        %s721 = scalar_lea.vmem [#allocation3], %s720
        // Predicated region
        $region57: #{block_forward.3} parent=47 // pred_check
          %p722 = pneg %p218
        $region58: #{block_forward.3} parent=47 // pred_check_branch
          %724 = sbr.rel (%p722) target = $region60
        $region59: #{block_forward.3} parent=47 // pred_region
          %s725 = smul.u32 2, %s25
          %s727 = ssub.s32 256, 256
          %728 = vsyncadd %s718, %s727
          %s729 = smul.addr %s725, 128
          %s730 = scalar_lea.hbm %s7, %s729
          %s731 = sshll.u32 %s721, 4
          %s732 = int_to_ptr.vmem [resolvable:$true] %s731
          %737 = dma.vmem_to_hbm [thread:$0]  %s732, 256, %s730, %s718, 128, 128, 8
        $region60: #{block_forward.3} parent=47 // pred_fallthru
          _
      $region48: #{block_forward.3} parent=5 // pred_fallthru
        _
      %p738 = scmp.le.s32.totalorder 2, %s16
      // Predicated region
      $region61: #{block_forward.3} parent=5 // pred_check
        %p739 = pneg %p738
      $region62: #{block_forward.3} parent=5 // pred_check_branch
        %741 = sbr.rel (%p739) target = $region64
      $region63: #{block_forward.3} parent=5 // pred_region
        %s742 = ssub.s32 %s16, 2
        // Predicated region
        $region65: #{block_forward.3} parent=63 // pred_check
          %p743 = pneg %p224
        $region66: #{block_forward.3} parent=63 // pred_check_branch
          %745 = sbr.rel (%p743) target = $region68
        $region67: #{block_forward.3} parent=63 // pred_region
          %s746 = sand.u32 %s209, 1
          %s747 = scalar_lea.sflag [#allocation4], %s746
          %s748 = sand.u32 %s209, 1
          %s749 = smul.addr %s748, 16
          %s750 = scalar_lea.vmem [#allocation3], %s749
          %751 = dma.done %s747, 256
        $region68: #{block_forward.3} parent=63 // pred_fallthru
          _
      $region64: #{block_forward.3} parent=5 // pred_fallthru
        _
    $region6: #{block_forward.3} parent=1 // loop_footer
      %s20 = sadd.s32 1, %s16
    $region7: #{block_forward.3} parent=1 // loop_footer_branch
      %15 = sbr.rel target = $region3
    $region8: #{block_forward.3} parent=1 // loop_exit
      _
    %752 = vsyncpa [#allocation4], 1
    %s753 = scalar_lea.sflag [#allocation4], 1
    %754 = vsyncpa %s753, 1

</llo_original>
